<compile_context>
chip_gen: v7x
topology: tpu7x:2x2x1
jax: 0.10.0
libtpu: 0.0.40
codegen_flags: <defaults>
</compile_context>

<pallas_src>
import jax
import jax.numpy as jnp
import numpy as np
from jax import lax
from jax.experimental import pallas as pl
from jax.experimental.pallas import tpu as pltpu

EPS = 1e-5
C_PAD = 128          # lane-dense channel width used inside the kernel
SUB = 8              # f32 sublane granularity
SUB_BF16 = 16        # bf16 sublane granularity (packed)

# (Cin, Cout, kernel, stride, pad) for conv1..conv5
LAYER_CFG = [
    (3, 24, 3, 2, 1),
    (24, 24, 3, 2, 1),
    (24, 24, 3, 2, 1),
    (24, 24, 3, 2, 1),
    (24, 24, 2, 2, 1),
]


def _round_up(x, m):
    return ((x + m - 1) // m) * m


def _layer_geometry(n, h0, w0):
    """Static per-layer geometry (trace-time Python only)."""
    geo = []
    h, w = h0, w0
    for (_, _, k, s, p) in LAYER_CFG:
        ho = (h + 2 * p - k) // s + 1
        wo = (w + 2 * p - k) // s + 1
        m_out = n * ho * wo
        r_out = _round_up(m_out, SUB)
        geo.append(dict(k=k, s=s, p=p, taps=k * k, h=h, w=w, ho=ho, wo=wo,
                        m_in=n * h * w, m_out=m_out, r_out=r_out,
                        gpad=_round_up(k * k * r_out, SUB_BF16)))
        h, w = ho, wo
    return geo


def _build_gather(n, g):
    """One-hot row-gather block (gpad, 128): exact im2col row selection for
    layers >= 2 with implicit spatial zero padding.  Columns are padded to 128
    lanes; rows are padded to a bf16 sublane multiple.  All pad entries are 0,
    so they select nothing."""
    k, s, p = g["k"], g["s"], g["p"]
    h, w, ho, wo = g["h"], g["w"], g["ho"], g["wo"]
    # TODO(synk): at real sizes (m_in > 128) this becomes strided VMEM reads.
    assert g["m_in"] <= C_PAD and g["r_out"] <= C_PAD
    mat = np.zeros((g["gpad"], C_PAD), np.float32)
    for di in range(k):
        for dj in range(k):
            t = di * k + dj
            for b in range(n):
                for i in range(ho):
                    for j in range(wo):
                        ih, iw = i * s + di - p, j * s + dj - p
                        if 0 <= ih < h and 0 <= iw < w:
                            mat[t * g["r_out"] + (b * ho + i) * wo + j,
                                (b * h + ih) * w + iw] = 1.0
    return mat


def _make_fused_kernel(geo):
    n_layers = len(geo)

    def epilogue(acc, l, m_out, pp_ref):
        # Training-mode BatchNorm folded into one scale/shift (conv bias is
        # exactly cancelled by the mean subtraction and is dropped).  Padded
        # rows/channels of `acc` are exactly zero, so dividing the sums by the
        # true element count m_out gives correct statistics.
        inv_m = jnp.float32(1.0 / m_out)
        mean = jnp.sum(acc, axis=0, keepdims=True) * inv_m
        ex2 = jnp.sum(acc * acc, axis=0, keepdims=True) * inv_m
        var = jnp.maximum(ex2 - mean * mean, 0.0)      # clamp f32 cancellation
        scale = pp_ref[2 * l] * lax.rsqrt(var + EPS)   # (1, 128)
        shift = pp_ref[2 * l + 1] - mean * scale       # (1, 128)
        return jnp.maximum(acc * scale + shift, 0.0)   # ReLU

    def kernel(p1_ref, g_ref, w_ref, pp_ref, o_ref, act_ref):
        # Defensive zero-init only needed if layer 1 does not fill the whole
        # scratch (later layers' gather pad columns multiply these rows by 0,
        # but uninitialized VMEM could hold NaN bit patterns).
        if geo[0]["r_out"] < C_PAD:
            act_ref[...] = jnp.zeros((C_PAD, C_PAD), jnp.float32)

        # ---- layer 1: wrapper-side im2col patches -> single MXU matmul ----
        g0 = geo[0]
        acc = jnp.dot(p1_ref[...], w_ref[0:C_PAD, :],
                      preferred_element_type=jnp.float32)
        act = epilogue(acc, 0, g0["m_out"], pp_ref)
        act_ref[pl.ds(0, g0["r_out"]), :] = act        # layer boundary: VMEM

        # ---- layers 2..L: bf16 one-hot gather (one matmul per layer) ----
        g_off = 0
        w_off = C_PAD
        for l in range(1, n_layers):
            g = geo[l]
            taps, r_out, m_out, gpad = g["taps"], g["r_out"], g["m_out"], g["gpad"]
            # Exact row selection: 0/1 constants upcast bf16->f32 in VMEM so
            # the selected activation values stay bit-identical f32.
            gmat = g_ref[g_off:g_off + gpad, :].astype(jnp.float32)
            sel = jnp.dot(gmat, act_ref[...],
                          preferred_element_type=jnp.float32)  # (gpad, 128)
            # Tap-weight contraction kept as per-tap matmuls for lowering
            # robustness (multi-contracting-dim dot_general deferred); all
            # slices are sublane-aligned and these layers are <5% of the work.
            acc = jnp.zeros((r_out, C_PAD), jnp.float32)
            for t in range(taps):
                acc = acc + jnp.dot(
                    sel[t * r_out:(t + 1) * r_out, :],
                    w_ref[w_off + t * C_PAD:w_off + (t + 1) * C_PAD, :],
                    preferred_element_type=jnp.float32)
            act = epilogue(acc, l, m_out, pp_ref)
            if l == n_layers - 1:
                o_ref[...] = act
            else:
                act_ref[pl.ds(0, r_out), :] = act      # layer boundary: VMEM
            g_off += gpad
            w_off += taps * C_PAD

    return kernel


def pack_params(params):
    """One-time parameter layout packing (outside the hot path).

    Layer 1 is packed as (k*k*Cin, Cout) rows matching the wrapper im2col
    column layout; layers 2..5 as per-tap (128, 128) slabs.  Conv bias is
    dropped: under training-mode BatchNorm it is algebraically a no-op."""
    w_blocks, pp_rows = [], []
    for l, ((cin, cout, k, _, _), layer) in enumerate(zip(LAYER_CFG, params)):
        w = jnp.transpose(layer["w"], (2, 3, 1, 0))            # (kh, kw, cin, cout)
        if l == 0:
            assert k * k * cin <= C_PAD
            w0 = w.reshape(k * k * cin, cout)
            w_blocks.append(jnp.pad(w0, ((0, C_PAD - k * k * cin),
                                         (0, C_PAD - cout))))
        else:
            wl = w.reshape(k * k, cin, cout)
            wl = jnp.pad(wl, ((0, 0), (0, C_PAD - cin), (0, C_PAD - cout)))
            w_blocks.append(wl.reshape(k * k * C_PAD, C_PAD))
        pp_rows.append(jnp.pad(layer["gamma"], (0, C_PAD - cout)))
        pp_rows.append(jnp.pad(layer["beta"], (0, C_PAD - cout)))
    w_all = jnp.concatenate(w_blocks, axis=0).astype(jnp.float32)
    pp = jnp.stack(pp_rows, axis=0)[:, None, :].astype(jnp.float32)  # (2L,1,128)
    return w_all, pp


@jax.jit
def cnn_forward(img_nchw, w_all, pp):
    n, c0, h0, w0 = img_nchw.shape
    geo = _layer_geometry(n, h0, w0)
    g0 = geo[0]
    assert g0["r_out"] <= C_PAD  # TODO(synk): M-tiled grid at real sizes

    # ---- layer-1 im2col in the wrapper (exact, tiny: 64 KB after padding) ----
    k, s, p = g0["k"], g0["s"], g0["p"]
    ho, wo = g0["ho"], g0["wo"]
    xp = jnp.pad(img_nchw, ((0, 0), (0, 0), (p, p), (p, p)))
    taps = []
    for di in range(k):
        for dj in range(k):
            taps.append(xp[:, :, di:di + s * (ho - 1) + 1:s,
                              dj:dj + s * (wo - 1) + 1:s])      # (n, c0, ho, wo)
    pat = jnp.stack(taps, axis=0)                               # (t, n, c0, ho, wo)
    pat = jnp.transpose(pat, (1, 3, 4, 0, 2))                   # (n, ho, wo, t, c0)
    pat = pat.reshape(n * ho * wo, k * k * c0)
    pat = jnp.pad(pat, ((0, g0["r_out"] - n * ho * wo),
                        (0, C_PAD - k * k * c0))).astype(jnp.float32)

    # ---- bf16 one-hot gather constants for layers 2..5 (trace-time numpy) ----
    g_all = jnp.asarray(np.concatenate([_build_gather(n, g) for g in geo[1:]],
                                       axis=0)).astype(jnp.bfloat16)

    out_rows = geo[-1]["r_out"]
    out = pl.pallas_call(
        _make_fused_kernel(geo),
        out_shape=jax.ShapeDtypeStruct((out_rows, C_PAD), jnp.float32),
        # No grid: single invocation; VMEM memory-space specs keep the ~2.3 MB
        # of constants resident once (no useless double buffering).
        in_specs=[pl.BlockSpec(memory_space=pltpu.MemorySpace.VMEM)] * 4,
        out_specs=pl.BlockSpec(memory_space=pltpu.MemorySpace.VMEM),
        scratch_shapes=[pltpu.VMEM((C_PAD, C_PAD), jnp.float32)],
    )(pat, g_all, w_all, pp)

    cout = LAYER_CFG[-1][1]
    last = geo[-1]
    y = out[:last["m_out"], :cout].reshape(n, last["ho"], last["wo"], cout)
    return jnp.transpose(y, (0, 3, 1, 2))      # back to NCHW


def init_params(key):
    params = []
    for i, (cin, cout, k, _, _) in enumerate(LAYER_CFG):
        kw, kb, kg, kbe = jax.random.split(jax.random.fold_in(key, i), 4)
        params.append(dict(
            w=0.1 * jax.random.normal(kw, (cout, cin, k, k), jnp.float32),
            b=0.1 * jax.random.normal(kb, (cout,), jnp.float32),
            gamma=1.0 + 0.1 * jax.random.normal(kg, (cout,), jnp.float32),
            beta=0.1 * jax.random.normal(kbe, (cout,), jnp.float32),
        ))
    return params


def cnn_reference(img, params):
    # pure-JAX reference (conv WITH bias + training-mode BN + ReLU); matching
    # the bias-free kernel also demonstrates that BN cancels the bias exactly.
    x = img
    for (cin, cout, k, s, p), layer in zip(LAYER_CFG, params):
        y = lax.conv_general_dilated(
            x, layer["w"], (s, s), ((p, p), (p, p)),
            dimension_numbers=("NCHW", "OIHW", "NCHW"),
        )
        y = y + layer["b"][None, :, None, None]
        mean = jnp.mean(y, axis=(0, 2, 3), keepdims=True)
        var = jnp.mean(jnp.square(y - mean), axis=(0, 2, 3), keepdims=True)
        y = (y - mean) * lax.rsqrt(var + EPS)
        y = y * layer["gamma"][None, :, None, None] + layer["beta"][None, :, None, None]
        x = jnp.maximum(y, 0.0)
    return x


if __name__ == "__main__":
    key = jax.random.PRNGKey(0)
    k_img, k_par = jax.random.split(key)
    img = jax.random.normal(k_img, (2, 3, 16, 16), jnp.float32)  # NCHW
    params = init_params(k_par)

    w_all, pp = pack_params(params)
    out = jax.block_until_ready(cnn_forward(img, w_all, pp))
    ref = jax.block_until_ready(cnn_reference(img, params))

    assert out.shape == (2, 24, 1, 1), out.shape
    err = float(jnp.max(jnp.abs(out - ref)))
    assert jnp.allclose(out, ref, atol=2e-4, rtol=2e-4), err
    # NOTE: training-mode BatchNorm's running-stat buffer updates are a side
    # effect that does not affect the forward output and is not replicated.
    print("KERNEL_OK")
</pallas_src>

<mosaic_0001>
module attributes {stable_mosaic.version = 11 : i64} {
  func.func @kernel(%arg0: memref<128x128xf32, #tpu.memory_space<vmem>>, %arg1: memref<480x128xbf16, #tpu.memory_space<vmem>>, %arg2: memref<4096x128xf32, #tpu.memory_space<vmem>>, %arg3: memref<10x1x128xf32, #tpu.memory_space<vmem>>, %arg4: memref<8x128xf32, #tpu.memory_space<vmem>>, %arg5: memref<128x128xf32, #tpu.memory_space<vmem>>) attributes {dimension_semantics = [], scalar_prefetch = 0 : i64, scratch_operands = 1 : i64, tpu.core_type = #tpu.core_type<tc>} {
    %c0 = arith.constant 0 : index
    %c0_0 = arith.constant 0 : index
    %0 = vector.load %arg0[%c0, %c0_0] : memref<128x128xf32, #tpu.memory_space<vmem>>, vector<128x128xf32>
    %c0_1 = arith.constant 0 : index
    %c0_2 = arith.constant 0 : index
    %1 = vector.load %arg2[%c0_1, %c0_2] : memref<4096x128xf32, #tpu.memory_space<vmem>>, vector<128x128xf32>
    %cst = arith.constant dense<0.000000e+00> : vector<128x128xf32>
    %2 = tpu.matmul %0, %1, %cst {dimension_numbers = #tpu.dot_dimension_numbers<[1], [0], [0], [1], [0, 0, 1, 1], [], []>} : vector<128x128xf32>, vector<128x128xf32>, vector<128x128xf32> -> vector<128x128xf32>
    %cst_3 = arith.constant dense<0.000000e+00> : vector<128xf32>
    %3 = vector.multi_reduction <add>, %2, %cst_3 [0] : vector<128x128xf32> to vector<128xf32>
    %4 = vector.shape_cast %3 : vector<128xf32> to vector<1x128xf32>
    %cst_4 = arith.constant 7.812500e-03 : f32
    %5 = vector.broadcast %cst_4 : f32 to vector<1x128xf32>
    %6 = arith.mulf %4, %5 : vector<1x128xf32>
    %7 = arith.mulf %2, %2 : vector<128x128xf32>
    %cst_5 = arith.constant dense<0.000000e+00> : vector<128xf32>
    %8 = vector.multi_reduction <add>, %7, %cst_5 [0] : vector<128x128xf32> to vector<128xf32>
    %9 = vector.shape_cast %8 : vector<128xf32> to vector<1x128xf32>
    %cst_6 = arith.constant 7.812500e-03 : f32
    %10 = vector.broadcast %cst_6 : f32 to vector<1x128xf32>
    %11 = arith.mulf %9, %10 : vector<1x128xf32>
    %12 = arith.mulf %6, %6 : vector<1x128xf32>
    %13 = arith.subf %11, %12 : vector<1x128xf32>
    %cst_7 = arith.constant 0.000000e+00 : f32
    %14 = vector.broadcast %cst_7 : f32 to vector<1x128xf32>
    %15 = arith.maximumf %13, %14 : vector<1x128xf32>
    %c0_8 = arith.constant 0 : index
    %c0_9 = arith.constant 0 : index
    %c0_10 = arith.constant 0 : index
    %16 = vector.load %arg3[%c0_8, %c0_9, %c0_10] : memref<10x1x128xf32, #tpu.memory_space<vmem>>, vector<1x1x128xf32>
    %17 = vector.shape_cast %16 : vector<1x1x128xf32> to vector<1x128xf32>
    %cst_11 = arith.constant 9.99999974E-6 : f32
    %18 = vector.broadcast %cst_11 : f32 to vector<1x128xf32>
    %19 = arith.addf %15, %18 : vector<1x128xf32>
    %20 = math.rsqrt %19 : vector<1x128xf32>
    %21 = arith.mulf %17, %20 : vector<1x128xf32>
    %c1 = arith.constant 1 : index
    %c0_12 = arith.constant 0 : index
    %c0_13 = arith.constant 0 : index
    %22 = vector.load %arg3[%c1, %c0_12, %c0_13] : memref<10x1x128xf32, #tpu.memory_space<vmem>>, vector<1x1x128xf32>
    %23 = vector.shape_cast %22 : vector<1x1x128xf32> to vector<1x128xf32>
    %24 = arith.mulf %6, %21 : vector<1x128xf32>
    %25 = arith.subf %23, %24 : vector<1x128xf32>
    %26 = vector.broadcast %21 : vector<1x128xf32> to vector<128x128xf32>
    %27 = arith.mulf %2, %26 : vector<128x128xf32>
    %28 = vector.broadcast %25 : vector<1x128xf32> to vector<128x128xf32>
    %29 = arith.addf %27, %28 : vector<128x128xf32>
    %cst_14 = arith.constant 0.000000e+00 : f32
    %30 = vector.broadcast %cst_14 : f32 to vector<128x128xf32>
    %31 = arith.maximumf %29, %30 : vector<128x128xf32>
    %c0_15 = arith.constant 0 : index
    %c0_16 = arith.constant 0 : index
    %32 = vector.load %arg5[%c0_15, %c0_16] : memref<128x128xf32, #tpu.memory_space<vmem>>, vector<128x128xf32>
    tpu.vector_store %arg5[%c0_15, %c0_16], %31 {strides = array<i32>} : memref<128x128xf32, #tpu.memory_space<vmem>>, vector<128x128xf32>,
    %c0_17 = arith.constant 0 : index
    %c0_18 = arith.constant 0 : index
    %33 = vector.load %arg1[%c0_17, %c0_18] : memref<480x128xbf16, #tpu.memory_space<vmem>>, vector<288x128xbf16>
    %34 = arith.extf %33 : vector<288x128xbf16> to vector<288x128xf32>
    %c0_19 = arith.constant 0 : index
    %c0_20 = arith.constant 0 : index
    %35 = vector.load %arg5[%c0_19, %c0_20] : memref<128x128xf32, #tpu.memory_space<vmem>>, vector<128x128xf32>
    %cst_21 = arith.constant dense<0.000000e+00> : vector<288x128xf32>
    %36 = tpu.matmul %34, %35, %cst_21 {dimension_numbers = #tpu.dot_dimension_numbers<[1], [0], [0], [1], [0, 0, 1, 1], [], []>} : vector<288x128xf32>, vector<128x128xf32>, vector<288x128xf32> -> vector<288x128xf32>
    %cst_22 = arith.constant 0.000000e+00 : f32
    %37 = vector.broadcast %cst_22 : f32 to vector<32x128xf32>
    %38 = vector.extract_strided_slice %36 {offsets = [0, 0], sizes = [32, 128], strides = [1, 1]} : vector<288x128xf32> to vector<32x128xf32>
    %c128 = arith.constant 128 : index
    %c0_23 = arith.constant 0 : index
    %39 = vector.load %arg2[%c128, %c0_23] : memref<4096x128xf32, #tpu.memory_space<vmem>>, vector<128x128xf32>
    %cst_24 = arith.constant dense<0.000000e+00> : vector<32x128xf32>
    %40 = tpu.matmul %38, %39, %cst_24 {dimension_numbers = #tpu.dot_dimension_numbers<[1], [0], [0], [1], [0, 0, 1, 1], [], []>} : vector<32x128xf32>, vector<128x128xf32>, vector<32x128xf32> -> vector<32x128xf32>
    %41 = arith.addf %37, %40 : vector<32x128xf32>
    %42 = vector.extract_strided_slice %36 {offsets = [32, 0], sizes = [32, 128], strides = [1, 1]} : vector<288x128xf32> to vector<32x128xf32>
    %c256 = arith.constant 256 : index
    %c0_25 = arith.constant 0 : index
    %43 = vector.load %arg2[%c256, %c0_25] : memref<4096x128xf32, #tpu.memory_space<vmem>>, vector<128x128xf32>
    %cst_26 = arith.constant dense<0.000000e+00> : vector<32x128xf32>
    %44 = tpu.matmul %42, %43, %cst_26 {dimension_numbers = #tpu.dot_dimension_numbers<[1], [0], [0], [1], [0, 0, 1, 1], [], []>} : vector<32x128xf32>, vector<128x128xf32>, vector<32x128xf32> -> vector<32x128xf32>
    %45 = arith.addf %41, %44 : vector<32x128xf32>
    %46 = vector.extract_strided_slice %36 {offsets = [64, 0], sizes = [32, 128], strides = [1, 1]} : vector<288x128xf32> to vector<32x128xf32>
    %c384 = arith.constant 384 : index
    %c0_27 = arith.constant 0 : index
    %47 = vector.load %arg2[%c384, %c0_27] : memref<4096x128xf32, #tpu.memory_space<vmem>>, vector<128x128xf32>
    %cst_28 = arith.constant dense<0.000000e+00> : vector<32x128xf32>
    %48 = tpu.matmul %46, %47, %cst_28 {dimension_numbers = #tpu.dot_dimension_numbers<[1], [0], [0], [1], [0, 0, 1, 1], [], []>} : vector<32x128xf32>, vector<128x128xf32>, vector<32x128xf32> -> vector<32x128xf32>
    %49 = arith.addf %45, %48 : vector<32x128xf32>
    %50 = vector.extract_strided_slice %36 {offsets = [96, 0], sizes = [32, 128], strides = [1, 1]} : vector<288x128xf32> to vector<32x128xf32>
    %c512 = arith.constant 512 : index
    %c0_29 = arith.constant 0 : index
    %51 = vector.load %arg2[%c512, %c0_29] : memref<4096x128xf32, #tpu.memory_space<vmem>>, vector<128x128xf32>
    %cst_30 = arith.constant dense<0.000000e+00> : vector<32x128xf32>
    %52 = tpu.matmul %50, %51, %cst_30 {dimension_numbers = #tpu.dot_dimension_numbers<[1], [0], [0], [1], [0, 0, 1, 1], [], []>} : vector<32x128xf32>, vector<128x128xf32>, vector<32x128xf32> -> vector<32x128xf32>
    %53 = arith.addf %49, %52 : vector<32x128xf32>
    %54 = vector.extract_strided_slice %36 {offsets = [128, 0], sizes = [32, 128], strides = [1, 1]} : vector<288x128xf32> to vector<32x128xf32>
    %c640 = arith.constant 640 : index
    %c0_31 = arith.constant 0 : index
    %55 = vector.load %arg2[%c640, %c0_31] : memref<4096x128xf32, #tpu.memory_space<vmem>>, vector<128x128xf32>
    %cst_32 = arith.constant dense<0.000000e+00> : vector<32x128xf32>
    %56 = tpu.matmul %54, %55, %cst_32 {dimension_numbers = #tpu.dot_dimension_numbers<[1], [0], [0], [1], [0, 0, 1, 1], [], []>} : vector<32x128xf32>, vector<128x128xf32>, vector<32x128xf32> -> vector<32x128xf32>
    %57 = arith.addf %53, %56 : vector<32x128xf32>
    %58 = vector.extract_strided_slice %36 {offsets = [160, 0], sizes = [32, 128], strides = [1, 1]} : vector<288x128xf32> to vector<32x128xf32>
    %c768 = arith.constant 768 : index
    %c0_33 = arith.constant 0 : index
    %59 = vector.load %arg2[%c768, %c0_33] : memref<4096x128xf32, #tpu.memory_space<vmem>>, vector<128x128xf32>
    %cst_34 = arith.constant dense<0.000000e+00> : vector<32x128xf32>
    %60 = tpu.matmul %58, %59, %cst_34 {dimension_numbers = #tpu.dot_dimension_numbers<[1], [0], [0], [1], [0, 0, 1, 1], [], []>} : vector<32x128xf32>, vector<128x128xf32>, vector<32x128xf32> -> vector<32x128xf32>
    %61 = arith.addf %57, %60 : vector<32x128xf32>
    %62 = vector.extract_strided_slice %36 {offsets = [192, 0], sizes = [32, 128], strides = [1, 1]} : vector<288x128xf32> to vector<32x128xf32>
    %c896 = arith.constant 896 : index
    %c0_35 = arith.constant 0 : index
    %63 = vector.load %arg2[%c896, %c0_35] : memref<4096x128xf32, #tpu.memory_space<vmem>>, vector<128x128xf32>
    %cst_36 = arith.constant dense<0.000000e+00> : vector<32x128xf32>
    %64 = tpu.matmul %62, %63, %cst_36 {dimension_numbers = #tpu.dot_dimension_numbers<[1], [0], [0], [1], [0, 0, 1, 1], [], []>} : vector<32x128xf32>, vector<128x128xf32>, vector<32x128xf32> -> vector<32x128xf32>
    %65 = arith.addf %61, %64 : vector<32x128xf32>
    %66 = vector.extract_strided_slice %36 {offsets = [224, 0], sizes = [32, 128], strides = [1, 1]} : vector<288x128xf32> to vector<32x128xf32>
    %c1024 = arith.constant 1024 : index
    %c0_37 = arith.constant 0 : index
    %67 = vector.load %arg2[%c1024, %c0_37] : memref<4096x128xf32, #tpu.memory_space<vmem>>, vector<128x128xf32>
    %cst_38 = arith.constant dense<0.000000e+00> : vector<32x128xf32>
    %68 = tpu.matmul %66, %67, %cst_38 {dimension_numbers = #tpu.dot_dimension_numbers<[1], [0], [0], [1], [0, 0, 1, 1], [], []>} : vector<32x128xf32>, vector<128x128xf32>, vector<32x128xf32> -> vector<32x128xf32>
    %69 = arith.addf %65, %68 : vector<32x128xf32>
    %70 = vector.extract_strided_slice %36 {offsets = [256, 0], sizes = [32, 128], strides = [1, 1]} : vector<288x128xf32> to vector<32x128xf32>
    %c1152 = arith.constant 1152 : index
    %c0_39 = arith.constant 0 : index
    %71 = vector.load %arg2[%c1152, %c0_39] : memref<4096x128xf32, #tpu.memory_space<vmem>>, vector<128x128xf32>
    %cst_40 = arith.constant dense<0.000000e+00> : vector<32x128xf32>
    %72 = tpu.matmul %70, %71, %cst_40 {dimension_numbers = #tpu.dot_dimension_numbers<[1], [0], [0], [1], [0, 0, 1, 1], [], []>} : vector<32x128xf32>, vector<128x128xf32>, vector<32x128xf32> -> vector<32x128xf32>
    %73 = arith.addf %69, %72 : vector<32x128xf32>
    %cst_41 = arith.constant dense<0.000000e+00> : vector<128xf32>
    %74 = vector.multi_reduction <add>, %73, %cst_41 [0] : vector<32x128xf32> to vector<128xf32>
    %75 = vector.shape_cast %74 : vector<128xf32> to vector<1x128xf32>
    %cst_42 = arith.constant 3.125000e-02 : f32
    %76 = vector.broadcast %cst_42 : f32 to vector<1x128xf32>
    %77 = arith.mulf %75, %76 : vector<1x128xf32>
    %78 = arith.mulf %73, %73 : vector<32x128xf32>
    %cst_43 = arith.constant dense<0.000000e+00> : vector<128xf32>
    %79 = vector.multi_reduction <add>, %78, %cst_43 [0] : vector<32x128xf32> to vector<128xf32>
    %80 = vector.shape_cast %79 : vector<128xf32> to vector<1x128xf32>
    %cst_44 = arith.constant 3.125000e-02 : f32
    %81 = vector.broadcast %cst_44 : f32 to vector<1x128xf32>
    %82 = arith.mulf %80, %81 : vector<1x128xf32>
    %83 = arith.mulf %77, %77 : vector<1x128xf32>
    %84 = arith.subf %82, %83 : vector<1x128xf32>
    %cst_45 = arith.constant 0.000000e+00 : f32
    %85 = vector.broadcast %cst_45 : f32 to vector<1x128xf32>
    %86 = arith.maximumf %84, %85 : vector<1x128xf32>
    %c2 = arith.constant 2 : index
    %c0_46 = arith.constant 0 : index
    %c0_47 = arith.constant 0 : index
    %87 = vector.load %arg3[%c2, %c0_46, %c0_47] : memref<10x1x128xf32, #tpu.memory_space<vmem>>, vector<1x1x128xf32>
    %88 = vector.shape_cast %87 : vector<1x1x128xf32> to vector<1x128xf32>
    %cst_48 = arith.constant 9.99999974E-6 : f32
    %89 = vector.broadcast %cst_48 : f32 to vector<1x128xf32>
    %90 = arith.addf %86, %89 : vector<1x128xf32>
    %91 = math.rsqrt %90 : vector<1x128xf32>
    %92 = arith.mulf %88, %91 : vector<1x128xf32>
    %c3 = arith.constant 3 : index
    %c0_49 = arith.constant 0 : index
    %c0_50 = arith.constant 0 : index
    %93 = vector.load %arg3[%c3, %c0_49, %c0_50] : memref<10x1x128xf32, #tpu.memory_space<vmem>>, vector<1x1x128xf32>
    %94 = vector.shape_cast %93 : vector<1x1x128xf32> to vector<1x128xf32>
    %95 = arith.mulf %77, %92 : vector<1x128xf32>
    %96 = arith.subf %94, %95 : vector<1x128xf32>
    %97 = vector.broadcast %92 : vector<1x128xf32> to vector<32x128xf32>
    %98 = arith.mulf %73, %97 : vector<32x128xf32>
    %99 = vector.broadcast %96 : vector<1x128xf32> to vector<32x128xf32>
    %100 = arith.addf %98, %99 : vector<32x128xf32>
    %cst_51 = arith.constant 0.000000e+00 : f32
    %101 = vector.broadcast %cst_51 : f32 to vector<32x128xf32>
    %102 = arith.maximumf %100, %101 : vector<32x128xf32>
    %c0_52 = arith.constant 0 : index
    %c0_53 = arith.constant 0 : index
    %103 = vector.load %arg5[%c0_52, %c0_53] : memref<128x128xf32, #tpu.memory_space<vmem>>, vector<32x128xf32>
    tpu.vector_store %arg5[%c0_52, %c0_53], %102 {strides = array<i32>} : memref<128x128xf32, #tpu.memory_space<vmem>>, vector<32x128xf32>,
    %c288 = arith.constant 288 : index
    %c0_54 = arith.constant 0 : index
    %104 = vector.load %arg1[%c288, %c0_54] : memref<480x128xbf16, #tpu.memory_space<vmem>>, vector<80x128xbf16>
    %105 = arith.extf %104 : vector<80x128xbf16> to vector<80x128xf32>
    %c0_55 = arith.constant 0 : index
    %c0_56 = arith.constant 0 : index
    %106 = vector.load %arg5[%c0_55, %c0_56] : memref<128x128xf32, #tpu.memory_space<vmem>>, vector<128x128xf32>
    %cst_57 = arith.constant dense<0.000000e+00> : vector<80x128xf32>
    %107 = tpu.matmul %105, %106, %cst_57 {dimension_numbers = #tpu.dot_dimension_numbers<[1], [0], [0], [1], [0, 0, 1, 1], [], []>} : vector<80x128xf32>, vector<128x128xf32>, vector<80x128xf32> -> vector<80x128xf32>
    %cst_58 = arith.constant 0.000000e+00 : f32
    %108 = vector.broadcast %cst_58 : f32 to vector<8x128xf32>
    %109 = vector.extract_strided_slice %107 {offsets = [0, 0], sizes = [8, 128], strides = [1, 1]} : vector<80x128xf32> to vector<8x128xf32>
    %c1280 = arith.constant 1280 : index
    %c0_59 = arith.constant 0 : index
    %110 = vector.load %arg2[%c1280, %c0_59] : memref<4096x128xf32, #tpu.memory_space<vmem>>, vector<128x128xf32>
    %cst_60 = arith.constant dense<0.000000e+00> : vector<8x128xf32>
    %111 = tpu.matmul %109, %110, %cst_60 {dimension_numbers = #tpu.dot_dimension_numbers<[1], [0], [0], [1], [0, 0, 1, 1], [], []>} : vector<8x128xf32>, vector<128x128xf32>, vector<8x128xf32> -> vector<8x128xf32>
    %112 = arith.addf %108, %111 : vector<8x128xf32>
    %113 = vector.extract_strided_slice %107 {offsets = [8, 0], sizes = [8, 128], strides = [1, 1]} : vector<80x128xf32> to vector<8x128xf32>
    %c1408 = arith.constant 1408 : index
    %c0_61 = arith.constant 0 : index
    %114 = vector.load %arg2[%c1408, %c0_61] : memref<4096x128xf32, #tpu.memory_space<vmem>>, vector<128x128xf32>
    %cst_62 = arith.constant dense<0.000000e+00> : vector<8x128xf32>
    %115 = tpu.matmul %113, %114, %cst_62 {dimension_numbers = #tpu.dot_dimension_numbers<[1], [0], [0], [1], [0, 0, 1, 1], [], []>} : vector<8x128xf32>, vector<128x128xf32>, vector<8x128xf32> -> vector<8x128xf32>
    %116 = arith.addf %112, %115 : vector<8x128xf32>
    %117 = vector.extract_strided_slice %107 {offsets = [16, 0], sizes = [8, 128], strides = [1, 1]} : vector<80x128xf32> to vector<8x128xf32>
    %c1536 = arith.constant 1536 : index
    %c0_63 = arith.constant 0 : index
    %118 = vector.load %arg2[%c1536, %c0_63] : memref<4096x128xf32, #tpu.memory_space<vmem>>, vector<128x128xf32>
    %cst_64 = arith.constant dense<0.000000e+00> : vector<8x128xf32>
    %119 = tpu.matmul %117, %118, %cst_64 {dimension_numbers = #tpu.dot_dimension_numbers<[1], [0], [0], [1], [0, 0, 1, 1], [], []>} : vector<8x128xf32>, vector<128x128xf32>, vector<8x128xf32> -> vector<8x128xf32>
    %120 = arith.addf %116, %119 : vector<8x128xf32>
    %121 = vector.extract_strided_slice %107 {offsets = [24, 0], sizes = [8, 128], strides = [1, 1]} : vector<80x128xf32> to vector<8x128xf32>
    %c1664 = arith.constant 1664 : index
    %c0_65 = arith.constant 0 : index
    %122 = vector.load %arg2[%c1664, %c0_65] : memref<4096x128xf32, #tpu.memory_space<vmem>>, vector<128x128xf32>
    %cst_66 = arith.constant dense<0.000000e+00> : vector<8x128xf32>
    %123 = tpu.matmul %121, %122, %cst_66 {dimension_numbers = #tpu.dot_dimension_numbers<[1], [0], [0], [1], [0, 0, 1, 1], [], []>} : vector<8x128xf32>, vector<128x128xf32>, vector<8x128xf32> -> vector<8x128xf32>
    %124 = arith.addf %120, %123 : vector<8x128xf32>
    %125 = vector.extract_strided_slice %107 {offsets = [32, 0], sizes = [8, 128], strides = [1, 1]} : vector<80x128xf32> to vector<8x128xf32>
    %c1792 = arith.constant 1792 : index
    %c0_67 = arith.constant 0 : index
    %126 = vector.load %arg2[%c1792, %c0_67] : memref<4096x128xf32, #tpu.memory_space<vmem>>, vector<128x128xf32>
    %cst_68 = arith.constant dense<0.000000e+00> : vector<8x128xf32>
    %127 = tpu.matmul %125, %126, %cst_68 {dimension_numbers = #tpu.dot_dimension_numbers<[1], [0], [0], [1], [0, 0, 1, 1], [], []>} : vector<8x128xf32>, vector<128x128xf32>, vector<8x128xf32> -> vector<8x128xf32>
    %128 = arith.addf %124, %127 : vector<8x128xf32>
    %129 = vector.extract_strided_slice %107 {offsets = [40, 0], sizes = [8, 128], strides = [1, 1]} : vector<80x128xf32> to vector<8x128xf32>
    %c1920 = arith.constant 1920 : index
    %c0_69 = arith.constant 0 : index
    %130 = vector.load %arg2[%c1920, %c0_69] : memref<4096x128xf32, #tpu.memory_space<vmem>>, vector<128x128xf32>
    %cst_70 = arith.constant dense<0.000000e+00> : vector<8x128xf32>
    %131 = tpu.matmul %129, %130, %cst_70 {dimension_numbers = #tpu.dot_dimension_numbers<[1], [0], [0], [1], [0, 0, 1, 1], [], []>} : vector<8x128xf32>, vector<128x128xf32>, vector<8x128xf32> -> vector<8x128xf32>
    %132 = arith.addf %128, %131 : vector<8x128xf32>
    %133 = vector.extract_strided_slice %107 {offsets = [48, 0], sizes = [8, 128], strides = [1, 1]} : vector<80x128xf32> to vector<8x128xf32>
    %c2048 = arith.constant 2048 : index
    %c0_71 = arith.constant 0 : index
    %134 = vector.load %arg2[%c2048, %c0_71] : memref<4096x128xf32, #tpu.memory_space<vmem>>, vector<128x128xf32>
    %cst_72 = arith.constant dense<0.000000e+00> : vector<8x128xf32>
    %135 = tpu.matmul %133, %134, %cst_72 {dimension_numbers = #tpu.dot_dimension_numbers<[1], [0], [0], [1], [0, 0, 1, 1], [], []>} : vector<8x128xf32>, vector<128x128xf32>, vector<8x128xf32> -> vector<8x128xf32>
    %136 = arith.addf %132, %135 : vector<8x128xf32>
    %137 = vector.extract_strided_slice %107 {offsets = [56, 0], sizes = [8, 128], strides = [1, 1]} : vector<80x128xf32> to vector<8x128xf32>
    %c2176 = arith.constant 2176 : index
    %c0_73 = arith.constant 0 : index
    %138 = vector.load %arg2[%c2176, %c0_73] : memref<4096x128xf32, #tpu.memory_space<vmem>>, vector<128x128xf32>
    %cst_74 = arith.constant dense<0.000000e+00> : vector<8x128xf32>
    %139 = tpu.matmul %137, %138, %cst_74 {dimension_numbers = #tpu.dot_dimension_numbers<[1], [0], [0], [1], [0, 0, 1, 1], [], []>} : vector<8x128xf32>, vector<128x128xf32>, vector<8x128xf32> -> vector<8x128xf32>
    %140 = arith.addf %136, %139 : vector<8x128xf32>
    %141 = vector.extract_strided_slice %107 {offsets = [64, 0], sizes = [8, 128], strides = [1, 1]} : vector<80x128xf32> to vector<8x128xf32>
    %c2304 = arith.constant 2304 : index
    %c0_75 = arith.constant 0 : index
    %142 = vector.load %arg2[%c2304, %c0_75] : memref<4096x128xf32, #tpu.memory_space<vmem>>, vector<128x128xf32>
    %cst_76 = arith.constant dense<0.000000e+00> : vector<8x128xf32>
    %143 = tpu.matmul %141, %142, %cst_76 {dimension_numbers = #tpu.dot_dimension_numbers<[1], [0], [0], [1], [0, 0, 1, 1], [], []>} : vector<8x128xf32>, vector<128x128xf32>, vector<8x128xf32> -> vector<8x128xf32>
    %144 = arith.addf %140, %143 : vector<8x128xf32>
    %cst_77 = arith.constant dense<0.000000e+00> : vector<128xf32>
    %145 = vector.multi_reduction <add>, %144, %cst_77 [0] : vector<8x128xf32> to vector<128xf32>
    %146 = vector.shape_cast %145 : vector<128xf32> to vector<1x128xf32>
    %cst_78 = arith.constant 1.250000e-01 : f32
    %147 = vector.broadcast %cst_78 : f32 to vector<1x128xf32>
    %148 = arith.mulf %146, %147 : vector<1x128xf32>
    %149 = arith.mulf %144, %144 : vector<8x128xf32>
    %cst_79 = arith.constant dense<0.000000e+00> : vector<128xf32>
    %150 = vector.multi_reduction <add>, %149, %cst_79 [0] : vector<8x128xf32> to vector<128xf32>
    %151 = vector.shape_cast %150 : vector<128xf32> to vector<1x128xf32>
    %cst_80 = arith.constant 1.250000e-01 : f32
    %152 = vector.broadcast %cst_80 : f32 to vector<1x128xf32>
    %153 = arith.mulf %151, %152 : vector<1x128xf32>
    %154 = arith.mulf %148, %148 : vector<1x128xf32>
    %155 = arith.subf %153, %154 : vector<1x128xf32>
    %cst_81 = arith.constant 0.000000e+00 : f32
    %156 = vector.broadcast %cst_81 : f32 to vector<1x128xf32>
    %157 = arith.maximumf %155, %156 : vector<1x128xf32>
    %c4 = arith.constant 4 : index
    %c0_82 = arith.constant 0 : index
    %c0_83 = arith.constant 0 : index
    %158 = vector.load %arg3[%c4, %c0_82, %c0_83] : memref<10x1x128xf32, #tpu.memory_space<vmem>>, vector<1x1x128xf32>
    %159 = vector.shape_cast %158 : vector<1x1x128xf32> to vector<1x128xf32>
    %cst_84 = arith.constant 9.99999974E-6 : f32
    %160 = vector.broadcast %cst_84 : f32 to vector<1x128xf32>
    %161 = arith.addf %157, %160 : vector<1x128xf32>
    %162 = math.rsqrt %161 : vector<1x128xf32>
    %163 = arith.mulf %159, %162 : vector<1x128xf32>
    %c5 = arith.constant 5 : index
    %c0_85 = arith.constant 0 : index
    %c0_86 = arith.constant 0 : index
    %164 = vector.load %arg3[%c5, %c0_85, %c0_86] : memref<10x1x128xf32, #tpu.memory_space<vmem>>, vector<1x1x128xf32>
    %165 = vector.shape_cast %164 : vector<1x1x128xf32> to vector<1x128xf32>
    %166 = arith.mulf %148, %163 : vector<1x128xf32>
    %167 = arith.subf %165, %166 : vector<1x128xf32>
    %168 = vector.broadcast %163 : vector<1x128xf32> to vector<8x128xf32>
    %169 = arith.mulf %144, %168 : vector<8x128xf32>
    %170 = vector.broadcast %167 : vector<1x128xf32> to vector<8x128xf32>
    %171 = arith.addf %169, %170 : vector<8x128xf32>
    %cst_87 = arith.constant 0.000000e+00 : f32
    %172 = vector.broadcast %cst_87 : f32 to vector<8x128xf32>
    %173 = arith.maximumf %171, %172 : vector<8x128xf32>
    %c0_88 = arith.constant 0 : index
    %c0_89 = arith.constant 0 : index
    %174 = vector.load %arg5[%c0_88, %c0_89] : memref<128x128xf32, #tpu.memory_space<vmem>>, vector<8x128xf32>
    tpu.vector_store %arg5[%c0_88, %c0_89], %173 {strides = array<i32>} : memref<128x128xf32, #tpu.memory_space<vmem>>, vector<8x128xf32>,
    %c368 = arith.constant 368 : index
    %c0_90 = arith.constant 0 : index
    %175 = vector.load %arg1[%c368, %c0_90] : memref<480x128xbf16, #tpu.memory_space<vmem>>, vector<80x128xbf16>
    %176 = arith.extf %175 : vector<80x128xbf16> to vector<80x128xf32>
    %c0_91 = arith.constant 0 : index
    %c0_92 = arith.constant 0 : index
    %177 = vector.load %arg5[%c0_91, %c0_92] : memref<128x128xf32, #tpu.memory_space<vmem>>, vector<128x128xf32>
    %cst_93 = arith.constant dense<0.000000e+00> : vector<80x128xf32>
    %178 = tpu.matmul %176, %177, %cst_93 {dimension_numbers = #tpu.dot_dimension_numbers<[1], [0], [0], [1], [0, 0, 1, 1], [], []>} : vector<80x128xf32>, vector<128x128xf32>, vector<80x128xf32> -> vector<80x128xf32>
    %cst_94 = arith.constant 0.000000e+00 : f32
    %179 = vector.broadcast %cst_94 : f32 to vector<8x128xf32>
    %180 = vector.extract_strided_slice %178 {offsets = [0, 0], sizes = [8, 128], strides = [1, 1]} : vector<80x128xf32> to vector<8x128xf32>
    %c2432 = arith.constant 2432 : index
    %c0_95 = arith.constant 0 : index
    %181 = vector.load %arg2[%c2432, %c0_95] : memref<4096x128xf32, #tpu.memory_space<vmem>>, vector<128x128xf32>
    %cst_96 = arith.constant dense<0.000000e+00> : vector<8x128xf32>
    %182 = tpu.matmul %180, %181, %cst_96 {dimension_numbers = #tpu.dot_dimension_numbers<[1], [0], [0], [1], [0, 0, 1, 1], [], []>} : vector<8x128xf32>, vector<128x128xf32>, vector<8x128xf32> -> vector<8x128xf32>
    %183 = arith.addf %179, %182 : vector<8x128xf32>
    %184 = vector.extract_strided_slice %178 {offsets = [8, 0], sizes = [8, 128], strides = [1, 1]} : vector<80x128xf32> to vector<8x128xf32>
    %c2560 = arith.constant 2560 : index
    %c0_97 = arith.constant 0 : index
    %185 = vector.load %arg2[%c2560, %c0_97] : memref<4096x128xf32, #tpu.memory_space<vmem>>, vector<128x128xf32>
    %cst_98 = arith.constant dense<0.000000e+00> : vector<8x128xf32>
    %186 = tpu.matmul %184, %185, %cst_98 {dimension_numbers = #tpu.dot_dimension_numbers<[1], [0], [0], [1], [0, 0, 1, 1], [], []>} : vector<8x128xf32>, vector<128x128xf32>, vector<8x128xf32> -> vector<8x128xf32>
    %187 = arith.addf %183, %186 : vector<8x128xf32>
    %188 = vector.extract_strided_slice %178 {offsets = [16, 0], sizes = [8, 128], strides = [1, 1]} : vector<80x128xf32> to vector<8x128xf32>
    %c2688 = arith.constant 2688 : index
    %c0_99 = arith.constant 0 : index
    %189 = vector.load %arg2[%c2688, %c0_99] : memref<4096x128xf32, #tpu.memory_space<vmem>>, vector<128x128xf32>
    %cst_100 = arith.constant dense<0.000000e+00> : vector<8x128xf32>
    %190 = tpu.matmul %188, %189, %cst_100 {dimension_numbers = #tpu.dot_dimension_numbers<[1], [0], [0], [1], [0, 0, 1, 1], [], []>} : vector<8x128xf32>, vector<128x128xf32>, vector<8x128xf32> -> vector<8x128xf32>
    %191 = arith.addf %187, %190 : vector<8x128xf32>
    %192 = vector.extract_strided_slice %178 {offsets = [24, 0], sizes = [8, 128], strides = [1, 1]} : vector<80x128xf32> to vector<8x128xf32>
    %c2816 = arith.constant 2816 : index
    %c0_101 = arith.constant 0 : index
    %193 = vector.load %arg2[%c2816, %c0_101] : memref<4096x128xf32, #tpu.memory_space<vmem>>, vector<128x128xf32>
    %cst_102 = arith.constant dense<0.000000e+00> : vector<8x128xf32>
    %194 = tpu.matmul %192, %193, %cst_102 {dimension_numbers = #tpu.dot_dimension_numbers<[1], [0], [0], [1], [0, 0, 1, 1], [], []>} : vector<8x128xf32>, vector<128x128xf32>, vector<8x128xf32> -> vector<8x128xf32>
    %195 = arith.addf %191, %194 : vector<8x128xf32>
    %196 = vector.extract_strided_slice %178 {offsets = [32, 0], sizes = [8, 128], strides = [1, 1]} : vector<80x128xf32> to vector<8x128xf32>
    %c2944 = arith.constant 2944 : index
    %c0_103 = arith.constant 0 : index
    %197 = vector.load %arg2[%c2944, %c0_103] : memref<4096x128xf32, #tpu.memory_space<vmem>>, vector<128x128xf32>
    %cst_104 = arith.constant dense<0.000000e+00> : vector<8x128xf32>
    %198 = tpu.matmul %196, %197, %cst_104 {dimension_numbers = #tpu.dot_dimension_numbers<[1], [0], [0], [1], [0, 0, 1, 1], [], []>} : vector<8x128xf32>, vector<128x128xf32>, vector<8x128xf32> -> vector<8x128xf32>
    %199 = arith.addf %195, %198 : vector<8x128xf32>
    %200 = vector.extract_strided_slice %178 {offsets = [40, 0], sizes = [8, 128], strides = [1, 1]} : vector<80x128xf32> to vector<8x128xf32>
    %c3072 = arith.constant 3072 : index
    %c0_105 = arith.constant 0 : index
    %201 = vector.load %arg2[%c3072, %c0_105] : memref<4096x128xf32, #tpu.memory_space<vmem>>, vector<128x128xf32>
    %cst_106 = arith.constant dense<0.000000e+00> : vector<8x128xf32>
    %202 = tpu.matmul %200, %201, %cst_106 {dimension_numbers = #tpu.dot_dimension_numbers<[1], [0], [0], [1], [0, 0, 1, 1], [], []>} : vector<8x128xf32>, vector<128x128xf32>, vector<8x128xf32> -> vector<8x128xf32>
    %203 = arith.addf %199, %202 : vector<8x128xf32>
    %204 = vector.extract_strided_slice %178 {offsets = [48, 0], sizes = [8, 128], strides = [1, 1]} : vector<80x128xf32> to vector<8x128xf32>
    %c3200 = arith.constant 3200 : index
    %c0_107 = arith.constant 0 : index
    %205 = vector.load %arg2[%c3200, %c0_107] : memref<4096x128xf32, #tpu.memory_space<vmem>>, vector<128x128xf32>
    %cst_108 = arith.constant dense<0.000000e+00> : vector<8x128xf32>
    %206 = tpu.matmul %204, %205, %cst_108 {dimension_numbers = #tpu.dot_dimension_numbers<[1], [0], [0], [1], [0, 0, 1, 1], [], []>} : vector<8x128xf32>, vector<128x128xf32>, vector<8x128xf32> -> vector<8x128xf32>
    %207 = arith.addf %203, %206 : vector<8x128xf32>
    %208 = vector.extract_strided_slice %178 {offsets = [56, 0], sizes = [8, 128], strides = [1, 1]} : vector<80x128xf32> to vector<8x128xf32>
    %c3328 = arith.constant 3328 : index
    %c0_109 = arith.constant 0 : index
    %209 = vector.load %arg2[%c3328, %c0_109] : memref<4096x128xf32, #tpu.memory_space<vmem>>, vector<128x128xf32>
    %cst_110 = arith.constant dense<0.000000e+00> : vector<8x128xf32>
    %210 = tpu.matmul %208, %209, %cst_110 {dimension_numbers = #tpu.dot_dimension_numbers<[1], [0], [0], [1], [0, 0, 1, 1], [], []>} : vector<8x128xf32>, vector<128x128xf32>, vector<8x128xf32> -> vector<8x128xf32>
    %211 = arith.addf %207, %210 : vector<8x128xf32>
    %212 = vector.extract_strided_slice %178 {offsets = [64, 0], sizes = [8, 128], strides = [1, 1]} : vector<80x128xf32> to vector<8x128xf32>
    %c3456 = arith.constant 3456 : index
    %c0_111 = arith.constant 0 : index
    %213 = vector.load %arg2[%c3456, %c0_111] : memref<4096x128xf32, #tpu.memory_space<vmem>>, vector<128x128xf32>
    %cst_112 = arith.constant dense<0.000000e+00> : vector<8x128xf32>
    %214 = tpu.matmul %212, %213, %cst_112 {dimension_numbers = #tpu.dot_dimension_numbers<[1], [0], [0], [1], [0, 0, 1, 1], [], []>} : vector<8x128xf32>, vector<128x128xf32>, vector<8x128xf32> -> vector<8x128xf32>
    %215 = arith.addf %211, %214 : vector<8x128xf32>
    %cst_113 = arith.constant dense<0.000000e+00> : vector<128xf32>
    %216 = vector.multi_reduction <add>, %215, %cst_113 [0] : vector<8x128xf32> to vector<128xf32>
    %217 = vector.shape_cast %216 : vector<128xf32> to vector<1x128xf32>
    %cst_114 = arith.constant 5.000000e-01 : f32
    %218 = vector.broadcast %cst_114 : f32 to vector<1x128xf32>
    %219 = arith.mulf %217, %218 : vector<1x128xf32>
    %220 = arith.mulf %215, %215 : vector<8x128xf32>
    %cst_115 = arith.constant dense<0.000000e+00> : vector<128xf32>
    %221 = vector.multi_reduction <add>, %220, %cst_115 [0] : vector<8x128xf32> to vector<128xf32>
    %222 = vector.shape_cast %221 : vector<128xf32> to vector<1x128xf32>
    %cst_116 = arith.constant 5.000000e-01 : f32
    %223 = vector.broadcast %cst_116 : f32 to vector<1x128xf32>
    %224 = arith.mulf %222, %223 : vector<1x128xf32>
    %225 = arith.mulf %219, %219 : vector<1x128xf32>
    %226 = arith.subf %224, %225 : vector<1x128xf32>
    %cst_117 = arith.constant 0.000000e+00 : f32
    %227 = vector.broadcast %cst_117 : f32 to vector<1x128xf32>
    %228 = arith.maximumf %226, %227 : vector<1x128xf32>
    %c6 = arith.constant 6 : index
    %c0_118 = arith.constant 0 : index
    %c0_119 = arith.constant 0 : index
    %229 = vector.load %arg3[%c6, %c0_118, %c0_119] : memref<10x1x128xf32, #tpu.memory_space<vmem>>, vector<1x1x128xf32>
    %230 = vector.shape_cast %229 : vector<1x1x128xf32> to vector<1x128xf32>
    %cst_120 = arith.constant 9.99999974E-6 : f32
    %231 = vector.broadcast %cst_120 : f32 to vector<1x128xf32>
    %232 = arith.addf %228, %231 : vector<1x128xf32>
    %233 = math.rsqrt %232 : vector<1x128xf32>
    %234 = arith.mulf %230, %233 : vector<1x128xf32>
    %c7 = arith.constant 7 : index
    %c0_121 = arith.constant 0 : index
    %c0_122 = arith.constant 0 : index
    %235 = vector.load %arg3[%c7, %c0_121, %c0_122] : memref<10x1x128xf32, #tpu.memory_space<vmem>>, vector<1x1x128xf32>
    %236 = vector.shape_cast %235 : vector<1x1x128xf32> to vector<1x128xf32>
    %237 = arith.mulf %219, %234 : vector<1x128xf32>
    %238 = arith.subf %236, %237 : vector<1x128xf32>
    %239 = vector.broadcast %234 : vector<1x128xf32> to vector<8x128xf32>
    %240 = arith.mulf %215, %239 : vector<8x128xf32>
    %241 = vector.broadcast %238 : vector<1x128xf32> to vector<8x128xf32>
    %242 = arith.addf %240, %241 : vector<8x128xf32>
    %cst_123 = arith.constant 0.000000e+00 : f32
    %243 = vector.broadcast %cst_123 : f32 to vector<8x128xf32>
    %244 = arith.maximumf %242, %243 : vector<8x128xf32>
    %c0_124 = arith.constant 0 : index
    %c0_125 = arith.constant 0 : index
    %245 = vector.load %arg5[%c0_124, %c0_125] : memref<128x128xf32, #tpu.memory_space<vmem>>, vector<8x128xf32>
    tpu.vector_store %arg5[%c0_124, %c0_125], %244 {strides = array<i32>} : memref<128x128xf32, #tpu.memory_space<vmem>>, vector<8x128xf32>,
    %c448 = arith.constant 448 : index
    %c0_126 = arith.constant 0 : index
    %246 = vector.load %arg1[%c448, %c0_126] : memref<480x128xbf16, #tpu.memory_space<vmem>>, vector<32x128xbf16>
    %247 = arith.extf %246 : vector<32x128xbf16> to vector<32x128xf32>
    %c0_127 = arith.constant 0 : index
    %c0_128 = arith.constant 0 : index
    %248 = vector.load %arg5[%c0_127, %c0_128] : memref<128x128xf32, #tpu.memory_space<vmem>>, vector<128x128xf32>
    %cst_129 = arith.constant dense<0.000000e+00> : vector<32x128xf32>
    %249 = tpu.matmul %247, %248, %cst_129 {dimension_numbers = #tpu.dot_dimension_numbers<[1], [0], [0], [1], [0, 0, 1, 1], [], []>} : vector<32x128xf32>, vector<128x128xf32>, vector<32x128xf32> -> vector<32x128xf32>
    %cst_130 = arith.constant 0.000000e+00 : f32
    %250 = vector.broadcast %cst_130 : f32 to vector<8x128xf32>
    %251 = vector.extract_strided_slice %249 {offsets = [0, 0], sizes = [8, 128], strides = [1, 1]} : vector<32x128xf32> to vector<8x128xf32>
    %c3584 = arith.constant 3584 : index
    %c0_131 = arith.constant 0 : index
    %252 = vector.load %arg2[%c3584, %c0_131] : memref<4096x128xf32, #tpu.memory_space<vmem>>, vector<128x128xf32>
    %cst_132 = arith.constant dense<0.000000e+00> : vector<8x128xf32>
    %253 = tpu.matmul %251, %252, %cst_132 {dimension_numbers = #tpu.dot_dimension_numbers<[1], [0], [0], [1], [0, 0, 1, 1], [], []>} : vector<8x128xf32>, vector<128x128xf32>, vector<8x128xf32> -> vector<8x128xf32>
    %254 = arith.addf %250, %253 : vector<8x128xf32>
    %255 = vector.extract_strided_slice %249 {offsets = [8, 0], sizes = [8, 128], strides = [1, 1]} : vector<32x128xf32> to vector<8x128xf32>
    %c3712 = arith.constant 3712 : index
    %c0_133 = arith.constant 0 : index
    %256 = vector.load %arg2[%c3712, %c0_133] : memref<4096x128xf32, #tpu.memory_space<vmem>>, vector<128x128xf32>
    %cst_134 = arith.constant dense<0.000000e+00> : vector<8x128xf32>
    %257 = tpu.matmul %255, %256, %cst_134 {dimension_numbers = #tpu.dot_dimension_numbers<[1], [0], [0], [1], [0, 0, 1, 1], [], []>} : vector<8x128xf32>, vector<128x128xf32>, vector<8x128xf32> -> vector<8x128xf32>
    %258 = arith.addf %254, %257 : vector<8x128xf32>
    %259 = vector.extract_strided_slice %249 {offsets = [16, 0], sizes = [8, 128], strides = [1, 1]} : vector<32x128xf32> to vector<8x128xf32>
    %c3840 = arith.constant 3840 : index
    %c0_135 = arith.constant 0 : index
    %260 = vector.load %arg2[%c3840, %c0_135] : memref<4096x128xf32, #tpu.memory_space<vmem>>, vector<128x128xf32>
    %cst_136 = arith.constant dense<0.000000e+00> : vector<8x128xf32>
    %261 = tpu.matmul %259, %260, %cst_136 {dimension_numbers = #tpu.dot_dimension_numbers<[1], [0], [0], [1], [0, 0, 1, 1], [], []>} : vector<8x128xf32>, vector<128x128xf32>, vector<8x128xf32> -> vector<8x128xf32>
    %262 = arith.addf %258, %261 : vector<8x128xf32>
    %263 = vector.extract_strided_slice %249 {offsets = [24, 0], sizes = [8, 128], strides = [1, 1]} : vector<32x128xf32> to vector<8x128xf32>
    %c3968 = arith.constant 3968 : index
    %c0_137 = arith.constant 0 : index
    %264 = vector.load %arg2[%c3968, %c0_137] : memref<4096x128xf32, #tpu.memory_space<vmem>>, vector<128x128xf32>
    %cst_138 = arith.constant dense<0.000000e+00> : vector<8x128xf32>
    %265 = tpu.matmul %263, %264, %cst_138 {dimension_numbers = #tpu.dot_dimension_numbers<[1], [0], [0], [1], [0, 0, 1, 1], [], []>} : vector<8x128xf32>, vector<128x128xf32>, vector<8x128xf32> -> vector<8x128xf32>
    %266 = arith.addf %262, %265 : vector<8x128xf32>
    %cst_139 = arith.constant dense<0.000000e+00> : vector<128xf32>
    %267 = vector.multi_reduction <add>, %266, %cst_139 [0] : vector<8x128xf32> to vector<128xf32>
    %268 = vector.shape_cast %267 : vector<128xf32> to vector<1x128xf32>
    %cst_140 = arith.constant 5.000000e-01 : f32
    %269 = vector.broadcast %cst_140 : f32 to vector<1x128xf32>
    %270 = arith.mulf %268, %269 : vector<1x128xf32>
    %271 = arith.mulf %266, %266 : vector<8x128xf32>
    %cst_141 = arith.constant dense<0.000000e+00> : vector<128xf32>
    %272 = vector.multi_reduction <add>, %271, %cst_141 [0] : vector<8x128xf32> to vector<128xf32>
    %273 = vector.shape_cast %272 : vector<128xf32> to vector<1x128xf32>
    %cst_142 = arith.constant 5.000000e-01 : f32
    %274 = vector.broadcast %cst_142 : f32 to vector<1x128xf32>
    %275 = arith.mulf %273, %274 : vector<1x128xf32>
    %276 = arith.mulf %270, %270 : vector<1x128xf32>
    %277 = arith.subf %275, %276 : vector<1x128xf32>
    %cst_143 = arith.constant 0.000000e+00 : f32
    %278 = vector.broadcast %cst_143 : f32 to vector<1x128xf32>
    %279 = arith.maximumf %277, %278 : vector<1x128xf32>
    %c8 = arith.constant 8 : index
    %c0_144 = arith.constant 0 : index
    %c0_145 = arith.constant 0 : index
    %280 = vector.load %arg3[%c8, %c0_144, %c0_145] : memref<10x1x128xf32, #tpu.memory_space<vmem>>, vector<1x1x128xf32>
    %281 = vector.shape_cast %280 : vector<1x1x128xf32> to vector<1x128xf32>
    %cst_146 = arith.constant 9.99999974E-6 : f32
    %282 = vector.broadcast %cst_146 : f32 to vector<1x128xf32>
    %283 = arith.addf %279, %282 : vector<1x128xf32>
    %284 = math.rsqrt %283 : vector<1x128xf32>
    %285 = arith.mulf %281, %284 : vector<1x128xf32>
    %c9 = arith.constant 9 : index
    %c0_147 = arith.constant 0 : index
    %c0_148 = arith.constant 0 : index
    %286 = vector.load %arg3[%c9, %c0_147, %c0_148] : memref<10x1x128xf32, #tpu.memory_space<vmem>>, vector<1x1x128xf32>
    %287 = vector.shape_cast %286 : vector<1x1x128xf32> to vector<1x128xf32>
    %288 = arith.mulf %270, %285 : vector<1x128xf32>
    %289 = arith.subf %287, %288 : vector<1x128xf32>
    %290 = vector.broadcast %285 : vector<1x128xf32> to vector<8x128xf32>
    %291 = arith.mulf %266, %290 : vector<8x128xf32>
    %292 = vector.broadcast %289 : vector<1x128xf32> to vector<8x128xf32>
    %293 = arith.addf %291, %292 : vector<8x128xf32>
    %cst_149 = arith.constant 0.000000e+00 : f32
    %294 = vector.broadcast %cst_149 : f32 to vector<8x128xf32>
    %295 = arith.maximumf %293, %294 : vector<8x128xf32>
    %c0_150 = arith.constant 0 : index
    %c0_151 = arith.constant 0 : index
    %296 = vector.load %arg4[%c0_150, %c0_151] : memref<8x128xf32, #tpu.memory_space<vmem>>, vector<8x128xf32>
    tpu.vector_store %arg4[%c0_150, %c0_151], %295 {strides = array<i32>} : memref<8x128xf32, #tpu.memory_space<vmem>>, vector<8x128xf32>,
    return
  }
}

</mosaic_0001>

<llo_original>
// kernel: cnn_forward.1
$region0: #{cnn_forward.1}
  #allocation0 [shape = 'u32[]', space=smem, size = 0x4, offset = 0x4, fixed_abs, tag = 'smem constant byte address 0x4 - core index']
  #allocation1 [shape = 'u32[144,128]{1,0:T(1,128)}', space=vmem, size = 0x12000, scoped, tag = 'internal scratch']
  #allocation2 [shape = 'f32[128,128]{1,0:T(8,128)}', space=vmem, size = 0x10000, scoped, tag = 'scratch operand']
  %s0 = inlined_call_operand.vmem [shape: f32[128,128], index: 0, kind: input, shape index: {}]
  %s1 = inlined_call_operand.hbm [shape: bf16[480,128], index: 1, kind: input, shape index: {}]
  %s2 = inlined_call_operand.hbm [shape: f32[4096,128], index: 2, kind: input, shape index: {}]
  %s3 = inlined_call_operand.hbm [shape: f32[10,1,128], index: 3, kind: input, shape index: {}]
  %s4 = inlined_call_operand.vmem [shape: f32[8,128], index: 4, kind: output, shape index: {}]
  %s5 = sld [smem:[#allocation0]]
  $region38: #{cnn_forward.1} parent=0
    _
  %s7 = ssub.s32 1, %s5
  %s8 = scalar_select 0, %s7, %s5
  $region1: #{cnn_forward.1} parent=0
    #allocation3 [shape = 'u8[122880]{0}', space=vmem, size = 0x1e000, scoped, tag = 'input window, operand 1, single buffered']
    #allocation4 [shape = 's32[1]{0}', space=sflag, size = 0x4, scoped, tag = 'scoped memory for cnn_forward.1']
    #allocation5 [shape = 'u8[2097152]{0}', space=vmem, size = 0x200000, scoped, tag = 'input window, operand 2, single buffered']
    #allocation6 [shape = 's32[1]{0}', space=sflag, size = 0x4, scoped, tag = 'scoped memory for cnn_forward.1']
    #allocation7 [shape = 'u8[5120]{0}', space=vmem, size = 0x1400, scoped, tag = 'input window, operand 3, single buffered']
    %9 = vsyncpa [#allocation4], 0
    %10 = vsyncpa [#allocation6], 0
    // Predicated region
    $region2: #{cnn_forward.1} parent=1 // pred_check
      _
    $region3: #{cnn_forward.1} parent=1 // pred_check_branch
      %12 = sbr.rel (0) target = $region5
    $region4: #{cnn_forward.1} parent=1 // pred_region
      _
    $region5: #{cnn_forward.1} parent=1 // pred_fallthru
      _
    // Predicated region
    $region6: #{cnn_forward.1} parent=1 // pred_check
      _
    $region7: #{cnn_forward.1} parent=1 // pred_check_branch
      %14 = sbr.rel (0) target = $region9
    $region8: #{cnn_forward.1} parent=1 // pred_region
      %s16 = ssub.s32 3840, 3840
      %17 = vsyncadd [#allocation4], %s16
      %s18 = sshll.u32 [#allocation3], 4
      %s19 = int_to_ptr.vmem [resolvable:$true] %s18
      %24 = dma.hbm_to_vmem [thread:$0]  %s1, 3840, %s19, [#allocation4], 64, 64, 4
    $region9: #{cnn_forward.1} parent=1 // pred_fallthru
      _
    // Predicated region
    $region10: #{cnn_forward.1} parent=1 // pred_check
      _
    $region11: #{cnn_forward.1} parent=1 // pred_check_branch
      %26 = sbr.rel (0) target = $region13
    $region12: #{cnn_forward.1} parent=1 // pred_region
      %s28 = ssub.s32 65536, 65536
      %29 = vsyncadd [#allocation6], %s28
      %s30 = sshll.u32 [#allocation5], 4
      %s31 = int_to_ptr.vmem [resolvable:$true] %s30
      %36 = dma.hbm_to_vmem [thread:$0]  %s2, 65536, %s31, [#allocation6], 128, 128, 8
    $region13: #{cnn_forward.1} parent=1 // pred_fallthru
      _
    // Predicated region
    $region14: #{cnn_forward.1} parent=1 // pred_check
      _
    $region15: #{cnn_forward.1} parent=1 // pred_check_branch
      %38 = sbr.rel (0) target = $region17
    $region16: #{cnn_forward.1} parent=1 // pred_region
      %s40 = ssub.s32 160, 160
      %41 = vsyncadd [#allocation6], %s40
      %s42 = sshll.u32 [#allocation7], 4
      %s43 = int_to_ptr.vmem [resolvable:$true] %s42
      %48 = dma.hbm_to_vmem [thread:$0]  %s3, 160, %s43, [#allocation6], 16, 16, 1
    $region17: #{cnn_forward.1} parent=1 // pred_fallthru
      _
    // Predicated region
    $region18: #{cnn_forward.1} parent=1 // pred_check
      _
    $region19: #{cnn_forward.1} parent=1 // pred_check_branch
      %50 = sbr.rel (0) target = $region21
    $region20: #{cnn_forward.1} parent=1 // pred_region
      %51 = dma.done [#allocation4], 3840
    $region21: #{cnn_forward.1} parent=1 // pred_fallthru
      _
    // Predicated region
    $region22: #{cnn_forward.1} parent=1 // pred_check
      _
    $region23: #{cnn_forward.1} parent=1 // pred_check_branch
      %53 = sbr.rel (0) target = $region25
    $region24: #{cnn_forward.1} parent=1 // pred_region
      %54 = dma.done [#allocation6], 65536
    $region25: #{cnn_forward.1} parent=1 // pred_fallthru
      _
    // Predicated region
    $region26: #{cnn_forward.1} parent=1 // pred_check
      _
    $region27: #{cnn_forward.1} parent=1 // pred_check_branch
      %56 = sbr.rel (0) target = $region29
    $region28: #{cnn_forward.1} parent=1 // pred_region
      %57 = dma.done [#allocation6], 160
    $region29: #{cnn_forward.1} parent=1 // pred_fallthru
      _
    %v58 = vld [vmem:[%s0] sm:$0xff]
    %v59 = vld [vmem:[%s0 + $0x8] sm:$0xff]
    %v60 = vld [vmem:[%s0 + $0x10] sm:$0xff]
    %v61 = vld [vmem:[%s0 + $0x18] sm:$0xff]
    %v62 = vld [vmem:[%s0 + $0x20] sm:$0xff]
    %v63 = vld [vmem:[%s0 + $0x28] sm:$0xff]
    %v64 = vld [vmem:[%s0 + $0x30] sm:$0xff]
    %v65 = vld [vmem:[%s0 + $0x38] sm:$0xff]
    %v66 = vld [vmem:[%s0 + $0x40] sm:$0xff]
    %v67 = vld [vmem:[%s0 + $0x48] sm:$0xff]
    %v68 = vld [vmem:[%s0 + $0x50] sm:$0xff]
    %v69 = vld [vmem:[%s0 + $0x58] sm:$0xff]
    %v70 = vld [vmem:[%s0 + $0x60] sm:$0xff]
    %v71 = vld [vmem:[%s0 + $0x68] sm:$0xff]
    %v72 = vld [vmem:[%s0 + $0x70] sm:$0xff]
    %v73 = vld [vmem:[%s0 + $0x78] sm:$0xff]
    %v74 = vld [vmem:[#allocation5] sm:$0xff]
    %v75 = vld [vmem:[#allocation5 + $0x8] sm:$0xff]
    %v76 = vld [vmem:[#allocation5 + $0x10] sm:$0xff]
    %v77 = vld [vmem:[#allocation5 + $0x18] sm:$0xff]
    %v78 = vld [vmem:[#allocation5 + $0x20] sm:$0xff]
    %v79 = vld [vmem:[#allocation5 + $0x28] sm:$0xff]
    %v80 = vld [vmem:[#allocation5 + $0x30] sm:$0xff]
    %v81 = vld [vmem:[#allocation5 + $0x38] sm:$0xff]
    %v82 = vld [vmem:[#allocation5 + $0x40] sm:$0xff]
    %v83 = vld [vmem:[#allocation5 + $0x48] sm:$0xff]
    %v84 = vld [vmem:[#allocation5 + $0x50] sm:$0xff]
    %v85 = vld [vmem:[#allocation5 + $0x58] sm:$0xff]
    %v86 = vld [vmem:[#allocation5 + $0x60] sm:$0xff]
    %v87 = vld [vmem:[#allocation5 + $0x68] sm:$0xff]
    %v88 = vld [vmem:[#allocation5 + $0x70] sm:$0xff]
    %v89 = vld [vmem:[#allocation5 + $0x78] sm:$0xff]
    %90 = vmatprep.subr.mxu0 0.0
    %91 = vmatpush1.msra.mxu0 %v74
    %92 = vmatprep.subr.mxu0 0.0
    %93 = vmatpush1.msra.mxu0 %v75
    %94 = vmatprep.subr.mxu0 0.0
    %95 = vmatpush1.msra.mxu0 %v76
    %96 = vmatprep.subr.mxu0 0.0
    %97 = vmatpush1.msra.mxu0 %v77
    %98 = vmatprep.subr.mxu0 0.0
    %99 = vmatpush1.msra.mxu0 %v78
    %100 = vmatprep.subr.mxu0 0.0
    %101 = vmatpush1.msra.mxu0 %v79
    %102 = vmatprep.subr.mxu0 0.0
    %103 = vmatpush1.msra.mxu0 %v80
    %104 = vmatprep.subr.mxu0 0.0
    %105 = vmatpush1.msra.mxu0 %v81
    %106 = vmatprep.subr.mxu0 0.0
    %107 = vmatpush1.msra.mxu0 %v82
    %108 = vmatprep.subr.mxu0 0.0
    %109 = vmatpush1.msra.mxu0 %v83
    %110 = vmatprep.subr.mxu0 0.0
    %111 = vmatpush1.msra.mxu0 %v84
    %112 = vmatprep.subr.mxu0 0.0
    %113 = vmatpush1.msra.mxu0 %v85
    %114 = vmatprep.subr.mxu0 0.0
    %115 = vmatpush1.msra.mxu0 %v86
    %116 = vmatprep.subr.mxu0 0.0
    %117 = vmatpush1.msra.mxu0 %v87
    %118 = vmatprep.subr.mxu0 0.0
    %119 = vmatpush1.msra.mxu0 %v88
    %120 = vmatprep.subr.mxu0 0.0
    %121 = vmatpush1.msra.mxu0 %v89
    %122 = vmatprep.subr.mxu0 0.0
    %123 = vmatpush1.msra.mxu0 0.0
    %124 = vmatprep.subr.mxu0 0.0
    %125 = vmatpush1.msra.mxu0 0.0
    %126 = vmatprep.subr.mxu0 0.0
    %127 = vmatpush1.msra.mxu0 0.0
    %128 = vmatprep.subr.mxu0 0.0
    %129 = vmatpush1.msra.mxu0 0.0
    %130 = vmatprep.subr.mxu0 0.0
    %131 = vmatpush1.msra.mxu0 0.0
    %132 = vmatprep.subr.mxu0 0.0
    %133 = vmatpush1.msra.mxu0 0.0
    %134 = vmatprep.subr.mxu0 0.0
    %135 = vmatpush1.msra.mxu0 0.0
    %136 = vmatprep.subr.mxu0 0.0
    %137 = vmatpush1.msra.mxu0 0.0
    %138 = vmatprep.subr.mxu0 0.0
    %139 = vmatpush1.msra.mxu0 0.0
    %140 = vmatprep.subr.mxu0 0.0
    %141 = vmatpush1.msra.mxu0 0.0
    %142 = vmatprep.subr.mxu0 0.0
    %143 = vmatpush1.msra.mxu0 0.0
    %144 = vmatprep.subr.mxu0 0.0
    %145 = vmatpush1.msra.mxu0 0.0
    %146 = vmatprep.subr.mxu0 0.0
    %147 = vmatpush1.msra.mxu0 0.0
    %148 = vmatprep.subr.mxu0 0.0
    %149 = vmatpush1.msra.mxu0 0.0
    %150 = vmatprep.subr.mxu0 0.0
    %151 = vmatpush1.msra.mxu0 0.0
    %152 = vmatprep.subr.mxu0 0.0
    %153 = vmatpush1.msra.mxu0 0.0
    %154 = vmatprep.mubr.f32.mxu0 0.0
    %155 = vmatmul.mubr.f32.gmra.mrb[0].mxu0 %v58
    %v156 = vpop.f32.mrb[0].mxu0
    %v157 = vadd.f32 0.0, %v156
    %v158 = vpop.f32.mrb[0].mxu0
    %159 = vmatprep.mubr.f32.mxu0 0.0
    %160 = vmatmul.mubr.f32.gmra.mrb[0].mxu0 %v59
    %v161 = vpop.f32.mrb[0].mxu0
    %v162 = vadd.f32 0.0, %v161
    %v163 = vpop.f32.mrb[0].mxu0
    %164 = vmatprep.mubr.f32.mxu0 0.0
    %165 = vmatmul.mubr.f32.gmra.mrb[0].mxu0 %v60
    %v166 = vpop.f32.mrb[0].mxu0
    %v167 = vadd.f32 0.0, %v166
    %v168 = vpop.f32.mrb[0].mxu0
    %169 = vmatprep.mubr.f32.mxu0 0.0
    %170 = vmatmul.mubr.f32.gmra.mrb[0].mxu0 %v61
    %v171 = vpop.f32.mrb[0].mxu0
    %v172 = vadd.f32 0.0, %v171
    %v173 = vpop.f32.mrb[0].mxu0
    %174 = vmatprep.mubr.f32.mxu0 0.0
    %175 = vmatmul.mubr.f32.gmra.mrb[0].mxu0 %v62
    %v176 = vpop.f32.mrb[0].mxu0
    %v177 = vadd.f32 0.0, %v176
    %v178 = vpop.f32.mrb[0].mxu0
    %179 = vmatprep.mubr.f32.mxu0 0.0
    %180 = vmatmul.mubr.f32.gmra.mrb[0].mxu0 %v63
    %v181 = vpop.f32.mrb[0].mxu0
    %v182 = vadd.f32 0.0, %v181
    %v183 = vpop.f32.mrb[0].mxu0
    %184 = vmatprep.mubr.f32.mxu0 0.0
    %185 = vmatmul.mubr.f32.gmra.mrb[0].mxu0 %v64
    %v186 = vpop.f32.mrb[0].mxu0
    %v187 = vadd.f32 0.0, %v186
    %v188 = vpop.f32.mrb[0].mxu0
    %189 = vmatprep.mubr.f32.mxu0 0.0
    %190 = vmatmul.mubr.f32.gmra.mrb[0].mxu0 %v65
    %v191 = vpop.f32.mrb[0].mxu0
    %v192 = vadd.f32 0.0, %v191
    %v193 = vpop.f32.mrb[0].mxu0
    %194 = vmatprep.mubr.f32.mxu0 0.0
    %195 = vmatmul.mubr.f32.gmra.mrb[0].mxu0 %v66
    %v196 = vpop.f32.mrb[0].mxu0
    %v197 = vadd.f32 0.0, %v196
    %v198 = vpop.f32.mrb[0].mxu0
    %199 = vmatprep.mubr.f32.mxu0 0.0
    %200 = vmatmul.mubr.f32.gmra.mrb[0].mxu0 %v67
    %v201 = vpop.f32.mrb[0].mxu0
    %v202 = vadd.f32 0.0, %v201
    %v203 = vpop.f32.mrb[0].mxu0
    %204 = vmatprep.mubr.f32.mxu0 0.0
    %205 = vmatmul.mubr.f32.gmra.mrb[0].mxu0 %v68
    %v206 = vpop.f32.mrb[0].mxu0
    %v207 = vadd.f32 0.0, %v206
    %v208 = vpop.f32.mrb[0].mxu0
    %209 = vmatprep.mubr.f32.mxu0 0.0
    %210 = vmatmul.mubr.f32.gmra.mrb[0].mxu0 %v69
    %v211 = vpop.f32.mrb[0].mxu0
    %v212 = vadd.f32 0.0, %v211
    %v213 = vpop.f32.mrb[0].mxu0
    %214 = vmatprep.mubr.f32.mxu0 0.0
    %215 = vmatmul.mubr.f32.gmra.mrb[0].mxu0 %v70
    %v216 = vpop.f32.mrb[0].mxu0
    %v217 = vadd.f32 0.0, %v216
    %v218 = vpop.f32.mrb[0].mxu0
    %219 = vmatprep.mubr.f32.mxu0 0.0
    %220 = vmatmul.mubr.f32.gmra.mrb[0].mxu0 %v71
    %v221 = vpop.f32.mrb[0].mxu0
    %v222 = vadd.f32 0.0, %v221
    %v223 = vpop.f32.mrb[0].mxu0
    %224 = vmatprep.mubr.f32.mxu0 0.0
    %225 = vmatmul.mubr.f32.gmra.mrb[0].mxu0 %v72
    %v226 = vpop.f32.mrb[0].mxu0
    %v227 = vadd.f32 0.0, %v226
    %v228 = vpop.f32.mrb[0].mxu0
    %229 = vmatprep.mubr.f32.mxu0 0.0
    %230 = vmatmul.mubr.f32.gmra.mrb[0].mxu0 %v73
    %v231 = vpop.f32.mrb[0].mxu0
    %v232 = vadd.f32 0.0, %v231
    %v233 = vpop.f32.mrb[0].mxu0
    %234 = vdwg.mxu0
    %v235 = vadd.f32 %v157, %v162
    %v236 = vadd.f32 %v235, %v167
    %v237 = vadd.f32 %v236, %v172
    %v238 = vadd.f32 %v237, %v177
    %v239 = vadd.f32 %v238, %v182
    %v240 = vadd.f32 %v239, %v187
    %v241 = vadd.f32 %v240, %v192
    %v242 = vadd.f32 %v241, %v197
    %v243 = vadd.f32 %v242, %v202
    %v244 = vadd.f32 %v243, %v207
    %v245 = vadd.f32 %v244, %v212
    %v246 = vadd.f32 %v245, %v217
    %v247 = vadd.f32 %v246, %v222
    %v248 = vadd.f32 %v247, %v227
    %v249 = vadd.f32 %v248, %v232
    %v250 = vrot.slane %v249, 4
    %v251 = vadd.f32 %v249, %v250
    %v252 = vrot.slane %v251, 2
    %v253 = vadd.f32 %v251, %v252
    %v254 = vrot.slane %v253, 1
    %v255 = vadd.f32 %v253, %v254
    %v256 = vmul.f32 %v255, 0.0078125
    %v257 = vmul.f32 %v157, %v157
    %v258 = vmul.f32 %v162, %v162
    %v259 = vmul.f32 %v167, %v167
    %v260 = vmul.f32 %v172, %v172
    %v261 = vmul.f32 %v177, %v177
    %v262 = vmul.f32 %v182, %v182
    %v263 = vmul.f32 %v187, %v187
    %v264 = vmul.f32 %v192, %v192
    %v265 = vmul.f32 %v197, %v197
    %v266 = vmul.f32 %v202, %v202
    %v267 = vmul.f32 %v207, %v207
    %v268 = vmul.f32 %v212, %v212
    %v269 = vmul.f32 %v217, %v217
    %v270 = vmul.f32 %v222, %v222
    %v271 = vmul.f32 %v227, %v227
    %v272 = vmul.f32 %v232, %v232
    %v273 = vadd.f32 %v257, %v258
    %v274 = vadd.f32 %v273, %v259
    %v275 = vadd.f32 %v274, %v260
    %v276 = vadd.f32 %v275, %v261
    %v277 = vadd.f32 %v276, %v262
    %v278 = vadd.f32 %v277, %v263
    %v279 = vadd.f32 %v278, %v264
    %v280 = vadd.f32 %v279, %v265
    %v281 = vadd.f32 %v280, %v266
    %v282 = vadd.f32 %v281, %v267
    %v283 = vadd.f32 %v282, %v268
    %v284 = vadd.f32 %v283, %v269
    %v285 = vadd.f32 %v284, %v270
    %v286 = vadd.f32 %v285, %v271
    %v287 = vadd.f32 %v286, %v272
    %v288 = vrot.slane %v287, 4
    %v289 = vadd.f32 %v287, %v288
    %v290 = vrot.slane %v289, 2
    %v291 = vadd.f32 %v289, %v290
    %v292 = vrot.slane %v291, 1
    %v293 = vadd.f32 %v291, %v292
    %v294 = vmul.f32 %v293, 0.0078125
    %v295 = vmul.f32 %v256, %v256
    %v296 = vsub.f32 %v294, %v295
    %v297 = vmax.f32 %v296, 0.0
    %v298 = vld [vmem:[#allocation7] sm:$0x1]
    %v299 = vadd.f32 %v297, 1e-05
    %v300 = vrsqrt.pop %v299
    %v301 = vmul.f32 %v298, %v300
    %s302 = scalar_lea.vmem [#allocation7], 1
    %v303 = vld [vmem:[%s302] sm:$0x1]
    %v304 = vmul.f32 %v256, %v301
    %v305 = vsub.f32 %v303, %v304
    %v307 = vlaneseq
    %v308 = vshrl.u32 %v307, 7
    %v309 = vsub.s32 0, %v308
    %v310 = vrot.slane %v301, %v309
    %v312 = vmul.f32 %v157, %v310
    %v313 = vmul.f32 %v162, %v310
    %v314 = vmul.f32 %v167, %v310
    %v315 = vmul.f32 %v172, %v310
    %v316 = vmul.f32 %v177, %v310
    %v317 = vmul.f32 %v182, %v310
    %v318 = vmul.f32 %v187, %v310
    %v319 = vmul.f32 %v192, %v310
    %v320 = vmul.f32 %v197, %v310
    %v321 = vmul.f32 %v202, %v310
    %v322 = vmul.f32 %v207, %v310
    %v323 = vmul.f32 %v212, %v310
    %v324 = vmul.f32 %v217, %v310
    %v325 = vmul.f32 %v222, %v310
    %v326 = vmul.f32 %v227, %v310
    %v327 = vmul.f32 %v232, %v310
    %v329 = vlaneseq
    %v330 = vshrl.u32 %v329, 7
    %v331 = vsub.s32 0, %v330
    %v332 = vrot.slane %v305, %v331
    %v334 = vadd.f32 %v312, %v332
    %v335 = vadd.f32 %v313, %v332
    %v336 = vadd.f32 %v314, %v332
    %v337 = vadd.f32 %v315, %v332
    %v338 = vadd.f32 %v316, %v332
    %v339 = vadd.f32 %v317, %v332
    %v340 = vadd.f32 %v318, %v332
    %v341 = vadd.f32 %v319, %v332
    %v342 = vadd.f32 %v320, %v332
    %v343 = vadd.f32 %v321, %v332
    %v344 = vadd.f32 %v322, %v332
    %v345 = vadd.f32 %v323, %v332
    %v346 = vadd.f32 %v324, %v332
    %v347 = vadd.f32 %v325, %v332
    %v348 = vadd.f32 %v326, %v332
    %v349 = vadd.f32 %v327, %v332
    %v350 = vmax.f32 %v334, 0.0
    %v351 = vmax.f32 %v335, 0.0
    %v352 = vmax.f32 %v336, 0.0
    %v353 = vmax.f32 %v337, 0.0
    %v354 = vmax.f32 %v338, 0.0
    %v355 = vmax.f32 %v339, 0.0
    %v356 = vmax.f32 %v340, 0.0
    %v357 = vmax.f32 %v341, 0.0
    %v358 = vmax.f32 %v342, 0.0
    %v359 = vmax.f32 %v343, 0.0
    %v360 = vmax.f32 %v344, 0.0
    %v361 = vmax.f32 %v345, 0.0
    %v362 = vmax.f32 %v346, 0.0
    %v363 = vmax.f32 %v347, 0.0
    %v364 = vmax.f32 %v348, 0.0
    %v365 = vmax.f32 %v349, 0.0
    %366 = vst [vmem:[#allocation2] sm:$0xff] %v350
    %367 = vst [vmem:[#allocation2 + $0x8] sm:$0xff] %v351
    %368 = vst [vmem:[#allocation2 + $0x10] sm:$0xff] %v352
    %369 = vst [vmem:[#allocation2 + $0x18] sm:$0xff] %v353
    %370 = vst [vmem:[#allocation2 + $0x20] sm:$0xff] %v354
    %371 = vst [vmem:[#allocation2 + $0x28] sm:$0xff] %v355
    %372 = vst [vmem:[#allocation2 + $0x30] sm:$0xff] %v356
    %373 = vst [vmem:[#allocation2 + $0x38] sm:$0xff] %v357
    %374 = vst [vmem:[#allocation2 + $0x40] sm:$0xff] %v358
    %375 = vst [vmem:[#allocation2 + $0x48] sm:$0xff] %v359
    %376 = vst [vmem:[#allocation2 + $0x50] sm:$0xff] %v360
    %377 = vst [vmem:[#allocation2 + $0x58] sm:$0xff] %v361
    %378 = vst [vmem:[#allocation2 + $0x60] sm:$0xff] %v362
    %379 = vst [vmem:[#allocation2 + $0x68] sm:$0xff] %v363
    %380 = vst [vmem:[#allocation2 + $0x70] sm:$0xff] %v364
    %381 = vst [vmem:[#allocation2 + $0x78] sm:$0xff] %v365
    %v382 = vld [vmem:[#allocation3] sm:$0xf]
    %v383 = vld [vmem:[#allocation3 + $0x4] sm:$0xf]
    %v384 = vld [vmem:[#allocation3 + $0x8] sm:$0xf]
    %v385 = vld [vmem:[#allocation3 + $0xc] sm:$0xf]
    %v386 = vld [vmem:[#allocation3 + $0x10] sm:$0xf]
    %v387 = vld [vmem:[#allocation3 + $0x14] sm:$0xf]
    %v388 = vld [vmem:[#allocation3 + $0x18] sm:$0xf]
    %v389 = vld [vmem:[#allocation3 + $0x1c] sm:$0xf]
    %v390 = vld [vmem:[#allocation3 + $0x20] sm:$0xf]
    %v391 = vld [vmem:[#allocation3 + $0x24] sm:$0xf]
    %v392 = vld [vmem:[#allocation3 + $0x28] sm:$0xf]
    %v393 = vld [vmem:[#allocation3 + $0x2c] sm:$0xf]
    %v394 = vld [vmem:[#allocation3 + $0x30] sm:$0xf]
    %v395 = vld [vmem:[#allocation3 + $0x34] sm:$0xf]
    %v396 = vld [vmem:[#allocation3 + $0x38] sm:$0xf]
    %v397 = vld [vmem:[#allocation3 + $0x3c] sm:$0xf]
    %v398 = vld [vmem:[#allocation3 + $0x40] sm:$0xf]
    %v399 = vld [vmem:[#allocation3 + $0x44] sm:$0xf]
    %v400 = vld [vmem:[#allocation3 + $0x48] sm:$0xf]
    %v401 = vld [vmem:[#allocation3 + $0x4c] sm:$0xf]
    %v402 = vld [vmem:[#allocation3 + $0x50] sm:$0xf]
    %v403 = vld [vmem:[#allocation3 + $0x54] sm:$0xf]
    %v404 = vld [vmem:[#allocation3 + $0x58] sm:$0xf]
    %v405 = vld [vmem:[#allocation3 + $0x5c] sm:$0xf]
    %v406 = vld [vmem:[#allocation3 + $0x60] sm:$0xf]
    %v407 = vld [vmem:[#allocation3 + $0x64] sm:$0xf]
    %v408 = vld [vmem:[#allocation3 + $0x68] sm:$0xf]
    %v409 = vld [vmem:[#allocation3 + $0x6c] sm:$0xf]
    %v410 = vld [vmem:[#allocation3 + $0x70] sm:$0xf]
    %v411 = vld [vmem:[#allocation3 + $0x74] sm:$0xf]
    %v412 = vld [vmem:[#allocation3 + $0x78] sm:$0xf]
    %v413 = vld [vmem:[#allocation3 + $0x7c] sm:$0xf]
    %v414 = vld [vmem:[#allocation3 + $0x80] sm:$0xf]
    %v415 = vld [vmem:[#allocation3 + $0x84] sm:$0xf]
    %v416 = vld [vmem:[#allocation3 + $0x88] sm:$0xf]
    %v417 = vld [vmem:[#allocation3 + $0x8c] sm:$0xf]
    %v418 = vunpack.c.l.bf16 %v382
    %v419 = vunpack.c.l.bf16 %v383
    %v420 = vunpack.c.l.bf16 %v384
    %v421 = vunpack.c.l.bf16 %v385
    %v422 = vunpack.c.l.bf16 %v386
    %v423 = vunpack.c.l.bf16 %v387
    %v424 = vunpack.c.l.bf16 %v388
    %v425 = vunpack.c.l.bf16 %v389
    %v426 = vunpack.c.l.bf16 %v390
    %v427 = vunpack.c.l.bf16 %v391
    %v428 = vunpack.c.l.bf16 %v392
    %v429 = vunpack.c.l.bf16 %v393
    %v430 = vunpack.c.l.bf16 %v394
    %v431 = vunpack.c.l.bf16 %v395
    %v432 = vunpack.c.l.bf16 %v396
    %v433 = vunpack.c.l.bf16 %v397
    %v434 = vunpack.c.l.bf16 %v398
    %v435 = vunpack.c.l.bf16 %v399
    %v436 = vunpack.c.l.bf16 %v400
    %v437 = vunpack.c.l.bf16 %v401
    %v438 = vunpack.c.l.bf16 %v402
    %v439 = vunpack.c.l.bf16 %v403
    %v440 = vunpack.c.l.bf16 %v404
    %v441 = vunpack.c.l.bf16 %v405
    %v442 = vunpack.c.l.bf16 %v406
    %v443 = vunpack.c.l.bf16 %v407
    %v444 = vunpack.c.l.bf16 %v408
    %v445 = vunpack.c.l.bf16 %v409
    %v446 = vunpack.c.l.bf16 %v410
    %v447 = vunpack.c.l.bf16 %v411
    %v448 = vunpack.c.l.bf16 %v412
    %v449 = vunpack.c.l.bf16 %v413
    %v450 = vunpack.c.l.bf16 %v414
    %v451 = vunpack.c.l.bf16 %v415
    %v452 = vunpack.c.l.bf16 %v416
    %v453 = vunpack.c.l.bf16 %v417
    %v454 = vld [vmem:[#allocation2] sm:$0xff]
    %v455 = vld [vmem:[#allocation2 + $0x8] sm:$0xff]
    %v456 = vld [vmem:[#allocation2 + $0x10] sm:$0xff]
    %v457 = vld [vmem:[#allocation2 + $0x18] sm:$0xff]
    %v458 = vld [vmem:[#allocation2 + $0x20] sm:$0xff]
    %v459 = vld [vmem:[#allocation2 + $0x28] sm:$0xff]
    %v460 = vld [vmem:[#allocation2 + $0x30] sm:$0xff]
    %v461 = vld [vmem:[#allocation2 + $0x38] sm:$0xff]
    %v462 = vld [vmem:[#allocation2 + $0x40] sm:$0xff]
    %v463 = vld [vmem:[#allocation2 + $0x48] sm:$0xff]
    %v464 = vld [vmem:[#allocation2 + $0x50] sm:$0xff]
    %v465 = vld [vmem:[#allocation2 + $0x58] sm:$0xff]
    %v466 = vld [vmem:[#allocation2 + $0x60] sm:$0xff]
    %v467 = vld [vmem:[#allocation2 + $0x68] sm:$0xff]
    %v468 = vld [vmem:[#allocation2 + $0x70] sm:$0xff]
    %v469 = vld [vmem:[#allocation2 + $0x78] sm:$0xff]
    %470 = vmatprep.subr.mxu0 0.0
    %471 = vmatpush1.msra.mxu0 %v454
    %472 = vmatprep.subr.mxu0 0.0
    %473 = vmatpush1.msra.mxu0 %v455
    %474 = vmatprep.subr.mxu0 0.0
    %475 = vmatpush1.msra.mxu0 %v456
    %476 = vmatprep.subr.mxu0 0.0
    %477 = vmatpush1.msra.mxu0 %v457
    %478 = vmatprep.subr.mxu0 0.0
    %479 = vmatpush1.msra.mxu0 %v458
    %480 = vmatprep.subr.mxu0 0.0
    %481 = vmatpush1.msra.mxu0 %v459
    %482 = vmatprep.subr.mxu0 0.0
    %483 = vmatpush1.msra.mxu0 %v460
    %484 = vmatprep.subr.mxu0 0.0
    %485 = vmatpush1.msra.mxu0 %v461
    %486 = vmatprep.subr.mxu0 0.0
    %487 = vmatpush1.msra.mxu0 %v462
    %488 = vmatprep.subr.mxu0 0.0
    %489 = vmatpush1.msra.mxu0 %v463
    %490 = vmatprep.subr.mxu0 0.0
    %491 = vmatpush1.msra.mxu0 %v464
    %492 = vmatprep.subr.mxu0 0.0
    %493 = vmatpush1.msra.mxu0 %v465
    %494 = vmatprep.subr.mxu0 0.0
    %495 = vmatpush1.msra.mxu0 %v466
    %496 = vmatprep.subr.mxu0 0.0
    %497 = vmatpush1.msra.mxu0 %v467
    %498 = vmatprep.subr.mxu0 0.0
    %499 = vmatpush1.msra.mxu0 %v468
    %500 = vmatprep.subr.mxu0 0.0
    %501 = vmatpush1.msra.mxu0 %v469
    %502 = vmatprep.subr.mxu0 0.0
    %503 = vmatpush1.msra.mxu0 0.0
    %504 = vmatprep.subr.mxu0 0.0
    %505 = vmatpush1.msra.mxu0 0.0
    %506 = vmatprep.subr.mxu0 0.0
    %507 = vmatpush1.msra.mxu0 0.0
    %508 = vmatprep.subr.mxu0 0.0
    %509 = vmatpush1.msra.mxu0 0.0
    %510 = vmatprep.subr.mxu0 0.0
    %511 = vmatpush1.msra.mxu0 0.0
    %512 = vmatprep.subr.mxu0 0.0
    %513 = vmatpush1.msra.mxu0 0.0
    %514 = vmatprep.subr.mxu0 0.0
    %515 = vmatpush1.msra.mxu0 0.0
    %516 = vmatprep.subr.mxu0 0.0
    %517 = vmatpush1.msra.mxu0 0.0
    %518 = vmatprep.subr.mxu0 0.0
    %519 = vmatpush1.msra.mxu0 0.0
    %520 = vmatprep.subr.mxu0 0.0
    %521 = vmatpush1.msra.mxu0 0.0
    %522 = vmatprep.subr.mxu0 0.0
    %523 = vmatpush1.msra.mxu0 0.0
    %524 = vmatprep.subr.mxu0 0.0
    %525 = vmatpush1.msra.mxu0 0.0
    %526 = vmatprep.subr.mxu0 0.0
    %527 = vmatpush1.msra.mxu0 0.0
    %528 = vmatprep.subr.mxu0 0.0
    %529 = vmatpush1.msra.mxu0 0.0
    %530 = vmatprep.subr.mxu0 0.0
    %531 = vmatpush1.msra.mxu0 0.0
    %532 = vmatprep.subr.mxu0 0.0
    %533 = vmatpush1.msra.mxu0 0.0
    %534 = vmatprep.mubr.f32.mxu0 0.0
    %535 = vmatmul.mubr.f32.gmra.mrb[0].mxu0 %v418
    %v536 = vpop.f32.mrb[0].mxu0
    %v537 = vadd.f32 0.0, %v536
    %v538 = vpop.f32.mrb[0].mxu0
    %539 = vmatprep.mubr.f32.mxu0 0.0
    %540 = vmatmul.mubr.f32.gmra.mrb[0].mxu0 %v419
    %v541 = vpop.f32.mrb[0].mxu0
    %v542 = vadd.f32 0.0, %v541
    %v543 = vpop.f32.mrb[0].mxu0
    %544 = vmatprep.mubr.f32.mxu0 0.0
    %545 = vmatmul.mubr.f32.gmra.mrb[0].mxu0 %v420
    %v546 = vpop.f32.mrb[0].mxu0
    %v547 = vadd.f32 0.0, %v546
    %v548 = vpop.f32.mrb[0].mxu0
    %549 = vmatprep.mubr.f32.mxu0 0.0
    %550 = vmatmul.mubr.f32.gmra.mrb[0].mxu0 %v421
    %v551 = vpop.f32.mrb[0].mxu0
    %v552 = vadd.f32 0.0, %v551
    %v553 = vpop.f32.mrb[0].mxu0
    %554 = vmatprep.mubr.f32.mxu0 0.0
    %555 = vmatmul.mubr.f32.gmra.mrb[0].mxu0 %v422
    %v556 = vpop.f32.mrb[0].mxu0
    %v557 = vadd.f32 0.0, %v556
    %v558 = vpop.f32.mrb[0].mxu0
    %559 = vmatprep.mubr.f32.mxu0 0.0
    %560 = vmatmul.mubr.f32.gmra.mrb[0].mxu0 %v423
    %v561 = vpop.f32.mrb[0].mxu0
    %v562 = vadd.f32 0.0, %v561
    %v563 = vpop.f32.mrb[0].mxu0
    %564 = vmatprep.mubr.f32.mxu0 0.0
    %565 = vmatmul.mubr.f32.gmra.mrb[0].mxu0 %v424
    %v566 = vpop.f32.mrb[0].mxu0
    %v567 = vadd.f32 0.0, %v566
    %v568 = vpop.f32.mrb[0].mxu0
    %569 = vmatprep.mubr.f32.mxu0 0.0
    %570 = vmatmul.mubr.f32.gmra.mrb[0].mxu0 %v425
    %v571 = vpop.f32.mrb[0].mxu0
    %v572 = vadd.f32 0.0, %v571
    %v573 = vpop.f32.mrb[0].mxu0
    %574 = vmatprep.mubr.f32.mxu0 0.0
    %575 = vmatmul.mubr.f32.gmra.mrb[0].mxu0 %v426
    %v576 = vpop.f32.mrb[0].mxu0
    %v577 = vadd.f32 0.0, %v576
    %v578 = vpop.f32.mrb[0].mxu0
    %579 = vmatprep.mubr.f32.mxu0 0.0
    %580 = vmatmul.mubr.f32.gmra.mrb[0].mxu0 %v427
    %v581 = vpop.f32.mrb[0].mxu0
    %v582 = vadd.f32 0.0, %v581
    %v583 = vpop.f32.mrb[0].mxu0
    %584 = vmatprep.mubr.f32.mxu0 0.0
    %585 = vmatmul.mubr.f32.gmra.mrb[0].mxu0 %v428
    %v586 = vpop.f32.mrb[0].mxu0
    %v587 = vadd.f32 0.0, %v586
    %v588 = vpop.f32.mrb[0].mxu0
    %589 = vmatprep.mubr.f32.mxu0 0.0
    %590 = vmatmul.mubr.f32.gmra.mrb[0].mxu0 %v429
    %v591 = vpop.f32.mrb[0].mxu0
    %v592 = vadd.f32 0.0, %v591
    %v593 = vpop.f32.mrb[0].mxu0
    %594 = vmatprep.mubr.f32.mxu0 0.0
    %595 = vmatmul.mubr.f32.gmra.mrb[0].mxu0 %v430
    %v596 = vpop.f32.mrb[0].mxu0
    %v597 = vadd.f32 0.0, %v596
    %v598 = vpop.f32.mrb[0].mxu0
    %599 = vmatprep.mubr.f32.mxu0 0.0
    %600 = vmatmul.mubr.f32.gmra.mrb[0].mxu0 %v431
    %v601 = vpop.f32.mrb[0].mxu0
    %v602 = vadd.f32 0.0, %v601
    %v603 = vpop.f32.mrb[0].mxu0
    %604 = vmatprep.mubr.f32.mxu0 0.0
    %605 = vmatmul.mubr.f32.gmra.mrb[0].mxu0 %v432
    %v606 = vpop.f32.mrb[0].mxu0
    %v607 = vadd.f32 0.0, %v606
    %v608 = vpop.f32.mrb[0].mxu0
    %609 = vmatprep.mubr.f32.mxu0 0.0
    %610 = vmatmul.mubr.f32.gmra.mrb[0].mxu0 %v433
    %v611 = vpop.f32.mrb[0].mxu0
    %v612 = vadd.f32 0.0, %v611
    %v613 = vpop.f32.mrb[0].mxu0
    %614 = vmatprep.mubr.f32.mxu0 0.0
    %615 = vmatmul.mubr.f32.gmra.mrb[0].mxu0 %v434
    %v616 = vpop.f32.mrb[0].mxu0
    %v617 = vadd.f32 0.0, %v616
    %v618 = vpop.f32.mrb[0].mxu0
    %619 = vmatprep.mubr.f32.mxu0 0.0
    %620 = vmatmul.mubr.f32.gmra.mrb[0].mxu0 %v435
    %v621 = vpop.f32.mrb[0].mxu0
    %v622 = vadd.f32 0.0, %v621
    %v623 = vpop.f32.mrb[0].mxu0
    %624 = vmatprep.mubr.f32.mxu0 0.0
    %625 = vmatmul.mubr.f32.gmra.mrb[0].mxu0 %v436
    %v626 = vpop.f32.mrb[0].mxu0
    %v627 = vadd.f32 0.0, %v626
    %v628 = vpop.f32.mrb[0].mxu0
    %629 = vmatprep.mubr.f32.mxu0 0.0
    %630 = vmatmul.mubr.f32.gmra.mrb[0].mxu0 %v437
    %v631 = vpop.f32.mrb[0].mxu0
    %v632 = vadd.f32 0.0, %v631
    %v633 = vpop.f32.mrb[0].mxu0
    %634 = vmatprep.mubr.f32.mxu0 0.0
    %635 = vmatmul.mubr.f32.gmra.mrb[0].mxu0 %v438
    %v636 = vpop.f32.mrb[0].mxu0
    %v637 = vadd.f32 0.0, %v636
    %v638 = vpop.f32.mrb[0].mxu0
    %639 = vmatprep.mubr.f32.mxu0 0.0
    %640 = vmatmul.mubr.f32.gmra.mrb[0].mxu0 %v439
    %v641 = vpop.f32.mrb[0].mxu0
    %v642 = vadd.f32 0.0, %v641
    %v643 = vpop.f32.mrb[0].mxu0
    %644 = vmatprep.mubr.f32.mxu0 0.0
    %645 = vmatmul.mubr.f32.gmra.mrb[0].mxu0 %v440
    %v646 = vpop.f32.mrb[0].mxu0
    %v647 = vadd.f32 0.0, %v646
    %v648 = vpop.f32.mrb[0].mxu0
    %649 = vmatprep.mubr.f32.mxu0 0.0
    %650 = vmatmul.mubr.f32.gmra.mrb[0].mxu0 %v441
    %v651 = vpop.f32.mrb[0].mxu0
    %v652 = vadd.f32 0.0, %v651
    %v653 = vpop.f32.mrb[0].mxu0
    %654 = vmatprep.mubr.f32.mxu0 0.0
    %655 = vmatmul.mubr.f32.gmra.mrb[0].mxu0 %v442
    %v656 = vpop.f32.mrb[0].mxu0
    %v657 = vadd.f32 0.0, %v656
    %v658 = vpop.f32.mrb[0].mxu0
    %659 = vmatprep.mubr.f32.mxu0 0.0
    %660 = vmatmul.mubr.f32.gmra.mrb[0].mxu0 %v443
    %v661 = vpop.f32.mrb[0].mxu0
    %v662 = vadd.f32 0.0, %v661
    %v663 = vpop.f32.mrb[0].mxu0
    %664 = vmatprep.mubr.f32.mxu0 0.0
    %665 = vmatmul.mubr.f32.gmra.mrb[0].mxu0 %v444
    %v666 = vpop.f32.mrb[0].mxu0
    %v667 = vadd.f32 0.0, %v666
    %v668 = vpop.f32.mrb[0].mxu0
    %669 = vmatprep.mubr.f32.mxu0 0.0
    %670 = vmatmul.mubr.f32.gmra.mrb[0].mxu0 %v445
    %v671 = vpop.f32.mrb[0].mxu0
    %v672 = vadd.f32 0.0, %v671
    %v673 = vpop.f32.mrb[0].mxu0
    %674 = vmatprep.mubr.f32.mxu0 0.0
    %675 = vmatmul.mubr.f32.gmra.mrb[0].mxu0 %v446
    %v676 = vpop.f32.mrb[0].mxu0
    %v677 = vadd.f32 0.0, %v676
    %v678 = vpop.f32.mrb[0].mxu0
    %679 = vmatprep.mubr.f32.mxu0 0.0
    %680 = vmatmul.mubr.f32.gmra.mrb[0].mxu0 %v447
    %v681 = vpop.f32.mrb[0].mxu0
    %v682 = vadd.f32 0.0, %v681
    %v683 = vpop.f32.mrb[0].mxu0
    %684 = vmatprep.mubr.f32.mxu0 0.0
    %685 = vmatmul.mubr.f32.gmra.mrb[0].mxu0 %v448
    %v686 = vpop.f32.mrb[0].mxu0
    %v687 = vadd.f32 0.0, %v686
    %v688 = vpop.f32.mrb[0].mxu0
    %689 = vmatprep.mubr.f32.mxu0 0.0
    %690 = vmatmul.mubr.f32.gmra.mrb[0].mxu0 %v449
    %v691 = vpop.f32.mrb[0].mxu0
    %v692 = vadd.f32 0.0, %v691
    %v693 = vpop.f32.mrb[0].mxu0
    %694 = vmatprep.mubr.f32.mxu0 0.0
    %695 = vmatmul.mubr.f32.gmra.mrb[0].mxu0 %v450
    %v696 = vpop.f32.mrb[0].mxu0
    %v697 = vadd.f32 0.0, %v696
    %v698 = vpop.f32.mrb[0].mxu0
    %699 = vmatprep.mubr.f32.mxu0 0.0
    %700 = vmatmul.mubr.f32.gmra.mrb[0].mxu0 %v451
    %v701 = vpop.f32.mrb[0].mxu0
    %v702 = vadd.f32 0.0, %v701
    %v703 = vpop.f32.mrb[0].mxu0
    %704 = vmatprep.mubr.f32.mxu0 0.0
    %705 = vmatmul.mubr.f32.gmra.mrb[0].mxu0 %v452
    %v706 = vpop.f32.mrb[0].mxu0
    %v707 = vadd.f32 0.0, %v706
    %v708 = vpop.f32.mrb[0].mxu0
    %709 = vmatprep.mubr.f32.mxu0 0.0
    %710 = vmatmul.mubr.f32.gmra.mrb[0].mxu0 %v453
    %v711 = vpop.f32.mrb[0].mxu0
    %v712 = vadd.f32 0.0, %v711
    %v713 = vpop.f32.mrb[0].mxu0
    %714 = vdwg.mxu0
    %v715 = vld [vmem:[#allocation5 + $0x80] sm:$0xff]
    %v716 = vld [vmem:[#allocation5 + $0x88] sm:$0xff]
    %v717 = vld [vmem:[#allocation5 + $0x90] sm:$0xff]
    %v718 = vld [vmem:[#allocation5 + $0x98] sm:$0xff]
    %v719 = vld [vmem:[#allocation5 + $0xa0] sm:$0xff]
    %v720 = vld [vmem:[#allocation5 + $0xa8] sm:$0xff]
    %v721 = vld [vmem:[#allocation5 + $0xb0] sm:$0xff]
    %v722 = vld [vmem:[#allocation5 + $0xb8] sm:$0xff]
    %v723 = vld [vmem:[#allocation5 + $0xc0] sm:$0xff]
    %v724 = vld [vmem:[#allocation5 + $0xc8] sm:$0xff]
    %v725 = vld [vmem:[#allocation5 + $0xd0] sm:$0xff]
    %v726 = vld [vmem:[#allocation5 + $0xd8] sm:$0xff]
    %v727 = vld [vmem:[#allocation5 + $0xe0] sm:$0xff]
    %v728 = vld [vmem:[#allocation5 + $0xe8] sm:$0xff]
    %v729 = vld [vmem:[#allocation5 + $0xf0] sm:$0xff]
    %v730 = vld [vmem:[#allocation5 + $0xf8] sm:$0xff]
    %v731 = vld [vmem:[#allocation5 + $0x100] sm:$0xff]
    %v732 = vld [vmem:[#allocation5 + $0x108] sm:$0xff]
    %v733 = vld [vmem:[#allocation5 + $0x110] sm:$0xff]
    %v734 = vld [vmem:[#allocation5 + $0x118] sm:$0xff]
    %v735 = vld [vmem:[#allocation5 + $0x120] sm:$0xff]
    %v736 = vld [vmem:[#allocation5 + $0x128] sm:$0xff]
    %v737 = vld [vmem:[#allocation5 + $0x130] sm:$0xff]
    %v738 = vld [vmem:[#allocation5 + $0x138] sm:$0xff]
    %v739 = vld [vmem:[#allocation5 + $0x140] sm:$0xff]
    %v740 = vld [vmem:[#allocation5 + $0x148] sm:$0xff]
    %v741 = vld [vmem:[#allocation5 + $0x150] sm:$0xff]
    %v742 = vld [vmem:[#allocation5 + $0x158] sm:$0xff]
    %v743 = vld [vmem:[#allocation5 + $0x160] sm:$0xff]
    %v744 = vld [vmem:[#allocation5 + $0x168] sm:$0xff]
    %v745 = vld [vmem:[#allocation5 + $0x170] sm:$0xff]
    %v746 = vld [vmem:[#allocation5 + $0x178] sm:$0xff]
    %747 = vmatprep.subr.mxu0 0.0
    %748 = vmatpush1.msra.mxu0 %v731
    %749 = vmatprep.subr.mxu0 0.0
    %750 = vmatpush1.msra.mxu0 %v732
    %751 = vmatprep.subr.mxu0 0.0
    %752 = vmatpush1.msra.mxu0 %v733
    %753 = vmatprep.subr.mxu0 0.0
    %754 = vmatpush1.msra.mxu0 %v734
    %755 = vmatprep.subr.mxu0 0.0
    %756 = vmatpush1.msra.mxu0 %v735
    %757 = vmatprep.subr.mxu0 0.0
    %758 = vmatpush1.msra.mxu0 %v736
    %759 = vmatprep.subr.mxu0 0.0
    %760 = vmatpush1.msra.mxu0 %v737
    %761 = vmatprep.subr.mxu0 0.0
    %762 = vmatpush1.msra.mxu0 %v738
    %763 = vmatprep.subr.mxu0 0.0
    %764 = vmatpush1.msra.mxu0 %v739
    %765 = vmatprep.subr.mxu0 0.0
    %766 = vmatpush1.msra.mxu0 %v740
    %767 = vmatprep.subr.mxu0 0.0
    %768 = vmatpush1.msra.mxu0 %v741
    %769 = vmatprep.subr.mxu0 0.0
    %770 = vmatpush1.msra.mxu0 %v742
    %771 = vmatprep.subr.mxu0 0.0
    %772 = vmatpush1.msra.mxu0 %v743
    %773 = vmatprep.subr.mxu0 0.0
    %774 = vmatpush1.msra.mxu0 %v744
    %775 = vmatprep.subr.mxu0 0.0
    %776 = vmatpush1.msra.mxu0 %v745
    %777 = vmatprep.subr.mxu0 0.0
    %778 = vmatpush1.msra.mxu0 %v746
    %779 = vmatprep.subr.mxu0 0.0
    %780 = vmatpush1.msra.mxu0 0.0
    %781 = vmatprep.subr.mxu0 0.0
    %782 = vmatpush1.msra.mxu0 0.0
    %783 = vmatprep.subr.mxu0 0.0
    %784 = vmatpush1.msra.mxu0 0.0
    %785 = vmatprep.subr.mxu0 0.0
    %786 = vmatpush1.msra.mxu0 0.0
    %787 = vmatprep.subr.mxu0 0.0
    %788 = vmatpush1.msra.mxu0 0.0
    %789 = vmatprep.subr.mxu0 0.0
    %790 = vmatpush1.msra.mxu0 0.0
    %791 = vmatprep.subr.mxu0 0.0
    %792 = vmatpush1.msra.mxu0 0.0
    %793 = vmatprep.subr.mxu0 0.0
    %794 = vmatpush1.msra.mxu0 0.0
    %795 = vmatprep.subr.mxu0 0.0
    %796 = vmatpush1.msra.mxu0 0.0
    %797 = vmatprep.subr.mxu0 0.0
    %798 = vmatpush1.msra.mxu0 0.0
    %799 = vmatprep.subr.mxu0 0.0
    %800 = vmatpush1.msra.mxu0 0.0
    %801 = vmatprep.subr.mxu0 0.0
    %802 = vmatpush1.msra.mxu0 0.0
    %803 = vmatprep.subr.mxu0 0.0
    %804 = vmatpush1.msra.mxu0 0.0
    %805 = vmatprep.subr.mxu0 0.0
    %806 = vmatpush1.msra.mxu0 0.0
    %807 = vmatprep.subr.mxu0 0.0
    %808 = vmatpush1.msra.mxu0 0.0
    %809 = vmatprep.subr.mxu0 0.0
    %810 = vmatpush1.msra.mxu0 0.0
    %811 = vmatprep.mubr.f32.mxu0 0.0
    %812 = vmatmul.mubr.f32.gmra.mrb[0].mxu0 %v557
    %v813 = vpop.f32.mrb[0].mxu0
    %v814 = vadd.f32 0.0, %v813
    %v815 = vpop.f32.mrb[0].mxu0
    %816 = vmatprep.mubr.f32.mxu0 0.0
    %817 = vmatmul.mubr.f32.gmra.mrb[0].mxu0 %v562
    %v818 = vpop.f32.mrb[0].mxu0
    %v819 = vadd.f32 0.0, %v818
    %v820 = vpop.f32.mrb[0].mxu0
    %821 = vmatprep.mubr.f32.mxu0 0.0
    %822 = vmatmul.mubr.f32.gmra.mrb[0].mxu0 %v567
    %v823 = vpop.f32.mrb[0].mxu0
    %v824 = vadd.f32 0.0, %v823
    %v825 = vpop.f32.mrb[0].mxu0
    %826 = vmatprep.mubr.f32.mxu0 0.0
    %827 = vmatmul.mubr.f32.gmra.mrb[0].mxu0 %v572
    %v828 = vpop.f32.mrb[0].mxu0
    %v829 = vadd.f32 0.0, %v828
    %v830 = vpop.f32.mrb[0].mxu0
    %831 = vdwg.mxu0
    %832 = vmatprep.subr.mxu0 0.0
    %833 = vmatpush1.msra.mxu0 %v715
    %834 = vmatprep.subr.mxu0 0.0
    %835 = vmatpush1.msra.mxu0 %v716
    %836 = vmatprep.subr.mxu0 0.0
    %837 = vmatpush1.msra.mxu0 %v717
    %838 = vmatprep.subr.mxu0 0.0
    %839 = vmatpush1.msra.mxu0 %v718
    %840 = vmatprep.subr.mxu0 0.0
    %841 = vmatpush1.msra.mxu0 %v719
    %842 = vmatprep.subr.mxu0 0.0
    %843 = vmatpush1.msra.mxu0 %v720
    %844 = vmatprep.subr.mxu0 0.0
    %845 = vmatpush1.msra.mxu0 %v721
    %846 = vmatprep.subr.mxu0 0.0
    %847 = vmatpush1.msra.mxu0 %v722
    %848 = vmatprep.subr.mxu0 0.0
    %849 = vmatpush1.msra.mxu0 %v723
    %850 = vmatprep.subr.mxu0 0.0
    %851 = vmatpush1.msra.mxu0 %v724
    %852 = vmatprep.subr.mxu0 0.0
    %853 = vmatpush1.msra.mxu0 %v725
    %854 = vmatprep.subr.mxu0 0.0
    %855 = vmatpush1.msra.mxu0 %v726
    %856 = vmatprep.subr.mxu0 0.0
    %857 = vmatpush1.msra.mxu0 %v727
    %858 = vmatprep.subr.mxu0 0.0
    %859 = vmatpush1.msra.mxu0 %v728
    %860 = vmatprep.subr.mxu0 0.0
    %861 = vmatpush1.msra.mxu0 %v729
    %862 = vmatprep.subr.mxu0 0.0
    %863 = vmatpush1.msra.mxu0 %v730
    %864 = vmatprep.subr.mxu0 0.0
    %865 = vmatpush1.msra.mxu0 0.0
    %866 = vmatprep.subr.mxu0 0.0
    %867 = vmatpush1.msra.mxu0 0.0
    %868 = vmatprep.subr.mxu0 0.0
    %869 = vmatpush1.msra.mxu0 0.0
    %870 = vmatprep.subr.mxu0 0.0
    %871 = vmatpush1.msra.mxu0 0.0
    %872 = vmatprep.subr.mxu0 0.0
    %873 = vmatpush1.msra.mxu0 0.0
    %874 = vmatprep.subr.mxu0 0.0
    %875 = vmatpush1.msra.mxu0 0.0
    %876 = vmatprep.subr.mxu0 0.0
    %877 = vmatpush1.msra.mxu0 0.0
    %878 = vmatprep.subr.mxu0 0.0
    %879 = vmatpush1.msra.mxu0 0.0
    %880 = vmatprep.subr.mxu0 0.0
    %881 = vmatpush1.msra.mxu0 0.0
    %882 = vmatprep.subr.mxu0 0.0
    %883 = vmatpush1.msra.mxu0 0.0
    %884 = vmatprep.subr.mxu0 0.0
    %885 = vmatpush1.msra.mxu0 0.0
    %886 = vmatprep.subr.mxu0 0.0
    %887 = vmatpush1.msra.mxu0 0.0
    %888 = vmatprep.subr.mxu0 0.0
    %889 = vmatpush1.msra.mxu0 0.0
    %890 = vmatprep.subr.mxu0 0.0
    %891 = vmatpush1.msra.mxu0 0.0
    %892 = vmatprep.subr.mxu0 0.0
    %893 = vmatpush1.msra.mxu0 0.0
    %894 = vmatprep.subr.mxu0 0.0
    %895 = vmatpush1.msra.mxu0 0.0
    %896 = vmatprep.mubr.f32.mxu0 0.0
    %897 = vmatmul.mubr.f32.gmra.mrb[0].mxu0 %v537
    %v898 = vpop.f32.mrb[0].mxu0
    %v899 = vadd.f32 %v814, %v898
    %v900 = vpop.f32.mrb[0].mxu0
    %901 = vmatprep.mubr.f32.mxu0 0.0
    %902 = vmatmul.mubr.f32.gmra.mrb[0].mxu0 %v542
    %v903 = vpop.f32.mrb[0].mxu0
    %v904 = vadd.f32 %v819, %v903
    %v905 = vpop.f32.mrb[0].mxu0
    %906 = vmatprep.mubr.f32.mxu0 0.0
    %907 = vmatmul.mubr.f32.gmra.mrb[0].mxu0 %v547
    %v908 = vpop.f32.mrb[0].mxu0
    %v909 = vadd.f32 %v824, %v908
    %v910 = vpop.f32.mrb[0].mxu0
    %911 = vmatprep.mubr.f32.mxu0 0.0
    %912 = vmatmul.mubr.f32.gmra.mrb[0].mxu0 %v552
    %v913 = vpop.f32.mrb[0].mxu0
    %v914 = vadd.f32 %v829, %v913
    %v915 = vpop.f32.mrb[0].mxu0
    %916 = vdwg.mxu0
    %v917 = vld [vmem:[#allocation5 + $0x180] sm:$0xff]
    %v918 = vld [vmem:[#allocation5 + $0x188] sm:$0xff]
    %v919 = vld [vmem:[#allocation5 + $0x190] sm:$0xff]
    %v920 = vld [vmem:[#allocation5 + $0x198] sm:$0xff]
    %v921 = vld [vmem:[#allocation5 + $0x1a0] sm:$0xff]
    %v922 = vld [vmem:[#allocation5 + $0x1a8] sm:$0xff]
    %v923 = vld [vmem:[#allocation5 + $0x1b0] sm:$0xff]
    %v924 = vld [vmem:[#allocation5 + $0x1b8] sm:$0xff]
    %v925 = vld [vmem:[#allocation5 + $0x1c0] sm:$0xff]
    %v926 = vld [vmem:[#allocation5 + $0x1c8] sm:$0xff]
    %v927 = vld [vmem:[#allocation5 + $0x1d0] sm:$0xff]
    %v928 = vld [vmem:[#allocation5 + $0x1d8] sm:$0xff]
    %v929 = vld [vmem:[#allocation5 + $0x1e0] sm:$0xff]
    %v930 = vld [vmem:[#allocation5 + $0x1e8] sm:$0xff]
    %v931 = vld [vmem:[#allocation5 + $0x1f0] sm:$0xff]
    %v932 = vld [vmem:[#allocation5 + $0x1f8] sm:$0xff]
    %933 = vmatprep.subr.mxu0 0.0
    %934 = vmatpush1.msra.mxu0 %v917
    %935 = vmatprep.subr.mxu0 0.0
    %936 = vmatpush1.msra.mxu0 %v918
    %937 = vmatprep.subr.mxu0 0.0
    %938 = vmatpush1.msra.mxu0 %v919
    %939 = vmatprep.subr.mxu0 0.0
    %940 = vmatpush1.msra.mxu0 %v920
    %941 = vmatprep.subr.mxu0 0.0
    %942 = vmatpush1.msra.mxu0 %v921
    %943 = vmatprep.subr.mxu0 0.0
    %944 = vmatpush1.msra.mxu0 %v922
    %945 = vmatprep.subr.mxu0 0.0
    %946 = vmatpush1.msra.mxu0 %v923
    %947 = vmatprep.subr.mxu0 0.0
    %948 = vmatpush1.msra.mxu0 %v924
    %949 = vmatprep.subr.mxu0 0.0
    %950 = vmatpush1.msra.mxu0 %v925
    %951 = vmatprep.subr.mxu0 0.0
    %952 = vmatpush1.msra.mxu0 %v926
    %953 = vmatprep.subr.mxu0 0.0
    %954 = vmatpush1.msra.mxu0 %v927
    %955 = vmatprep.subr.mxu0 0.0
    %956 = vmatpush1.msra.mxu0 %v928
    %957 = vmatprep.subr.mxu0 0.0
    %958 = vmatpush1.msra.mxu0 %v929
    %959 = vmatprep.subr.mxu0 0.0
    %960 = vmatpush1.msra.mxu0 %v930
    %961 = vmatprep.subr.mxu0 0.0
    %962 = vmatpush1.msra.mxu0 %v931
    %963 = vmatprep.subr.mxu0 0.0
    %964 = vmatpush1.msra.mxu0 %v932
    %965 = vmatprep.subr.mxu0 0.0
    %966 = vmatpush1.msra.mxu0 0.0
    %967 = vmatprep.subr.mxu0 0.0
    %968 = vmatpush1.msra.mxu0 0.0
    %969 = vmatprep.subr.mxu0 0.0
    %970 = vmatpush1.msra.mxu0 0.0
    %971 = vmatprep.subr.mxu0 0.0
    %972 = vmatpush1.msra.mxu0 0.0
    %973 = vmatprep.subr.mxu0 0.0
    %974 = vmatpush1.msra.mxu0 0.0
    %975 = vmatprep.subr.mxu0 0.0
    %976 = vmatpush1.msra.mxu0 0.0
    %977 = vmatprep.subr.mxu0 0.0
    %978 = vmatpush1.msra.mxu0 0.0
    %979 = vmatprep.subr.mxu0 0.0
    %980 = vmatpush1.msra.mxu0 0.0
    %981 = vmatprep.subr.mxu0 0.0
    %982 = vmatpush1.msra.mxu0 0.0
    %983 = vmatprep.subr.mxu0 0.0
    %984 = vmatpush1.msra.mxu0 0.0
    %985 = vmatprep.subr.mxu0 0.0
    %986 = vmatpush1.msra.mxu0 0.0
    %987 = vmatprep.subr.mxu0 0.0
    %988 = vmatpush1.msra.mxu0 0.0
    %989 = vmatprep.subr.mxu0 0.0
    %990 = vmatpush1.msra.mxu0 0.0
    %991 = vmatprep.subr.mxu0 0.0
    %992 = vmatpush1.msra.mxu0 0.0
    %993 = vmatprep.subr.mxu0 0.0
    %994 = vmatpush1.msra.mxu0 0.0
    %995 = vmatprep.subr.mxu0 0.0
    %996 = vmatpush1.msra.mxu0 0.0
    %997 = vmatprep.mubr.f32.mxu0 0.0
    %998 = vmatmul.mubr.f32.gmra.mrb[0].mxu0 %v577
    %v999 = vpop.f32.mrb[0].mxu0
    %v1000 = vadd.f32 0.0, %v999
    %v1001 = vpop.f32.mrb[0].mxu0
    %1002 = vmatprep.mubr.f32.mxu0 0.0
    %1003 = vmatmul.mubr.f32.gmra.mrb[0].mxu0 %v582
    %v1004 = vpop.f32.mrb[0].mxu0
    %v1005 = vadd.f32 0.0, %v1004
    %v1006 = vpop.f32.mrb[0].mxu0
    %1007 = vmatprep.mubr.f32.mxu0 0.0
    %1008 = vmatmul.mubr.f32.gmra.mrb[0].mxu0 %v587
    %v1009 = vpop.f32.mrb[0].mxu0
    %v1010 = vadd.f32 0.0, %v1009
    %v1011 = vpop.f32.mrb[0].mxu0
    %1012 = vmatprep.mubr.f32.mxu0 0.0
    %1013 = vmatmul.mubr.f32.gmra.mrb[0].mxu0 %v592
    %v1014 = vpop.f32.mrb[0].mxu0
    %v1015 = vadd.f32 0.0, %v1014
    %v1016 = vpop.f32.mrb[0].mxu0
    %1017 = vdwg.mxu0
    %v1018 = vadd.f32 %v899, %v1000
    %v1019 = vadd.f32 %v904, %v1005
    %v1020 = vadd.f32 %v909, %v1010
    %v1021 = vadd.f32 %v914, %v1015
    %v1022 = vld [vmem:[#allocation5 + $0x200] sm:$0xff]
    %v1023 = vld [vmem:[#allocation5 + $0x208] sm:$0xff]
    %v1024 = vld [vmem:[#allocation5 + $0x210] sm:$0xff]
    %v1025 = vld [vmem:[#allocation5 + $0x218] sm:$0xff]
    %v1026 = vld [vmem:[#allocation5 + $0x220] sm:$0xff]
    %v1027 = vld [vmem:[#allocation5 + $0x228] sm:$0xff]
    %v1028 = vld [vmem:[#allocation5 + $0x230] sm:$0xff]
    %v1029 = vld [vmem:[#allocation5 + $0x238] sm:$0xff]
    %v1030 = vld [vmem:[#allocation5 + $0x240] sm:$0xff]
    %v1031 = vld [vmem:[#allocation5 + $0x248] sm:$0xff]
    %v1032 = vld [vmem:[#allocation5 + $0x250] sm:$0xff]
    %v1033 = vld [vmem:[#allocation5 + $0x258] sm:$0xff]
    %v1034 = vld [vmem:[#allocation5 + $0x260] sm:$0xff]
    %v1035 = vld [vmem:[#allocation5 + $0x268] sm:$0xff]
    %v1036 = vld [vmem:[#allocation5 + $0x270] sm:$0xff]
    %v1037 = vld [vmem:[#allocation5 + $0x278] sm:$0xff]
    %1038 = vmatprep.subr.mxu0 0.0
    %1039 = vmatpush1.msra.mxu0 %v1022
    %1040 = vmatprep.subr.mxu0 0.0
    %1041 = vmatpush1.msra.mxu0 %v1023
    %1042 = vmatprep.subr.mxu0 0.0
    %1043 = vmatpush1.msra.mxu0 %v1024
    %1044 = vmatprep.subr.mxu0 0.0
    %1045 = vmatpush1.msra.mxu0 %v1025
    %1046 = vmatprep.subr.mxu0 0.0
    %1047 = vmatpush1.msra.mxu0 %v1026
    %1048 = vmatprep.subr.mxu0 0.0
    %1049 = vmatpush1.msra.mxu0 %v1027
    %1050 = vmatprep.subr.mxu0 0.0
    %1051 = vmatpush1.msra.mxu0 %v1028
    %1052 = vmatprep.subr.mxu0 0.0
    %1053 = vmatpush1.msra.mxu0 %v1029
    %1054 = vmatprep.subr.mxu0 0.0
    %1055 = vmatpush1.msra.mxu0 %v1030
    %1056 = vmatprep.subr.mxu0 0.0
    %1057 = vmatpush1.msra.mxu0 %v1031
    %1058 = vmatprep.subr.mxu0 0.0
    %1059 = vmatpush1.msra.mxu0 %v1032
    %1060 = vmatprep.subr.mxu0 0.0
    %1061 = vmatpush1.msra.mxu0 %v1033
    %1062 = vmatprep.subr.mxu0 0.0
    %1063 = vmatpush1.msra.mxu0 %v1034
    %1064 = vmatprep.subr.mxu0 0.0
    %1065 = vmatpush1.msra.mxu0 %v1035
    %1066 = vmatprep.subr.mxu0 0.0
    %1067 = vmatpush1.msra.mxu0 %v1036
    %1068 = vmatprep.subr.mxu0 0.0
    %1069 = vmatpush1.msra.mxu0 %v1037
    %1070 = vmatprep.subr.mxu0 0.0
    %1071 = vmatpush1.msra.mxu0 0.0
    %1072 = vmatprep.subr.mxu0 0.0
    %1073 = vmatpush1.msra.mxu0 0.0
    %1074 = vmatprep.subr.mxu0 0.0
    %1075 = vmatpush1.msra.mxu0 0.0
    %1076 = vmatprep.subr.mxu0 0.0
    %1077 = vmatpush1.msra.mxu0 0.0
    %1078 = vmatprep.subr.mxu0 0.0
    %1079 = vmatpush1.msra.mxu0 0.0
    %1080 = vmatprep.subr.mxu0 0.0
    %1081 = vmatpush1.msra.mxu0 0.0
    %1082 = vmatprep.subr.mxu0 0.0
    %1083 = vmatpush1.msra.mxu0 0.0
    %1084 = vmatprep.subr.mxu0 0.0
    %1085 = vmatpush1.msra.mxu0 0.0
    %1086 = vmatprep.subr.mxu0 0.0
    %1087 = vmatpush1.msra.mxu0 0.0
    %1088 = vmatprep.subr.mxu0 0.0
    %1089 = vmatpush1.msra.mxu0 0.0
    %1090 = vmatprep.subr.mxu0 0.0
    %1091 = vmatpush1.msra.mxu0 0.0
    %1092 = vmatprep.subr.mxu0 0.0
    %1093 = vmatpush1.msra.mxu0 0.0
    %1094 = vmatprep.subr.mxu0 0.0
    %1095 = vmatpush1.msra.mxu0 0.0
    %1096 = vmatprep.subr.mxu0 0.0
    %1097 = vmatpush1.msra.mxu0 0.0
    %1098 = vmatprep.subr.mxu0 0.0
    %1099 = vmatpush1.msra.mxu0 0.0
    %1100 = vmatprep.subr.mxu0 0.0
    %1101 = vmatpush1.msra.mxu0 0.0
    %1102 = vmatprep.mubr.f32.mxu0 0.0
    %1103 = vmatmul.mubr.f32.gmra.mrb[0].mxu0 %v597
    %v1104 = vpop.f32.mrb[0].mxu0
    %v1105 = vadd.f32 0.0, %v1104
    %v1106 = vpop.f32.mrb[0].mxu0
    %1107 = vmatprep.mubr.f32.mxu0 0.0
    %1108 = vmatmul.mubr.f32.gmra.mrb[0].mxu0 %v602
    %v1109 = vpop.f32.mrb[0].mxu0
    %v1110 = vadd.f32 0.0, %v1109
    %v1111 = vpop.f32.mrb[0].mxu0
    %1112 = vmatprep.mubr.f32.mxu0 0.0
    %1113 = vmatmul.mubr.f32.gmra.mrb[0].mxu0 %v607
    %v1114 = vpop.f32.mrb[0].mxu0
    %v1115 = vadd.f32 0.0, %v1114
    %v1116 = vpop.f32.mrb[0].mxu0
    %1117 = vmatprep.mubr.f32.mxu0 0.0
    %1118 = vmatmul.mubr.f32.gmra.mrb[0].mxu0 %v612
    %v1119 = vpop.f32.mrb[0].mxu0
    %v1120 = vadd.f32 0.0, %v1119
    %v1121 = vpop.f32.mrb[0].mxu0
    %1122 = vdwg.mxu0
    %v1123 = vadd.f32 %v1018, %v1105
    %v1124 = vadd.f32 %v1019, %v1110
    %v1125 = vadd.f32 %v1020, %v1115
    %v1126 = vadd.f32 %v1021, %v1120
    %v1127 = vld [vmem:[#allocation5 + $0x280] sm:$0xff]
    %v1128 = vld [vmem:[#allocation5 + $0x288] sm:$0xff]
    %v1129 = vld [vmem:[#allocation5 + $0x290] sm:$0xff]
    %v1130 = vld [vmem:[#allocation5 + $0x298] sm:$0xff]
    %v1131 = vld [vmem:[#allocation5 + $0x2a0] sm:$0xff]
    %v1132 = vld [vmem:[#allocation5 + $0x2a8] sm:$0xff]
    %v1133 = vld [vmem:[#allocation5 + $0x2b0] sm:$0xff]
    %v1134 = vld [vmem:[#allocation5 + $0x2b8] sm:$0xff]
    %v1135 = vld [vmem:[#allocation5 + $0x2c0] sm:$0xff]
    %v1136 = vld [vmem:[#allocation5 + $0x2c8] sm:$0xff]
    %v1137 = vld [vmem:[#allocation5 + $0x2d0] sm:$0xff]
    %v1138 = vld [vmem:[#allocation5 + $0x2d8] sm:$0xff]
    %v1139 = vld [vmem:[#allocation5 + $0x2e0] sm:$0xff]
    %v1140 = vld [vmem:[#allocation5 + $0x2e8] sm:$0xff]
    %v1141 = vld [vmem:[#allocation5 + $0x2f0] sm:$0xff]
    %v1142 = vld [vmem:[#allocation5 + $0x2f8] sm:$0xff]
    %1143 = vmatprep.subr.mxu0 0.0
    %1144 = vmatpush1.msra.mxu0 %v1127
    %1145 = vmatprep.subr.mxu0 0.0
    %1146 = vmatpush1.msra.mxu0 %v1128
    %1147 = vmatprep.subr.mxu0 0.0
    %1148 = vmatpush1.msra.mxu0 %v1129
    %1149 = vmatprep.subr.mxu0 0.0
    %1150 = vmatpush1.msra.mxu0 %v1130
    %1151 = vmatprep.subr.mxu0 0.0
    %1152 = vmatpush1.msra.mxu0 %v1131
    %1153 = vmatprep.subr.mxu0 0.0
    %1154 = vmatpush1.msra.mxu0 %v1132
    %1155 = vmatprep.subr.mxu0 0.0
    %1156 = vmatpush1.msra.mxu0 %v1133
    %1157 = vmatprep.subr.mxu0 0.0
    %1158 = vmatpush1.msra.mxu0 %v1134
    %1159 = vmatprep.subr.mxu0 0.0
    %1160 = vmatpush1.msra.mxu0 %v1135
    %1161 = vmatprep.subr.mxu0 0.0
    %1162 = vmatpush1.msra.mxu0 %v1136
    %1163 = vmatprep.subr.mxu0 0.0
    %1164 = vmatpush1.msra.mxu0 %v1137
    %1165 = vmatprep.subr.mxu0 0.0
    %1166 = vmatpush1.msra.mxu0 %v1138
    %1167 = vmatprep.subr.mxu0 0.0
    %1168 = vmatpush1.msra.mxu0 %v1139
    %1169 = vmatprep.subr.mxu0 0.0
    %1170 = vmatpush1.msra.mxu0 %v1140
    %1171 = vmatprep.subr.mxu0 0.0
    %1172 = vmatpush1.msra.mxu0 %v1141
    %1173 = vmatprep.subr.mxu0 0.0
    %1174 = vmatpush1.msra.mxu0 %v1142
    %1175 = vmatprep.subr.mxu0 0.0
    %1176 = vmatpush1.msra.mxu0 0.0
    %1177 = vmatprep.subr.mxu0 0.0
    %1178 = vmatpush1.msra.mxu0 0.0
    %1179 = vmatprep.subr.mxu0 0.0
    %1180 = vmatpush1.msra.mxu0 0.0
    %1181 = vmatprep.subr.mxu0 0.0
    %1182 = vmatpush1.msra.mxu0 0.0
    %1183 = vmatprep.subr.mxu0 0.0
    %1184 = vmatpush1.msra.mxu0 0.0
    %1185 = vmatprep.subr.mxu0 0.0
    %1186 = vmatpush1.msra.mxu0 0.0
    %1187 = vmatprep.subr.mxu0 0.0
    %1188 = vmatpush1.msra.mxu0 0.0
    %1189 = vmatprep.subr.mxu0 0.0
    %1190 = vmatpush1.msra.mxu0 0.0
    %1191 = vmatprep.subr.mxu0 0.0
    %1192 = vmatpush1.msra.mxu0 0.0
    %1193 = vmatprep.subr.mxu0 0.0
    %1194 = vmatpush1.msra.mxu0 0.0
    %1195 = vmatprep.subr.mxu0 0.0
    %1196 = vmatpush1.msra.mxu0 0.0
    %1197 = vmatprep.subr.mxu0 0.0
    %1198 = vmatpush1.msra.mxu0 0.0
    %1199 = vmatprep.subr.mxu0 0.0
    %1200 = vmatpush1.msra.mxu0 0.0
    %1201 = vmatprep.subr.mxu0 0.0
    %1202 = vmatpush1.msra.mxu0 0.0
    %1203 = vmatprep.subr.mxu0 0.0
    %1204 = vmatpush1.msra.mxu0 0.0
    %1205 = vmatprep.subr.mxu0 0.0
    %1206 = vmatpush1.msra.mxu0 0.0
    %1207 = vmatprep.mubr.f32.mxu0 0.0
    %1208 = vmatmul.mubr.f32.gmra.mrb[0].mxu0 %v617
    %v1209 = vpop.f32.mrb[0].mxu0
    %v1210 = vadd.f32 0.0, %v1209
    %v1211 = vpop.f32.mrb[0].mxu0
    %1212 = vmatprep.mubr.f32.mxu0 0.0
    %1213 = vmatmul.mubr.f32.gmra.mrb[0].mxu0 %v622
    %v1214 = vpop.f32.mrb[0].mxu0
    %v1215 = vadd.f32 0.0, %v1214
    %v1216 = vpop.f32.mrb[0].mxu0
    %1217 = vmatprep.mubr.f32.mxu0 0.0
    %1218 = vmatmul.mubr.f32.gmra.mrb[0].mxu0 %v627
    %v1219 = vpop.f32.mrb[0].mxu0
    %v1220 = vadd.f32 0.0, %v1219
    %v1221 = vpop.f32.mrb[0].mxu0
    %1222 = vmatprep.mubr.f32.mxu0 0.0
    %1223 = vmatmul.mubr.f32.gmra.mrb[0].mxu0 %v632
    %v1224 = vpop.f32.mrb[0].mxu0
    %v1225 = vadd.f32 0.0, %v1224
    %v1226 = vpop.f32.mrb[0].mxu0
    %1227 = vdwg.mxu0
    %v1228 = vadd.f32 %v1123, %v1210
    %v1229 = vadd.f32 %v1124, %v1215
    %v1230 = vadd.f32 %v1125, %v1220
    %v1231 = vadd.f32 %v1126, %v1225
    %v1232 = vld [vmem:[#allocation5 + $0x300] sm:$0xff]
    %v1233 = vld [vmem:[#allocation5 + $0x308] sm:$0xff]
    %v1234 = vld [vmem:[#allocation5 + $0x310] sm:$0xff]
    %v1235 = vld [vmem:[#allocation5 + $0x318] sm:$0xff]
    %v1236 = vld [vmem:[#allocation5 + $0x320] sm:$0xff]
    %v1237 = vld [vmem:[#allocation5 + $0x328] sm:$0xff]
    %v1238 = vld [vmem:[#allocation5 + $0x330] sm:$0xff]
    %v1239 = vld [vmem:[#allocation5 + $0x338] sm:$0xff]
    %v1240 = vld [vmem:[#allocation5 + $0x340] sm:$0xff]
    %v1241 = vld [vmem:[#allocation5 + $0x348] sm:$0xff]
    %v1242 = vld [vmem:[#allocation5 + $0x350] sm:$0xff]
    %v1243 = vld [vmem:[#allocation5 + $0x358] sm:$0xff]
    %v1244 = vld [vmem:[#allocation5 + $0x360] sm:$0xff]
    %v1245 = vld [vmem:[#allocation5 + $0x368] sm:$0xff]
    %v1246 = vld [vmem:[#allocation5 + $0x370] sm:$0xff]
    %v1247 = vld [vmem:[#allocation5 + $0x378] sm:$0xff]
    %1248 = vmatprep.subr.mxu0 0.0
    %1249 = vmatpush1.msra.mxu0 %v1232
    %1250 = vmatprep.subr.mxu0 0.0
    %1251 = vmatpush1.msra.mxu0 %v1233
    %1252 = vmatprep.subr.mxu0 0.0
    %1253 = vmatpush1.msra.mxu0 %v1234
    %1254 = vmatprep.subr.mxu0 0.0
    %1255 = vmatpush1.msra.mxu0 %v1235
    %1256 = vmatprep.subr.mxu0 0.0
    %1257 = vmatpush1.msra.mxu0 %v1236
    %1258 = vmatprep.subr.mxu0 0.0
    %1259 = vmatpush1.msra.mxu0 %v1237
    %1260 = vmatprep.subr.mxu0 0.0
    %1261 = vmatpush1.msra.mxu0 %v1238
    %1262 = vmatprep.subr.mxu0 0.0
    %1263 = vmatpush1.msra.mxu0 %v1239
    %1264 = vmatprep.subr.mxu0 0.0
    %1265 = vmatpush1.msra.mxu0 %v1240
    %1266 = vmatprep.subr.mxu0 0.0
    %1267 = vmatpush1.msra.mxu0 %v1241
    %1268 = vmatprep.subr.mxu0 0.0
    %1269 = vmatpush1.msra.mxu0 %v1242
    %1270 = vmatprep.subr.mxu0 0.0
    %1271 = vmatpush1.msra.mxu0 %v1243
    %1272 = vmatprep.subr.mxu0 0.0
    %1273 = vmatpush1.msra.mxu0 %v1244
    %1274 = vmatprep.subr.mxu0 0.0
    %1275 = vmatpush1.msra.mxu0 %v1245
    %1276 = vmatprep.subr.mxu0 0.0
    %1277 = vmatpush1.msra.mxu0 %v1246
    %1278 = vmatprep.subr.mxu0 0.0
    %1279 = vmatpush1.msra.mxu0 %v1247
    %1280 = vmatprep.subr.mxu0 0.0
    %1281 = vmatpush1.msra.mxu0 0.0
    %1282 = vmatprep.subr.mxu0 0.0
    %1283 = vmatpush1.msra.mxu0 0.0
    %1284 = vmatprep.subr.mxu0 0.0
    %1285 = vmatpush1.msra.mxu0 0.0
    %1286 = vmatprep.subr.mxu0 0.0
    %1287 = vmatpush1.msra.mxu0 0.0
    %1288 = vmatprep.subr.mxu0 0.0
    %1289 = vmatpush1.msra.mxu0 0.0
    %1290 = vmatprep.subr.mxu0 0.0
    %1291 = vmatpush1.msra.mxu0 0.0
    %1292 = vmatprep.subr.mxu0 0.0
    %1293 = vmatpush1.msra.mxu0 0.0
    %1294 = vmatprep.subr.mxu0 0.0
    %1295 = vmatpush1.msra.mxu0 0.0
    %1296 = vmatprep.subr.mxu0 0.0
    %1297 = vmatpush1.msra.mxu0 0.0
    %1298 = vmatprep.subr.mxu0 0.0
    %1299 = vmatpush1.msra.mxu0 0.0
    %1300 = vmatprep.subr.mxu0 0.0
    %1301 = vmatpush1.msra.mxu0 0.0
    %1302 = vmatprep.subr.mxu0 0.0
    %1303 = vmatpush1.msra.mxu0 0.0
    %1304 = vmatprep.subr.mxu0 0.0
    %1305 = vmatpush1.msra.mxu0 0.0
    %1306 = vmatprep.subr.mxu0 0.0
    %1307 = vmatpush1.msra.mxu0 0.0
    %1308 = vmatprep.subr.mxu0 0.0
    %1309 = vmatpush1.msra.mxu0 0.0
    %1310 = vmatprep.subr.mxu0 0.0
    %1311 = vmatpush1.msra.mxu0 0.0
    %1312 = vmatprep.mubr.f32.mxu0 0.0
    %1313 = vmatmul.mubr.f32.gmra.mrb[0].mxu0 %v637
    %v1314 = vpop.f32.mrb[0].mxu0
    %v1315 = vadd.f32 0.0, %v1314
    %v1316 = vpop.f32.mrb[0].mxu0
    %1317 = vmatprep.mubr.f32.mxu0 0.0
    %1318 = vmatmul.mubr.f32.gmra.mrb[0].mxu0 %v642
    %v1319 = vpop.f32.mrb[0].mxu0
    %v1320 = vadd.f32 0.0, %v1319
    %v1321 = vpop.f32.mrb[0].mxu0
    %1322 = vmatprep.mubr.f32.mxu0 0.0
    %1323 = vmatmul.mubr.f32.gmra.mrb[0].mxu0 %v647
    %v1324 = vpop.f32.mrb[0].mxu0
    %v1325 = vadd.f32 0.0, %v1324
    %v1326 = vpop.f32.mrb[0].mxu0
    %1327 = vmatprep.mubr.f32.mxu0 0.0
    %1328 = vmatmul.mubr.f32.gmra.mrb[0].mxu0 %v652
    %v1329 = vpop.f32.mrb[0].mxu0
    %v1330 = vadd.f32 0.0, %v1329
    %v1331 = vpop.f32.mrb[0].mxu0
    %1332 = vdwg.mxu0
    %v1333 = vadd.f32 %v1228, %v1315
    %v1334 = vadd.f32 %v1229, %v1320
    %v1335 = vadd.f32 %v1230, %v1325
    %v1336 = vadd.f32 %v1231, %v1330
    %v1337 = vld [vmem:[#allocation5 + $0x380] sm:$0xff]
    %v1338 = vld [vmem:[#allocation5 + $0x388] sm:$0xff]
    %v1339 = vld [vmem:[#allocation5 + $0x390] sm:$0xff]
    %v1340 = vld [vmem:[#allocation5 + $0x398] sm:$0xff]
    %v1341 = vld [vmem:[#allocation5 + $0x3a0] sm:$0xff]
    %v1342 = vld [vmem:[#allocation5 + $0x3a8] sm:$0xff]
    %v1343 = vld [vmem:[#allocation5 + $0x3b0] sm:$0xff]
    %v1344 = vld [vmem:[#allocation5 + $0x3b8] sm:$0xff]
    %v1345 = vld [vmem:[#allocation5 + $0x3c0] sm:$0xff]
    %v1346 = vld [vmem:[#allocation5 + $0x3c8] sm:$0xff]
    %v1347 = vld [vmem:[#allocation5 + $0x3d0] sm:$0xff]
    %v1348 = vld [vmem:[#allocation5 + $0x3d8] sm:$0xff]
    %v1349 = vld [vmem:[#allocation5 + $0x3e0] sm:$0xff]
    %v1350 = vld [vmem:[#allocation5 + $0x3e8] sm:$0xff]
    %v1351 = vld [vmem:[#allocation5 + $0x3f0] sm:$0xff]
    %v1352 = vld [vmem:[#allocation5 + $0x3f8] sm:$0xff]
    %1353 = vmatprep.subr.mxu0 0.0
    %1354 = vmatpush1.msra.mxu0 %v1337
    %1355 = vmatprep.subr.mxu0 0.0
    %1356 = vmatpush1.msra.mxu0 %v1338
    %1357 = vmatprep.subr.mxu0 0.0
    %1358 = vmatpush1.msra.mxu0 %v1339
    %1359 = vmatprep.subr.mxu0 0.0
    %1360 = vmatpush1.msra.mxu0 %v1340
    %1361 = vmatprep.subr.mxu0 0.0
    %1362 = vmatpush1.msra.mxu0 %v1341
    %1363 = vmatprep.subr.mxu0 0.0
    %1364 = vmatpush1.msra.mxu0 %v1342
    %1365 = vmatprep.subr.mxu0 0.0
    %1366 = vmatpush1.msra.mxu0 %v1343
    %1367 = vmatprep.subr.mxu0 0.0
    %1368 = vmatpush1.msra.mxu0 %v1344
    %1369 = vmatprep.subr.mxu0 0.0
    %1370 = vmatpush1.msra.mxu0 %v1345
    %1371 = vmatprep.subr.mxu0 0.0
    %1372 = vmatpush1.msra.mxu0 %v1346
    %1373 = vmatprep.subr.mxu0 0.0
    %1374 = vmatpush1.msra.mxu0 %v1347
    %1375 = vmatprep.subr.mxu0 0.0
    %1376 = vmatpush1.msra.mxu0 %v1348
    %1377 = vmatprep.subr.mxu0 0.0
    %1378 = vmatpush1.msra.mxu0 %v1349
    %1379 = vmatprep.subr.mxu0 0.0
    %1380 = vmatpush1.msra.mxu0 %v1350
    %1381 = vmatprep.subr.mxu0 0.0
    %1382 = vmatpush1.msra.mxu0 %v1351
    %1383 = vmatprep.subr.mxu0 0.0
    %1384 = vmatpush1.msra.mxu0 %v1352
    %1385 = vmatprep.subr.mxu0 0.0
    %1386 = vmatpush1.msra.mxu0 0.0
    %1387 = vmatprep.subr.mxu0 0.0
    %1388 = vmatpush1.msra.mxu0 0.0
    %1389 = vmatprep.subr.mxu0 0.0
    %1390 = vmatpush1.msra.mxu0 0.0
    %1391 = vmatprep.subr.mxu0 0.0
    %1392 = vmatpush1.msra.mxu0 0.0
    %1393 = vmatprep.subr.mxu0 0.0
    %1394 = vmatpush1.msra.mxu0 0.0
    %1395 = vmatprep.subr.mxu0 0.0
    %1396 = vmatpush1.msra.mxu0 0.0
    %1397 = vmatprep.subr.mxu0 0.0
    %1398 = vmatpush1.msra.mxu0 0.0
    %1399 = vmatprep.subr.mxu0 0.0
    %1400 = vmatpush1.msra.mxu0 0.0
    %1401 = vmatprep.subr.mxu0 0.0
    %1402 = vmatpush1.msra.mxu0 0.0
    %1403 = vmatprep.subr.mxu0 0.0
    %1404 = vmatpush1.msra.mxu0 0.0
    %1405 = vmatprep.subr.mxu0 0.0
    %1406 = vmatpush1.msra.mxu0 0.0
    %1407 = vmatprep.subr.mxu0 0.0
    %1408 = vmatpush1.msra.mxu0 0.0
    %1409 = vmatprep.subr.mxu0 0.0
    %1410 = vmatpush1.msra.mxu0 0.0
    %1411 = vmatprep.subr.mxu0 0.0
    %1412 = vmatpush1.msra.mxu0 0.0
    %1413 = vmatprep.subr.mxu0 0.0
    %1414 = vmatpush1.msra.mxu0 0.0
    %1415 = vmatprep.subr.mxu0 0.0
    %1416 = vmatpush1.msra.mxu0 0.0
    %1417 = vmatprep.mubr.f32.mxu0 0.0
    %1418 = vmatmul.mubr.f32.gmra.mrb[0].mxu0 %v657
    %v1419 = vpop.f32.mrb[0].mxu0
    %v1420 = vadd.f32 0.0, %v1419
    %v1421 = vpop.f32.mrb[0].mxu0
    %1422 = vmatprep.mubr.f32.mxu0 0.0
    %1423 = vmatmul.mubr.f32.gmra.mrb[0].mxu0 %v662
    %v1424 = vpop.f32.mrb[0].mxu0
    %v1425 = vadd.f32 0.0, %v1424
    %v1426 = vpop.f32.mrb[0].mxu0
    %1427 = vmatprep.mubr.f32.mxu0 0.0
    %1428 = vmatmul.mubr.f32.gmra.mrb[0].mxu0 %v667
    %v1429 = vpop.f32.mrb[0].mxu0
    %v1430 = vadd.f32 0.0, %v1429
    %v1431 = vpop.f32.mrb[0].mxu0
    %1432 = vmatprep.mubr.f32.mxu0 0.0
    %1433 = vmatmul.mubr.f32.gmra.mrb[0].mxu0 %v672
    %v1434 = vpop.f32.mrb[0].mxu0
    %v1435 = vadd.f32 0.0, %v1434
    %v1436 = vpop.f32.mrb[0].mxu0
    %1437 = vdwg.mxu0
    %v1438 = vadd.f32 %v1333, %v1420
    %v1439 = vadd.f32 %v1334, %v1425
    %v1440 = vadd.f32 %v1335, %v1430
    %v1441 = vadd.f32 %v1336, %v1435
    %v1442 = vld [vmem:[#allocation5 + $0x400] sm:$0xff]
    %v1443 = vld [vmem:[#allocation5 + $0x408] sm:$0xff]
    %v1444 = vld [vmem:[#allocation5 + $0x410] sm:$0xff]
    %v1445 = vld [vmem:[#allocation5 + $0x418] sm:$0xff]
    %v1446 = vld [vmem:[#allocation5 + $0x420] sm:$0xff]
    %v1447 = vld [vmem:[#allocation5 + $0x428] sm:$0xff]
    %v1448 = vld [vmem:[#allocation5 + $0x430] sm:$0xff]
    %v1449 = vld [vmem:[#allocation5 + $0x438] sm:$0xff]
    %v1450 = vld [vmem:[#allocation5 + $0x440] sm:$0xff]
    %v1451 = vld [vmem:[#allocation5 + $0x448] sm:$0xff]
    %v1452 = vld [vmem:[#allocation5 + $0x450] sm:$0xff]
    %v1453 = vld [vmem:[#allocation5 + $0x458] sm:$0xff]
    %v1454 = vld [vmem:[#allocation5 + $0x460] sm:$0xff]
    %v1455 = vld [vmem:[#allocation5 + $0x468] sm:$0xff]
    %v1456 = vld [vmem:[#allocation5 + $0x470] sm:$0xff]
    %v1457 = vld [vmem:[#allocation5 + $0x478] sm:$0xff]
    %1458 = vmatprep.subr.mxu0 0.0
    %1459 = vmatpush1.msra.mxu0 %v1442
    %1460 = vmatprep.subr.mxu0 0.0
    %1461 = vmatpush1.msra.mxu0 %v1443
    %1462 = vmatprep.subr.mxu0 0.0
    %1463 = vmatpush1.msra.mxu0 %v1444
    %1464 = vmatprep.subr.mxu0 0.0
    %1465 = vmatpush1.msra.mxu0 %v1445
    %1466 = vmatprep.subr.mxu0 0.0
    %1467 = vmatpush1.msra.mxu0 %v1446
    %1468 = vmatprep.subr.mxu0 0.0
    %1469 = vmatpush1.msra.mxu0 %v1447
    %1470 = vmatprep.subr.mxu0 0.0
    %1471 = vmatpush1.msra.mxu0 %v1448
    %1472 = vmatprep.subr.mxu0 0.0
    %1473 = vmatpush1.msra.mxu0 %v1449
    %1474 = vmatprep.subr.mxu0 0.0
    %1475 = vmatpush1.msra.mxu0 %v1450
    %1476 = vmatprep.subr.mxu0 0.0
    %1477 = vmatpush1.msra.mxu0 %v1451
    %1478 = vmatprep.subr.mxu0 0.0
    %1479 = vmatpush1.msra.mxu0 %v1452
    %1480 = vmatprep.subr.mxu0 0.0
    %1481 = vmatpush1.msra.mxu0 %v1453
    %1482 = vmatprep.subr.mxu0 0.0
    %1483 = vmatpush1.msra.mxu0 %v1454
    %1484 = vmatprep.subr.mxu0 0.0
    %1485 = vmatpush1.msra.mxu0 %v1455
    %1486 = vmatprep.subr.mxu0 0.0
    %1487 = vmatpush1.msra.mxu0 %v1456
    %1488 = vmatprep.subr.mxu0 0.0
    %1489 = vmatpush1.msra.mxu0 %v1457
    %1490 = vmatprep.subr.mxu0 0.0
    %1491 = vmatpush1.msra.mxu0 0.0
    %1492 = vmatprep.subr.mxu0 0.0
    %1493 = vmatpush1.msra.mxu0 0.0
    %1494 = vmatprep.subr.mxu0 0.0
    %1495 = vmatpush1.msra.mxu0 0.0
    %1496 = vmatprep.subr.mxu0 0.0
    %1497 = vmatpush1.msra.mxu0 0.0
    %1498 = vmatprep.subr.mxu0 0.0
    %1499 = vmatpush1.msra.mxu0 0.0
    %1500 = vmatprep.subr.mxu0 0.0
    %1501 = vmatpush1.msra.mxu0 0.0
    %1502 = vmatprep.subr.mxu0 0.0
    %1503 = vmatpush1.msra.mxu0 0.0
    %1504 = vmatprep.subr.mxu0 0.0
    %1505 = vmatpush1.msra.mxu0 0.0
    %1506 = vmatprep.subr.mxu0 0.0
    %1507 = vmatpush1.msra.mxu0 0.0
    %1508 = vmatprep.subr.mxu0 0.0
    %1509 = vmatpush1.msra.mxu0 0.0
    %1510 = vmatprep.subr.mxu0 0.0
    %1511 = vmatpush1.msra.mxu0 0.0
    %1512 = vmatprep.subr.mxu0 0.0
    %1513 = vmatpush1.msra.mxu0 0.0
    %1514 = vmatprep.subr.mxu0 0.0
    %1515 = vmatpush1.msra.mxu0 0.0
    %1516 = vmatprep.subr.mxu0 0.0
    %1517 = vmatpush1.msra.mxu0 0.0
    %1518 = vmatprep.subr.mxu0 0.0
    %1519 = vmatpush1.msra.mxu0 0.0
    %1520 = vmatprep.subr.mxu0 0.0
    %1521 = vmatpush1.msra.mxu0 0.0
    %1522 = vmatprep.mubr.f32.mxu0 0.0
    %1523 = vmatmul.mubr.f32.gmra.mrb[0].mxu0 %v677
    %v1524 = vpop.f32.mrb[0].mxu0
    %v1525 = vadd.f32 0.0, %v1524
    %v1526 = vpop.f32.mrb[0].mxu0
    %1527 = vmatprep.mubr.f32.mxu0 0.0
    %1528 = vmatmul.mubr.f32.gmra.mrb[0].mxu0 %v682
    %v1529 = vpop.f32.mrb[0].mxu0
    %v1530 = vadd.f32 0.0, %v1529
    %v1531 = vpop.f32.mrb[0].mxu0
    %1532 = vmatprep.mubr.f32.mxu0 0.0
    %1533 = vmatmul.mubr.f32.gmra.mrb[0].mxu0 %v687
    %v1534 = vpop.f32.mrb[0].mxu0
    %v1535 = vadd.f32 0.0, %v1534
    %v1536 = vpop.f32.mrb[0].mxu0
    %1537 = vmatprep.mubr.f32.mxu0 0.0
    %1538 = vmatmul.mubr.f32.gmra.mrb[0].mxu0 %v692
    %v1539 = vpop.f32.mrb[0].mxu0
    %v1540 = vadd.f32 0.0, %v1539
    %v1541 = vpop.f32.mrb[0].mxu0
    %1542 = vdwg.mxu0
    %v1543 = vadd.f32 %v1438, %v1525
    %v1544 = vadd.f32 %v1439, %v1530
    %v1545 = vadd.f32 %v1440, %v1535
    %v1546 = vadd.f32 %v1441, %v1540
    %v1547 = vld [vmem:[#allocation5 + $0x480] sm:$0xff]
    %v1548 = vld [vmem:[#allocation5 + $0x488] sm:$0xff]
    %v1549 = vld [vmem:[#allocation5 + $0x490] sm:$0xff]
    %v1550 = vld [vmem:[#allocation5 + $0x498] sm:$0xff]
    %v1551 = vld [vmem:[#allocation5 + $0x4a0] sm:$0xff]
    %v1552 = vld [vmem:[#allocation5 + $0x4a8] sm:$0xff]
    %v1553 = vld [vmem:[#allocation5 + $0x4b0] sm:$0xff]
    %v1554 = vld [vmem:[#allocation5 + $0x4b8] sm:$0xff]
    %v1555 = vld [vmem:[#allocation5 + $0x4c0] sm:$0xff]
    %v1556 = vld [vmem:[#allocation5 + $0x4c8] sm:$0xff]
    %v1557 = vld [vmem:[#allocation5 + $0x4d0] sm:$0xff]
    %v1558 = vld [vmem:[#allocation5 + $0x4d8] sm:$0xff]
    %v1559 = vld [vmem:[#allocation5 + $0x4e0] sm:$0xff]
    %v1560 = vld [vmem:[#allocation5 + $0x4e8] sm:$0xff]
    %v1561 = vld [vmem:[#allocation5 + $0x4f0] sm:$0xff]
    %v1562 = vld [vmem:[#allocation5 + $0x4f8] sm:$0xff]
    %1563 = vmatprep.subr.mxu0 0.0
    %1564 = vmatpush1.msra.mxu0 %v1547
    %1565 = vmatprep.subr.mxu0 0.0
    %1566 = vmatpush1.msra.mxu0 %v1548
    %1567 = vmatprep.subr.mxu0 0.0
    %1568 = vmatpush1.msra.mxu0 %v1549
    %1569 = vmatprep.subr.mxu0 0.0
    %1570 = vmatpush1.msra.mxu0 %v1550
    %1571 = vmatprep.subr.mxu0 0.0
    %1572 = vmatpush1.msra.mxu0 %v1551
    %1573 = vmatprep.subr.mxu0 0.0
    %1574 = vmatpush1.msra.mxu0 %v1552
    %1575 = vmatprep.subr.mxu0 0.0
    %1576 = vmatpush1.msra.mxu0 %v1553
    %1577 = vmatprep.subr.mxu0 0.0
    %1578 = vmatpush1.msra.mxu0 %v1554
    %1579 = vmatprep.subr.mxu0 0.0
    %1580 = vmatpush1.msra.mxu0 %v1555
    %1581 = vmatprep.subr.mxu0 0.0
    %1582 = vmatpush1.msra.mxu0 %v1556
    %1583 = vmatprep.subr.mxu0 0.0
    %1584 = vmatpush1.msra.mxu0 %v1557
    %1585 = vmatprep.subr.mxu0 0.0
    %1586 = vmatpush1.msra.mxu0 %v1558
    %1587 = vmatprep.subr.mxu0 0.0
    %1588 = vmatpush1.msra.mxu0 %v1559
    %1589 = vmatprep.subr.mxu0 0.0
    %1590 = vmatpush1.msra.mxu0 %v1560
    %1591 = vmatprep.subr.mxu0 0.0
    %1592 = vmatpush1.msra.mxu0 %v1561
    %1593 = vmatprep.subr.mxu0 0.0
    %1594 = vmatpush1.msra.mxu0 %v1562
    %1595 = vmatprep.subr.mxu0 0.0
    %1596 = vmatpush1.msra.mxu0 0.0
    %1597 = vmatprep.subr.mxu0 0.0
    %1598 = vmatpush1.msra.mxu0 0.0
    %1599 = vmatprep.subr.mxu0 0.0
    %1600 = vmatpush1.msra.mxu0 0.0
    %1601 = vmatprep.subr.mxu0 0.0
    %1602 = vmatpush1.msra.mxu0 0.0
    %1603 = vmatprep.subr.mxu0 0.0
    %1604 = vmatpush1.msra.mxu0 0.0
    %1605 = vmatprep.subr.mxu0 0.0
    %1606 = vmatpush1.msra.mxu0 0.0
    %1607 = vmatprep.subr.mxu0 0.0
    %1608 = vmatpush1.msra.mxu0 0.0
    %1609 = vmatprep.subr.mxu0 0.0
    %1610 = vmatpush1.msra.mxu0 0.0
    %1611 = vmatprep.subr.mxu0 0.0
    %1612 = vmatpush1.msra.mxu0 0.0
    %1613 = vmatprep.subr.mxu0 0.0
    %1614 = vmatpush1.msra.mxu0 0.0
    %1615 = vmatprep.subr.mxu0 0.0
    %1616 = vmatpush1.msra.mxu0 0.0
    %1617 = vmatprep.subr.mxu0 0.0
    %1618 = vmatpush1.msra.mxu0 0.0
    %1619 = vmatprep.subr.mxu0 0.0
    %1620 = vmatpush1.msra.mxu0 0.0
    %1621 = vmatprep.subr.mxu0 0.0
    %1622 = vmatpush1.msra.mxu0 0.0
    %1623 = vmatprep.subr.mxu0 0.0
    %1624 = vmatpush1.msra.mxu0 0.0
    %1625 = vmatprep.subr.mxu0 0.0
    %1626 = vmatpush1.msra.mxu0 0.0
    %1627 = vmatprep.mubr.f32.mxu0 0.0
    %1628 = vmatmul.mubr.f32.gmra.mrb[0].mxu0 %v697
    %v1629 = vpop.f32.mrb[0].mxu0
    %v1630 = vadd.f32 0.0, %v1629
    %v1631 = vpop.f32.mrb[0].mxu0
    %1632 = vmatprep.mubr.f32.mxu0 0.0
    %1633 = vmatmul.mubr.f32.gmra.mrb[0].mxu0 %v702
    %v1634 = vpop.f32.mrb[0].mxu0
    %v1635 = vadd.f32 0.0, %v1634
    %v1636 = vpop.f32.mrb[0].mxu0
    %1637 = vmatprep.mubr.f32.mxu0 0.0
    %1638 = vmatmul.mubr.f32.gmra.mrb[0].mxu0 %v707
    %v1639 = vpop.f32.mrb[0].mxu0
    %v1640 = vadd.f32 0.0, %v1639
    %v1641 = vpop.f32.mrb[0].mxu0
    %1642 = vmatprep.mubr.f32.mxu0 0.0
    %1643 = vmatmul.mubr.f32.gmra.mrb[0].mxu0 %v712
    %v1644 = vpop.f32.mrb[0].mxu0
    %v1645 = vadd.f32 0.0, %v1644
    %v1646 = vpop.f32.mrb[0].mxu0
    %1647 = vdwg.mxu0
    %v1648 = vadd.f32 %v1543, %v1630
    %v1649 = vadd.f32 %v1544, %v1635
    %v1650 = vadd.f32 %v1545, %v1640
    %v1651 = vadd.f32 %v1546, %v1645
    %v1652 = vadd.f32 %v1648, %v1649
    %v1653 = vadd.f32 %v1652, %v1650
    %v1654 = vadd.f32 %v1653, %v1651
    %v1655 = vrot.slane %v1654, 4
    %v1656 = vadd.f32 %v1654, %v1655
    %v1657 = vrot.slane %v1656, 2
    %v1658 = vadd.f32 %v1656, %v1657
    %v1659 = vrot.slane %v1658, 1
    %v1660 = vadd.f32 %v1658, %v1659
    %v1661 = vmul.f32 %v1660, 0.03125
    %v1662 = vmul.f32 %v1648, %v1648
    %v1663 = vmul.f32 %v1649, %v1649
    %v1664 = vmul.f32 %v1650, %v1650
    %v1665 = vmul.f32 %v1651, %v1651
    %v1666 = vadd.f32 %v1662, %v1663
    %v1667 = vadd.f32 %v1666, %v1664
    %v1668 = vadd.f32 %v1667, %v1665
    %v1669 = vrot.slane %v1668, 4
    %v1670 = vadd.f32 %v1668, %v1669
    %v1671 = vrot.slane %v1670, 2
    %v1672 = vadd.f32 %v1670, %v1671
    %v1673 = vrot.slane %v1672, 1
    %v1674 = vadd.f32 %v1672, %v1673
    %v1675 = vmul.f32 %v1674, 0.03125
    %v1676 = vmul.f32 %v1661, %v1661
    %v1677 = vsub.f32 %v1675, %v1676
    %v1678 = vmax.f32 %v1677, 0.0
    %s1679 = scalar_lea.vmem [#allocation7], 2
    %v1680 = vld [vmem:[%s1679] sm:$0x1]
    %v1681 = vadd.f32 %v1678, 1e-05
    %v1682 = vrsqrt.pop %v1681
    %v1683 = vmul.f32 %v1680, %v1682
    %s1684 = scalar_lea.vmem [#allocation7], 3
    %v1685 = vld [vmem:[%s1684] sm:$0x1]
    %v1686 = vmul.f32 %v1661, %v1683
    %v1687 = vsub.f32 %v1685, %v1686
    %v1689 = vlaneseq
    %v1690 = vshrl.u32 %v1689, 7
    %v1691 = vsub.s32 0, %v1690
    %v1692 = vrot.slane %v1683, %v1691
    %v1694 = vmul.f32 %v1648, %v1692
    %v1695 = vmul.f32 %v1649, %v1692
    %v1696 = vmul.f32 %v1650, %v1692
    %v1697 = vmul.f32 %v1651, %v1692
    %v1699 = vlaneseq
    %v1700 = vshrl.u32 %v1699, 7
    %v1701 = vsub.s32 0, %v1700
    %v1702 = vrot.slane %v1687, %v1701
    %v1704 = vadd.f32 %v1694, %v1702
    %v1705 = vadd.f32 %v1695, %v1702
    %v1706 = vadd.f32 %v1696, %v1702
    %v1707 = vadd.f32 %v1697, %v1702
    %v1708 = vmax.f32 %v1704, 0.0
    %v1709 = vmax.f32 %v1705, 0.0
    %v1710 = vmax.f32 %v1706, 0.0
    %v1711 = vmax.f32 %v1707, 0.0
    %1712 = vst [vmem:[#allocation2] sm:$0xff] %v1708
    %1713 = vst [vmem:[#allocation2 + $0x8] sm:$0xff] %v1709
    %1714 = vst [vmem:[#allocation2 + $0x10] sm:$0xff] %v1710
    %1715 = vst [vmem:[#allocation2 + $0x18] sm:$0xff] %v1711
    %v1716 = vld [vmem:[#allocation3 + $0x90] sm:$0xf]
    %v1717 = vld [vmem:[#allocation3 + $0x94] sm:$0xf]
    %v1718 = vld [vmem:[#allocation3 + $0x98] sm:$0xf]
    %v1719 = vld [vmem:[#allocation3 + $0x9c] sm:$0xf]
    %v1720 = vld [vmem:[#allocation3 + $0xa0] sm:$0xf]
    %v1721 = vld [vmem:[#allocation3 + $0xa4] sm:$0xf]
    %v1722 = vld [vmem:[#allocation3 + $0xa8] sm:$0xf]
    %v1723 = vld [vmem:[#allocation3 + $0xac] sm:$0xf]
    %v1724 = vld [vmem:[#allocation3 + $0xb0] sm:$0xf]
    %v1725 = vld [vmem:[#allocation3 + $0xb4] sm:$0xf]
    %v1726 = vunpack.c.l.bf16 %v1716
    %v1727 = vunpack.c.l.bf16 %v1717
    %v1728 = vunpack.c.l.bf16 %v1718
    %v1729 = vunpack.c.l.bf16 %v1719
    %v1730 = vunpack.c.l.bf16 %v1720
    %v1731 = vunpack.c.l.bf16 %v1721
    %v1732 = vunpack.c.l.bf16 %v1722
    %v1733 = vunpack.c.l.bf16 %v1723
    %v1734 = vunpack.c.l.bf16 %v1724
    %v1735 = vunpack.c.l.bf16 %v1725
    %v1736 = vld [vmem:[#allocation2] sm:$0xff]
    %v1737 = vld [vmem:[#allocation2 + $0x8] sm:$0xff]
    %v1738 = vld [vmem:[#allocation2 + $0x10] sm:$0xff]
    %v1739 = vld [vmem:[#allocation2 + $0x18] sm:$0xff]
    %v1740 = vld [vmem:[#allocation2 + $0x20] sm:$0xff]
    %v1741 = vld [vmem:[#allocation2 + $0x28] sm:$0xff]
    %v1742 = vld [vmem:[#allocation2 + $0x30] sm:$0xff]
    %v1743 = vld [vmem:[#allocation2 + $0x38] sm:$0xff]
    %v1744 = vld [vmem:[#allocation2 + $0x40] sm:$0xff]
    %v1745 = vld [vmem:[#allocation2 + $0x48] sm:$0xff]
    %v1746 = vld [vmem:[#allocation2 + $0x50] sm:$0xff]
    %v1747 = vld [vmem:[#allocation2 + $0x58] sm:$0xff]
    %v1748 = vld [vmem:[#allocation2 + $0x60] sm:$0xff]
    %v1749 = vld [vmem:[#allocation2 + $0x68] sm:$0xff]
    %v1750 = vld [vmem:[#allocation2 + $0x70] sm:$0xff]
    %v1751 = vld [vmem:[#allocation2 + $0x78] sm:$0xff]
    %1752 = vmatprep.subr.mxu0 0.0
    %1753 = vmatpush1.msra.mxu0 %v1736
    %1754 = vmatprep.subr.mxu0 0.0
    %1755 = vmatpush1.msra.mxu0 %v1737
    %1756 = vmatprep.subr.mxu0 0.0
    %1757 = vmatpush1.msra.mxu0 %v1738
    %1758 = vmatprep.subr.mxu0 0.0
    %1759 = vmatpush1.msra.mxu0 %v1739
    %1760 = vmatprep.subr.mxu0 0.0
    %1761 = vmatpush1.msra.mxu0 %v1740
    %1762 = vmatprep.subr.mxu0 0.0
    %1763 = vmatpush1.msra.mxu0 %v1741
    %1764 = vmatprep.subr.mxu0 0.0
    %1765 = vmatpush1.msra.mxu0 %v1742
    %1766 = vmatprep.subr.mxu0 0.0
    %1767 = vmatpush1.msra.mxu0 %v1743
    %1768 = vmatprep.subr.mxu0 0.0
    %1769 = vmatpush1.msra.mxu0 %v1744
    %1770 = vmatprep.subr.mxu0 0.0
    %1771 = vmatpush1.msra.mxu0 %v1745
    %1772 = vmatprep.subr.mxu0 0.0
    %1773 = vmatpush1.msra.mxu0 %v1746
    %1774 = vmatprep.subr.mxu0 0.0
    %1775 = vmatpush1.msra.mxu0 %v1747
    %1776 = vmatprep.subr.mxu0 0.0
    %1777 = vmatpush1.msra.mxu0 %v1748
    %1778 = vmatprep.subr.mxu0 0.0
    %1779 = vmatpush1.msra.mxu0 %v1749
    %1780 = vmatprep.subr.mxu0 0.0
    %1781 = vmatpush1.msra.mxu0 %v1750
    %1782 = vmatprep.subr.mxu0 0.0
    %1783 = vmatpush1.msra.mxu0 %v1751
    %1784 = vmatprep.subr.mxu0 0.0
    %1785 = vmatpush1.msra.mxu0 0.0
    %1786 = vmatprep.subr.mxu0 0.0
    %1787 = vmatpush1.msra.mxu0 0.0
    %1788 = vmatprep.subr.mxu0 0.0
    %1789 = vmatpush1.msra.mxu0 0.0
    %1790 = vmatprep.subr.mxu0 0.0
    %1791 = vmatpush1.msra.mxu0 0.0
    %1792 = vmatprep.subr.mxu0 0.0
    %1793 = vmatpush1.msra.mxu0 0.0
    %1794 = vmatprep.subr.mxu0 0.0
    %1795 = vmatpush1.msra.mxu0 0.0
    %1796 = vmatprep.subr.mxu0 0.0
    %1797 = vmatpush1.msra.mxu0 0.0
    %1798 = vmatprep.subr.mxu0 0.0
    %1799 = vmatpush1.msra.mxu0 0.0
    %1800 = vmatprep.subr.mxu0 0.0
    %1801 = vmatpush1.msra.mxu0 0.0
    %1802 = vmatprep.subr.mxu0 0.0
    %1803 = vmatpush1.msra.mxu0 0.0
    %1804 = vmatprep.subr.mxu0 0.0
    %1805 = vmatpush1.msra.mxu0 0.0
    %1806 = vmatprep.subr.mxu0 0.0
    %1807 = vmatpush1.msra.mxu0 0.0
    %1808 = vmatprep.subr.mxu0 0.0
    %1809 = vmatpush1.msra.mxu0 0.0
    %1810 = vmatprep.subr.mxu0 0.0
    %1811 = vmatpush1.msra.mxu0 0.0
    %1812 = vmatprep.subr.mxu0 0.0
    %1813 = vmatpush1.msra.mxu0 0.0
    %1814 = vmatprep.subr.mxu0 0.0
    %1815 = vmatpush1.msra.mxu0 0.0
    %1816 = vmatprep.mubr.f32.mxu0 0.0
    %1817 = vmatmul.mubr.f32.gmra.mrb[0].mxu0 %v1726
    %v1818 = vpop.f32.mrb[0].mxu0
    %v1819 = vadd.f32 0.0, %v1818
    %v1820 = vpop.f32.mrb[0].mxu0
    %1821 = vmatprep.mubr.f32.mxu0 0.0
    %1822 = vmatmul.mubr.f32.gmra.mrb[0].mxu0 %v1727
    %v1823 = vpop.f32.mrb[0].mxu0
    %v1824 = vadd.f32 0.0, %v1823
    %v1825 = vpop.f32.mrb[0].mxu0
    %1826 = vmatprep.mubr.f32.mxu0 0.0
    %1827 = vmatmul.mubr.f32.gmra.mrb[0].mxu0 %v1728
    %v1828 = vpop.f32.mrb[0].mxu0
    %v1829 = vadd.f32 0.0, %v1828
    %v1830 = vpop.f32.mrb[0].mxu0
    %1831 = vmatprep.mubr.f32.mxu0 0.0
    %1832 = vmatmul.mubr.f32.gmra.mrb[0].mxu0 %v1729
    %v1833 = vpop.f32.mrb[0].mxu0
    %v1834 = vadd.f32 0.0, %v1833
    %v1835 = vpop.f32.mrb[0].mxu0
    %1836 = vmatprep.mubr.f32.mxu0 0.0
    %1837 = vmatmul.mubr.f32.gmra.mrb[0].mxu0 %v1730
    %v1838 = vpop.f32.mrb[0].mxu0
    %v1839 = vadd.f32 0.0, %v1838
    %v1840 = vpop.f32.mrb[0].mxu0
    %1841 = vmatprep.mubr.f32.mxu0 0.0
    %1842 = vmatmul.mubr.f32.gmra.mrb[0].mxu0 %v1731
    %v1843 = vpop.f32.mrb[0].mxu0
    %v1844 = vadd.f32 0.0, %v1843
    %v1845 = vpop.f32.mrb[0].mxu0
    %1846 = vmatprep.mubr.f32.mxu0 0.0
    %1847 = vmatmul.mubr.f32.gmra.mrb[0].mxu0 %v1732
    %v1848 = vpop.f32.mrb[0].mxu0
    %v1849 = vadd.f32 0.0, %v1848
    %v1850 = vpop.f32.mrb[0].mxu0
    %1851 = vmatprep.mubr.f32.mxu0 0.0
    %1852 = vmatmul.mubr.f32.gmra.mrb[0].mxu0 %v1733
    %v1853 = vpop.f32.mrb[0].mxu0
    %v1854 = vadd.f32 0.0, %v1853
    %v1855 = vpop.f32.mrb[0].mxu0
    %1856 = vmatprep.mubr.f32.mxu0 0.0
    %1857 = vmatmul.mubr.f32.gmra.mrb[0].mxu0 %v1734
    %v1858 = vpop.f32.mrb[0].mxu0
    %v1859 = vadd.f32 0.0, %v1858
    %v1860 = vpop.f32.mrb[0].mxu0
    %1861 = vmatprep.mubr.f32.mxu0 0.0
    %1862 = vmatmul.mubr.f32.gmra.mrb[0].mxu0 %v1735
    %v1863 = vpop.f32.mrb[0].mxu0
    %v1864 = vpop.f32.mrb[0].mxu0
    %1865 = vdwg.mxu0
    %v1866 = vld [vmem:[#allocation5 + $0x500] sm:$0xff]
    %v1867 = vld [vmem:[#allocation5 + $0x508] sm:$0xff]
    %v1868 = vld [vmem:[#allocation5 + $0x510] sm:$0xff]
    %v1869 = vld [vmem:[#allocation5 + $0x518] sm:$0xff]
    %v1870 = vld [vmem:[#allocation5 + $0x520] sm:$0xff]
    %v1871 = vld [vmem:[#allocation5 + $0x528] sm:$0xff]
    %v1872 = vld [vmem:[#allocation5 + $0x530] sm:$0xff]
    %v1873 = vld [vmem:[#allocation5 + $0x538] sm:$0xff]
    %v1874 = vld [vmem:[#allocation5 + $0x540] sm:$0xff]
    %v1875 = vld [vmem:[#allocation5 + $0x548] sm:$0xff]
    %v1876 = vld [vmem:[#allocation5 + $0x550] sm:$0xff]
    %v1877 = vld [vmem:[#allocation5 + $0x558] sm:$0xff]
    %v1878 = vld [vmem:[#allocation5 + $0x560] sm:$0xff]
    %v1879 = vld [vmem:[#allocation5 + $0x568] sm:$0xff]
    %v1880 = vld [vmem:[#allocation5 + $0x570] sm:$0xff]
    %v1881 = vld [vmem:[#allocation5 + $0x578] sm:$0xff]
    %v1882 = vld [vmem:[#allocation5 + $0x580] sm:$0xff]
    %v1883 = vld [vmem:[#allocation5 + $0x588] sm:$0xff]
    %v1884 = vld [vmem:[#allocation5 + $0x590] sm:$0xff]
    %v1885 = vld [vmem:[#allocation5 + $0x598] sm:$0xff]
    %v1886 = vld [vmem:[#allocation5 + $0x5a0] sm:$0xff]
    %v1887 = vld [vmem:[#allocation5 + $0x5a8] sm:$0xff]
    %v1888 = vld [vmem:[#allocation5 + $0x5b0] sm:$0xff]
    %v1889 = vld [vmem:[#allocation5 + $0x5b8] sm:$0xff]
    %v1890 = vld [vmem:[#allocation5 + $0x5c0] sm:$0xff]
    %v1891 = vld [vmem:[#allocation5 + $0x5c8] sm:$0xff]
    %v1892 = vld [vmem:[#allocation5 + $0x5d0] sm:$0xff]
    %v1893 = vld [vmem:[#allocation5 + $0x5d8] sm:$0xff]
    %v1894 = vld [vmem:[#allocation5 + $0x5e0] sm:$0xff]
    %v1895 = vld [vmem:[#allocation5 + $0x5e8] sm:$0xff]
    %v1896 = vld [vmem:[#allocation5 + $0x5f0] sm:$0xff]
    %v1897 = vld [vmem:[#allocation5 + $0x5f8] sm:$0xff]
    %1898 = vmatprep.subr.mxu0 0.0
    %1899 = vmatpush1.msra.mxu0 %v1882
    %1900 = vmatprep.subr.mxu0 0.0
    %1901 = vmatpush1.msra.mxu0 %v1883
    %1902 = vmatprep.subr.mxu0 0.0
    %1903 = vmatpush1.msra.mxu0 %v1884
    %1904 = vmatprep.subr.mxu0 0.0
    %1905 = vmatpush1.msra.mxu0 %v1885
    %1906 = vmatprep.subr.mxu0 0.0
    %1907 = vmatpush1.msra.mxu0 %v1886
    %1908 = vmatprep.subr.mxu0 0.0
    %1909 = vmatpush1.msra.mxu0 %v1887
    %1910 = vmatprep.subr.mxu0 0.0
    %1911 = vmatpush1.msra.mxu0 %v1888
    %1912 = vmatprep.subr.mxu0 0.0
    %1913 = vmatpush1.msra.mxu0 %v1889
    %1914 = vmatprep.subr.mxu0 0.0
    %1915 = vmatpush1.msra.mxu0 %v1890
    %1916 = vmatprep.subr.mxu0 0.0
    %1917 = vmatpush1.msra.mxu0 %v1891
    %1918 = vmatprep.subr.mxu0 0.0
    %1919 = vmatpush1.msra.mxu0 %v1892
    %1920 = vmatprep.subr.mxu0 0.0
    %1921 = vmatpush1.msra.mxu0 %v1893
    %1922 = vmatprep.subr.mxu0 0.0
    %1923 = vmatpush1.msra.mxu0 %v1894
    %1924 = vmatprep.subr.mxu0 0.0
    %1925 = vmatpush1.msra.mxu0 %v1895
    %1926 = vmatprep.subr.mxu0 0.0
    %1927 = vmatpush1.msra.mxu0 %v1896
    %1928 = vmatprep.subr.mxu0 0.0
    %1929 = vmatpush1.msra.mxu0 %v1897
    %1930 = vmatprep.subr.mxu0 0.0
    %1931 = vmatpush1.msra.mxu0 0.0
    %1932 = vmatprep.subr.mxu0 0.0
    %1933 = vmatpush1.msra.mxu0 0.0
    %1934 = vmatprep.subr.mxu0 0.0
    %1935 = vmatpush1.msra.mxu0 0.0
    %1936 = vmatprep.subr.mxu0 0.0
    %1937 = vmatpush1.msra.mxu0 0.0
    %1938 = vmatprep.subr.mxu0 0.0
    %1939 = vmatpush1.msra.mxu0 0.0
    %1940 = vmatprep.subr.mxu0 0.0
    %1941 = vmatpush1.msra.mxu0 0.0
    %1942 = vmatprep.subr.mxu0 0.0
    %1943 = vmatpush1.msra.mxu0 0.0
    %1944 = vmatprep.subr.mxu0 0.0
    %1945 = vmatpush1.msra.mxu0 0.0
    %1946 = vmatprep.subr.mxu0 0.0
    %1947 = vmatpush1.msra.mxu0 0.0
    %1948 = vmatprep.subr.mxu0 0.0
    %1949 = vmatpush1.msra.mxu0 0.0
    %1950 = vmatprep.subr.mxu0 0.0
    %1951 = vmatpush1.msra.mxu0 0.0
    %1952 = vmatprep.subr.mxu0 0.0
    %1953 = vmatpush1.msra.mxu0 0.0
    %1954 = vmatprep.subr.mxu0 0.0
    %1955 = vmatpush1.msra.mxu0 0.0
    %1956 = vmatprep.subr.mxu0 0.0
    %1957 = vmatpush1.msra.mxu0 0.0
    %1958 = vmatprep.subr.mxu0 0.0
    %1959 = vmatpush1.msra.mxu0 0.0
    %1960 = vmatprep.subr.mxu0 0.0
    %1961 = vmatpush1.msra.mxu0 0.0
    %1962 = vmatprep.mubr.f32.mxu0 0.0
    %1963 = vmatmul.mubr.f32.gmra.mrb[0].mxu0 %v1824
    %v1964 = vpop.f32.mrb[0].mxu0
    %v1965 = vadd.f32 0.0, %v1964
    %v1966 = vpop.f32.mrb[0].mxu0
    %1967 = vdwg.mxu0
    %1968 = vmatprep.subr.mxu0 0.0
    %1969 = vmatpush1.msra.mxu0 %v1866
    %1970 = vmatprep.subr.mxu0 0.0
    %1971 = vmatpush1.msra.mxu0 %v1867
    %1972 = vmatprep.subr.mxu0 0.0
    %1973 = vmatpush1.msra.mxu0 %v1868
    %1974 = vmatprep.subr.mxu0 0.0
    %1975 = vmatpush1.msra.mxu0 %v1869
    %1976 = vmatprep.subr.mxu0 0.0
    %1977 = vmatpush1.msra.mxu0 %v1870
    %1978 = vmatprep.subr.mxu0 0.0
    %1979 = vmatpush1.msra.mxu0 %v1871
    %1980 = vmatprep.subr.mxu0 0.0
    %1981 = vmatpush1.msra.mxu0 %v1872
    %1982 = vmatprep.subr.mxu0 0.0
    %1983 = vmatpush1.msra.mxu0 %v1873
    %1984 = vmatprep.subr.mxu0 0.0
    %1985 = vmatpush1.msra.mxu0 %v1874
    %1986 = vmatprep.subr.mxu0 0.0
    %1987 = vmatpush1.msra.mxu0 %v1875
    %1988 = vmatprep.subr.mxu0 0.0
    %1989 = vmatpush1.msra.mxu0 %v1876
    %1990 = vmatprep.subr.mxu0 0.0
    %1991 = vmatpush1.msra.mxu0 %v1877
    %1992 = vmatprep.subr.mxu0 0.0
    %1993 = vmatpush1.msra.mxu0 %v1878
    %1994 = vmatprep.subr.mxu0 0.0
    %1995 = vmatpush1.msra.mxu0 %v1879
    %1996 = vmatprep.subr.mxu0 0.0
    %1997 = vmatpush1.msra.mxu0 %v1880
    %1998 = vmatprep.subr.mxu0 0.0
    %1999 = vmatpush1.msra.mxu0 %v1881
    %2000 = vmatprep.subr.mxu0 0.0
    %2001 = vmatpush1.msra.mxu0 0.0
    %2002 = vmatprep.subr.mxu0 0.0
    %2003 = vmatpush1.msra.mxu0 0.0
    %2004 = vmatprep.subr.mxu0 0.0
    %2005 = vmatpush1.msra.mxu0 0.0
    %2006 = vmatprep.subr.mxu0 0.0
    %2007 = vmatpush1.msra.mxu0 0.0
    %2008 = vmatprep.subr.mxu0 0.0
    %2009 = vmatpush1.msra.mxu0 0.0
    %2010 = vmatprep.subr.mxu0 0.0
    %2011 = vmatpush1.msra.mxu0 0.0
    %2012 = vmatprep.subr.mxu0 0.0
    %2013 = vmatpush1.msra.mxu0 0.0
    %2014 = vmatprep.subr.mxu0 0.0
    %2015 = vmatpush1.msra.mxu0 0.0
    %2016 = vmatprep.subr.mxu0 0.0
    %2017 = vmatpush1.msra.mxu0 0.0
    %2018 = vmatprep.subr.mxu0 0.0
    %2019 = vmatpush1.msra.mxu0 0.0
    %2020 = vmatprep.subr.mxu0 0.0
    %2021 = vmatpush1.msra.mxu0 0.0
    %2022 = vmatprep.subr.mxu0 0.0
    %2023 = vmatpush1.msra.mxu0 0.0
    %2024 = vmatprep.subr.mxu0 0.0
    %2025 = vmatpush1.msra.mxu0 0.0
    %2026 = vmatprep.subr.mxu0 0.0
    %2027 = vmatpush1.msra.mxu0 0.0
    %2028 = vmatprep.subr.mxu0 0.0
    %2029 = vmatpush1.msra.mxu0 0.0
    %2030 = vmatprep.subr.mxu0 0.0
    %2031 = vmatpush1.msra.mxu0 0.0
    %2032 = vmatprep.mubr.f32.mxu0 0.0
    %2033 = vmatmul.mubr.f32.gmra.mrb[0].mxu0 %v1819
    %v2034 = vpop.f32.mrb[0].mxu0
    %v2035 = vadd.f32 %v1965, %v2034
    %v2036 = vpop.f32.mrb[0].mxu0
    %2037 = vdwg.mxu0
    %v2038 = vld [vmem:[#allocation5 + $0x600] sm:$0xff]
    %v2039 = vld [vmem:[#allocation5 + $0x608] sm:$0xff]
    %v2040 = vld [vmem:[#allocation5 + $0x610] sm:$0xff]
    %v2041 = vld [vmem:[#allocation5 + $0x618] sm:$0xff]
    %v2042 = vld [vmem:[#allocation5 + $0x620] sm:$0xff]
    %v2043 = vld [vmem:[#allocation5 + $0x628] sm:$0xff]
    %v2044 = vld [vmem:[#allocation5 + $0x630] sm:$0xff]
    %v2045 = vld [vmem:[#allocation5 + $0x638] sm:$0xff]
    %v2046 = vld [vmem:[#allocation5 + $0x640] sm:$0xff]
    %v2047 = vld [vmem:[#allocation5 + $0x648] sm:$0xff]
    %v2048 = vld [vmem:[#allocation5 + $0x650] sm:$0xff]
    %v2049 = vld [vmem:[#allocation5 + $0x658] sm:$0xff]
    %v2050 = vld [vmem:[#allocation5 + $0x660] sm:$0xff]
    %v2051 = vld [vmem:[#allocation5 + $0x668] sm:$0xff]
    %v2052 = vld [vmem:[#allocation5 + $0x670] sm:$0xff]
    %v2053 = vld [vmem:[#allocation5 + $0x678] sm:$0xff]
    %2054 = vmatprep.subr.mxu0 0.0
    %2055 = vmatpush1.msra.mxu0 %v2038
    %2056 = vmatprep.subr.mxu0 0.0
    %2057 = vmatpush1.msra.mxu0 %v2039
    %2058 = vmatprep.subr.mxu0 0.0
    %2059 = vmatpush1.msra.mxu0 %v2040
    %2060 = vmatprep.subr.mxu0 0.0
    %2061 = vmatpush1.msra.mxu0 %v2041
    %2062 = vmatprep.subr.mxu0 0.0
    %2063 = vmatpush1.msra.mxu0 %v2042
    %2064 = vmatprep.subr.mxu0 0.0
    %2065 = vmatpush1.msra.mxu0 %v2043
    %2066 = vmatprep.subr.mxu0 0.0
    %2067 = vmatpush1.msra.mxu0 %v2044
    %2068 = vmatprep.subr.mxu0 0.0
    %2069 = vmatpush1.msra.mxu0 %v2045
    %2070 = vmatprep.subr.mxu0 0.0
    %2071 = vmatpush1.msra.mxu0 %v2046
    %2072 = vmatprep.subr.mxu0 0.0
    %2073 = vmatpush1.msra.mxu0 %v2047
    %2074 = vmatprep.subr.mxu0 0.0
    %2075 = vmatpush1.msra.mxu0 %v2048
    %2076 = vmatprep.subr.mxu0 0.0
    %2077 = vmatpush1.msra.mxu0 %v2049
    %2078 = vmatprep.subr.mxu0 0.0
    %2079 = vmatpush1.msra.mxu0 %v2050
    %2080 = vmatprep.subr.mxu0 0.0
    %2081 = vmatpush1.msra.mxu0 %v2051
    %2082 = vmatprep.subr.mxu0 0.0
    %2083 = vmatpush1.msra.mxu0 %v2052
    %2084 = vmatprep.subr.mxu0 0.0
    %2085 = vmatpush1.msra.mxu0 %v2053
    %2086 = vmatprep.subr.mxu0 0.0
    %2087 = vmatpush1.msra.mxu0 0.0
    %2088 = vmatprep.subr.mxu0 0.0
    %2089 = vmatpush1.msra.mxu0 0.0
    %2090 = vmatprep.subr.mxu0 0.0
    %2091 = vmatpush1.msra.mxu0 0.0
    %2092 = vmatprep.subr.mxu0 0.0
    %2093 = vmatpush1.msra.mxu0 0.0
    %2094 = vmatprep.subr.mxu0 0.0
    %2095 = vmatpush1.msra.mxu0 0.0
    %2096 = vmatprep.subr.mxu0 0.0
    %2097 = vmatpush1.msra.mxu0 0.0
    %2098 = vmatprep.subr.mxu0 0.0
    %2099 = vmatpush1.msra.mxu0 0.0
    %2100 = vmatprep.subr.mxu0 0.0
    %2101 = vmatpush1.msra.mxu0 0.0
    %2102 = vmatprep.subr.mxu0 0.0
    %2103 = vmatpush1.msra.mxu0 0.0
    %2104 = vmatprep.subr.mxu0 0.0
    %2105 = vmatpush1.msra.mxu0 0.0
    %2106 = vmatprep.subr.mxu0 0.0
    %2107 = vmatpush1.msra.mxu0 0.0
    %2108 = vmatprep.subr.mxu0 0.0
    %2109 = vmatpush1.msra.mxu0 0.0
    %2110 = vmatprep.subr.mxu0 0.0
    %2111 = vmatpush1.msra.mxu0 0.0
    %2112 = vmatprep.subr.mxu0 0.0
    %2113 = vmatpush1.msra.mxu0 0.0
    %2114 = vmatprep.subr.mxu0 0.0
    %2115 = vmatpush1.msra.mxu0 0.0
    %2116 = vmatprep.subr.mxu0 0.0
    %2117 = vmatpush1.msra.mxu0 0.0
    %2118 = vmatprep.mubr.f32.mxu0 0.0
    %2119 = vmatmul.mubr.f32.gmra.mrb[0].mxu0 %v1829
    %v2120 = vpop.f32.mrb[0].mxu0
    %v2121 = vadd.f32 0.0, %v2120
    %v2122 = vpop.f32.mrb[0].mxu0
    %2123 = vdwg.mxu0
    %v2124 = vadd.f32 %v2035, %v2121
    %v2125 = vld [vmem:[#allocation5 + $0x680] sm:$0xff]
    %v2126 = vld [vmem:[#allocation5 + $0x688] sm:$0xff]
    %v2127 = vld [vmem:[#allocation5 + $0x690] sm:$0xff]
    %v2128 = vld [vmem:[#allocation5 + $0x698] sm:$0xff]
    %v2129 = vld [vmem:[#allocation5 + $0x6a0] sm:$0xff]
    %v2130 = vld [vmem:[#allocation5 + $0x6a8] sm:$0xff]
    %v2131 = vld [vmem:[#allocation5 + $0x6b0] sm:$0xff]
    %v2132 = vld [vmem:[#allocation5 + $0x6b8] sm:$0xff]
    %v2133 = vld [vmem:[#allocation5 + $0x6c0] sm:$0xff]
    %v2134 = vld [vmem:[#allocation5 + $0x6c8] sm:$0xff]
    %v2135 = vld [vmem:[#allocation5 + $0x6d0] sm:$0xff]
    %v2136 = vld [vmem:[#allocation5 + $0x6d8] sm:$0xff]
    %v2137 = vld [vmem:[#allocation5 + $0x6e0] sm:$0xff]
    %v2138 = vld [vmem:[#allocation5 + $0x6e8] sm:$0xff]
    %v2139 = vld [vmem:[#allocation5 + $0x6f0] sm:$0xff]
    %v2140 = vld [vmem:[#allocation5 + $0x6f8] sm:$0xff]
    %2141 = vmatprep.subr.mxu0 0.0
    %2142 = vmatpush1.msra.mxu0 %v2125
    %2143 = vmatprep.subr.mxu0 0.0
    %2144 = vmatpush1.msra.mxu0 %v2126
    %2145 = vmatprep.subr.mxu0 0.0
    %2146 = vmatpush1.msra.mxu0 %v2127
    %2147 = vmatprep.subr.mxu0 0.0
    %2148 = vmatpush1.msra.mxu0 %v2128
    %2149 = vmatprep.subr.mxu0 0.0
    %2150 = vmatpush1.msra.mxu0 %v2129
    %2151 = vmatprep.subr.mxu0 0.0
    %2152 = vmatpush1.msra.mxu0 %v2130
    %2153 = vmatprep.subr.mxu0 0.0
    %2154 = vmatpush1.msra.mxu0 %v2131
    %2155 = vmatprep.subr.mxu0 0.0
    %2156 = vmatpush1.msra.mxu0 %v2132
    %2157 = vmatprep.subr.mxu0 0.0
    %2158 = vmatpush1.msra.mxu0 %v2133
    %2159 = vmatprep.subr.mxu0 0.0
    %2160 = vmatpush1.msra.mxu0 %v2134
    %2161 = vmatprep.subr.mxu0 0.0
    %2162 = vmatpush1.msra.mxu0 %v2135
    %2163 = vmatprep.subr.mxu0 0.0
    %2164 = vmatpush1.msra.mxu0 %v2136
    %2165 = vmatprep.subr.mxu0 0.0
    %2166 = vmatpush1.msra.mxu0 %v2137
    %2167 = vmatprep.subr.mxu0 0.0
    %2168 = vmatpush1.msra.mxu0 %v2138
    %2169 = vmatprep.subr.mxu0 0.0
    %2170 = vmatpush1.msra.mxu0 %v2139
    %2171 = vmatprep.subr.mxu0 0.0
    %2172 = vmatpush1.msra.mxu0 %v2140
    %2173 = vmatprep.subr.mxu0 0.0
    %2174 = vmatpush1.msra.mxu0 0.0
    %2175 = vmatprep.subr.mxu0 0.0
    %2176 = vmatpush1.msra.mxu0 0.0
    %2177 = vmatprep.subr.mxu0 0.0
    %2178 = vmatpush1.msra.mxu0 0.0
    %2179 = vmatprep.subr.mxu0 0.0
    %2180 = vmatpush1.msra.mxu0 0.0
    %2181 = vmatprep.subr.mxu0 0.0
    %2182 = vmatpush1.msra.mxu0 0.0
    %2183 = vmatprep.subr.mxu0 0.0
    %2184 = vmatpush1.msra.mxu0 0.0
    %2185 = vmatprep.subr.mxu0 0.0
    %2186 = vmatpush1.msra.mxu0 0.0
    %2187 = vmatprep.subr.mxu0 0.0
    %2188 = vmatpush1.msra.mxu0 0.0
    %2189 = vmatprep.subr.mxu0 0.0
    %2190 = vmatpush1.msra.mxu0 0.0
    %2191 = vmatprep.subr.mxu0 0.0
    %2192 = vmatpush1.msra.mxu0 0.0
    %2193 = vmatprep.subr.mxu0 0.0
    %2194 = vmatpush1.msra.mxu0 0.0
    %2195 = vmatprep.subr.mxu0 0.0
    %2196 = vmatpush1.msra.mxu0 0.0
    %2197 = vmatprep.subr.mxu0 0.0
    %2198 = vmatpush1.msra.mxu0 0.0
    %2199 = vmatprep.subr.mxu0 0.0
    %2200 = vmatpush1.msra.mxu0 0.0
    %2201 = vmatprep.subr.mxu0 0.0
    %2202 = vmatpush1.msra.mxu0 0.0
    %2203 = vmatprep.subr.mxu0 0.0
    %2204 = vmatpush1.msra.mxu0 0.0
    %2205 = vmatprep.mubr.f32.mxu0 0.0
    %2206 = vmatmul.mubr.f32.gmra.mrb[0].mxu0 %v1834
    %v2207 = vpop.f32.mrb[0].mxu0
    %v2208 = vadd.f32 0.0, %v2207
    %v2209 = vpop.f32.mrb[0].mxu0
    %2210 = vdwg.mxu0
    %v2211 = vadd.f32 %v2124, %v2208
    %v2212 = vld [vmem:[#allocation5 + $0x700] sm:$0xff]
    %v2213 = vld [vmem:[#allocation5 + $0x708] sm:$0xff]
    %v2214 = vld [vmem:[#allocation5 + $0x710] sm:$0xff]
    %v2215 = vld [vmem:[#allocation5 + $0x718] sm:$0xff]
    %v2216 = vld [vmem:[#allocation5 + $0x720] sm:$0xff]
    %v2217 = vld [vmem:[#allocation5 + $0x728] sm:$0xff]
    %v2218 = vld [vmem:[#allocation5 + $0x730] sm:$0xff]
    %v2219 = vld [vmem:[#allocation5 + $0x738] sm:$0xff]
    %v2220 = vld [vmem:[#allocation5 + $0x740] sm:$0xff]
    %v2221 = vld [vmem:[#allocation5 + $0x748] sm:$0xff]
    %v2222 = vld [vmem:[#allocation5 + $0x750] sm:$0xff]
    %v2223 = vld [vmem:[#allocation5 + $0x758] sm:$0xff]
    %v2224 = vld [vmem:[#allocation5 + $0x760] sm:$0xff]
    %v2225 = vld [vmem:[#allocation5 + $0x768] sm:$0xff]
    %v2226 = vld [vmem:[#allocation5 + $0x770] sm:$0xff]
    %v2227 = vld [vmem:[#allocation5 + $0x778] sm:$0xff]
    %2228 = vmatprep.subr.mxu0 0.0
    %2229 = vmatpush1.msra.mxu0 %v2212
    %2230 = vmatprep.subr.mxu0 0.0
    %2231 = vmatpush1.msra.mxu0 %v2213
    %2232 = vmatprep.subr.mxu0 0.0
    %2233 = vmatpush1.msra.mxu0 %v2214
    %2234 = vmatprep.subr.mxu0 0.0
    %2235 = vmatpush1.msra.mxu0 %v2215
    %2236 = vmatprep.subr.mxu0 0.0
    %2237 = vmatpush1.msra.mxu0 %v2216
    %2238 = vmatprep.subr.mxu0 0.0
    %2239 = vmatpush1.msra.mxu0 %v2217
    %2240 = vmatprep.subr.mxu0 0.0
    %2241 = vmatpush1.msra.mxu0 %v2218
    %2242 = vmatprep.subr.mxu0 0.0
    %2243 = vmatpush1.msra.mxu0 %v2219
    %2244 = vmatprep.subr.mxu0 0.0
    %2245 = vmatpush1.msra.mxu0 %v2220
    %2246 = vmatprep.subr.mxu0 0.0
    %2247 = vmatpush1.msra.mxu0 %v2221
    %2248 = vmatprep.subr.mxu0 0.0
    %2249 = vmatpush1.msra.mxu0 %v2222
    %2250 = vmatprep.subr.mxu0 0.0
    %2251 = vmatpush1.msra.mxu0 %v2223
    %2252 = vmatprep.subr.mxu0 0.0
    %2253 = vmatpush1.msra.mxu0 %v2224
    %2254 = vmatprep.subr.mxu0 0.0
    %2255 = vmatpush1.msra.mxu0 %v2225
    %2256 = vmatprep.subr.mxu0 0.0
    %2257 = vmatpush1.msra.mxu0 %v2226
    %2258 = vmatprep.subr.mxu0 0.0
    %2259 = vmatpush1.msra.mxu0 %v2227
    %2260 = vmatprep.subr.mxu0 0.0
    %2261 = vmatpush1.msra.mxu0 0.0
    %2262 = vmatprep.subr.mxu0 0.0
    %2263 = vmatpush1.msra.mxu0 0.0
    %2264 = vmatprep.subr.mxu0 0.0
    %2265 = vmatpush1.msra.mxu0 0.0
    %2266 = vmatprep.subr.mxu0 0.0
    %2267 = vmatpush1.msra.mxu0 0.0
    %2268 = vmatprep.subr.mxu0 0.0
    %2269 = vmatpush1.msra.mxu0 0.0
    %2270 = vmatprep.subr.mxu0 0.0
    %2271 = vmatpush1.msra.mxu0 0.0
    %2272 = vmatprep.subr.mxu0 0.0
    %2273 = vmatpush1.msra.mxu0 0.0
    %2274 = vmatprep.subr.mxu0 0.0
    %2275 = vmatpush1.msra.mxu0 0.0
    %2276 = vmatprep.subr.mxu0 0.0
    %2277 = vmatpush1.msra.mxu0 0.0
    %2278 = vmatprep.subr.mxu0 0.0
    %2279 = vmatpush1.msra.mxu0 0.0
    %2280 = vmatprep.subr.mxu0 0.0
    %2281 = vmatpush1.msra.mxu0 0.0
    %2282 = vmatprep.subr.mxu0 0.0
    %2283 = vmatpush1.msra.mxu0 0.0
    %2284 = vmatprep.subr.mxu0 0.0
    %2285 = vmatpush1.msra.mxu0 0.0
    %2286 = vmatprep.subr.mxu0 0.0
    %2287 = vmatpush1.msra.mxu0 0.0
    %2288 = vmatprep.subr.mxu0 0.0
    %2289 = vmatpush1.msra.mxu0 0.0
    %2290 = vmatprep.subr.mxu0 0.0
    %2291 = vmatpush1.msra.mxu0 0.0
    %2292 = vmatprep.mubr.f32.mxu0 0.0
    %2293 = vmatmul.mubr.f32.gmra.mrb[0].mxu0 %v1839
    %v2294 = vpop.f32.mrb[0].mxu0
    %v2295 = vadd.f32 0.0, %v2294
    %v2296 = vpop.f32.mrb[0].mxu0
    %2297 = vdwg.mxu0
    %v2298 = vadd.f32 %v2211, %v2295
    %v2299 = vld [vmem:[#allocation5 + $0x780] sm:$0xff]
    %v2300 = vld [vmem:[#allocation5 + $0x788] sm:$0xff]
    %v2301 = vld [vmem:[#allocation5 + $0x790] sm:$0xff]
    %v2302 = vld [vmem:[#allocation5 + $0x798] sm:$0xff]
    %v2303 = vld [vmem:[#allocation5 + $0x7a0] sm:$0xff]
    %v2304 = vld [vmem:[#allocation5 + $0x7a8] sm:$0xff]
    %v2305 = vld [vmem:[#allocation5 + $0x7b0] sm:$0xff]
    %v2306 = vld [vmem:[#allocation5 + $0x7b8] sm:$0xff]
    %v2307 = vld [vmem:[#allocation5 + $0x7c0] sm:$0xff]
    %v2308 = vld [vmem:[#allocation5 + $0x7c8] sm:$0xff]
    %v2309 = vld [vmem:[#allocation5 + $0x7d0] sm:$0xff]
    %v2310 = vld [vmem:[#allocation5 + $0x7d8] sm:$0xff]
    %v2311 = vld [vmem:[#allocation5 + $0x7e0] sm:$0xff]
    %v2312 = vld [vmem:[#allocation5 + $0x7e8] sm:$0xff]
    %v2313 = vld [vmem:[#allocation5 + $0x7f0] sm:$0xff]
    %v2314 = vld [vmem:[#allocation5 + $0x7f8] sm:$0xff]
    %2315 = vmatprep.subr.mxu0 0.0
    %2316 = vmatpush1.msra.mxu0 %v2299
    %2317 = vmatprep.subr.mxu0 0.0
    %2318 = vmatpush1.msra.mxu0 %v2300
    %2319 = vmatprep.subr.mxu0 0.0
    %2320 = vmatpush1.msra.mxu0 %v2301
    %2321 = vmatprep.subr.mxu0 0.0
    %2322 = vmatpush1.msra.mxu0 %v2302
    %2323 = vmatprep.subr.mxu0 0.0
    %2324 = vmatpush1.msra.mxu0 %v2303
    %2325 = vmatprep.subr.mxu0 0.0
    %2326 = vmatpush1.msra.mxu0 %v2304
    %2327 = vmatprep.subr.mxu0 0.0
    %2328 = vmatpush1.msra.mxu0 %v2305
    %2329 = vmatprep.subr.mxu0 0.0
    %2330 = vmatpush1.msra.mxu0 %v2306
    %2331 = vmatprep.subr.mxu0 0.0
    %2332 = vmatpush1.msra.mxu0 %v2307
    %2333 = vmatprep.subr.mxu0 0.0
    %2334 = vmatpush1.msra.mxu0 %v2308
    %2335 = vmatprep.subr.mxu0 0.0
    %2336 = vmatpush1.msra.mxu0 %v2309
    %2337 = vmatprep.subr.mxu0 0.0
    %2338 = vmatpush1.msra.mxu0 %v2310
    %2339 = vmatprep.subr.mxu0 0.0
    %2340 = vmatpush1.msra.mxu0 %v2311
    %2341 = vmatprep.subr.mxu0 0.0
    %2342 = vmatpush1.msra.mxu0 %v2312
    %2343 = vmatprep.subr.mxu0 0.0
    %2344 = vmatpush1.msra.mxu0 %v2313
    %2345 = vmatprep.subr.mxu0 0.0
    %2346 = vmatpush1.msra.mxu0 %v2314
    %2347 = vmatprep.subr.mxu0 0.0
    %2348 = vmatpush1.msra.mxu0 0.0
    %2349 = vmatprep.subr.mxu0 0.0
    %2350 = vmatpush1.msra.mxu0 0.0
    %2351 = vmatprep.subr.mxu0 0.0
    %2352 = vmatpush1.msra.mxu0 0.0
    %2353 = vmatprep.subr.mxu0 0.0
    %2354 = vmatpush1.msra.mxu0 0.0
    %2355 = vmatprep.subr.mxu0 0.0
    %2356 = vmatpush1.msra.mxu0 0.0
    %2357 = vmatprep.subr.mxu0 0.0
    %2358 = vmatpush1.msra.mxu0 0.0
    %2359 = vmatprep.subr.mxu0 0.0
    %2360 = vmatpush1.msra.mxu0 0.0
    %2361 = vmatprep.subr.mxu0 0.0
    %2362 = vmatpush1.msra.mxu0 0.0
    %2363 = vmatprep.subr.mxu0 0.0
    %2364 = vmatpush1.msra.mxu0 0.0
    %2365 = vmatprep.subr.mxu0 0.0
    %2366 = vmatpush1.msra.mxu0 0.0
    %2367 = vmatprep.subr.mxu0 0.0
    %2368 = vmatpush1.msra.mxu0 0.0
    %2369 = vmatprep.subr.mxu0 0.0
    %2370 = vmatpush1.msra.mxu0 0.0
    %2371 = vmatprep.subr.mxu0 0.0
    %2372 = vmatpush1.msra.mxu0 0.0
    %2373 = vmatprep.subr.mxu0 0.0
    %2374 = vmatpush1.msra.mxu0 0.0
    %2375 = vmatprep.subr.mxu0 0.0
    %2376 = vmatpush1.msra.mxu0 0.0
    %2377 = vmatprep.subr.mxu0 0.0
    %2378 = vmatpush1.msra.mxu0 0.0
    %2379 = vmatprep.mubr.f32.mxu0 0.0
    %2380 = vmatmul.mubr.f32.gmra.mrb[0].mxu0 %v1844
    %v2381 = vpop.f32.mrb[0].mxu0
    %v2382 = vadd.f32 0.0, %v2381
    %v2383 = vpop.f32.mrb[0].mxu0
    %2384 = vdwg.mxu0
    %v2385 = vadd.f32 %v2298, %v2382
    %v2386 = vld [vmem:[#allocation5 + $0x800] sm:$0xff]
    %v2387 = vld [vmem:[#allocation5 + $0x808] sm:$0xff]
    %v2388 = vld [vmem:[#allocation5 + $0x810] sm:$0xff]
    %v2389 = vld [vmem:[#allocation5 + $0x818] sm:$0xff]
    %v2390 = vld [vmem:[#allocation5 + $0x820] sm:$0xff]
    %v2391 = vld [vmem:[#allocation5 + $0x828] sm:$0xff]
    %v2392 = vld [vmem:[#allocation5 + $0x830] sm:$0xff]
    %v2393 = vld [vmem:[#allocation5 + $0x838] sm:$0xff]
    %v2394 = vld [vmem:[#allocation5 + $0x840] sm:$0xff]
    %v2395 = vld [vmem:[#allocation5 + $0x848] sm:$0xff]
    %v2396 = vld [vmem:[#allocation5 + $0x850] sm:$0xff]
    %v2397 = vld [vmem:[#allocation5 + $0x858] sm:$0xff]
    %v2398 = vld [vmem:[#allocation5 + $0x860] sm:$0xff]
    %v2399 = vld [vmem:[#allocation5 + $0x868] sm:$0xff]
    %v2400 = vld [vmem:[#allocation5 + $0x870] sm:$0xff]
    %v2401 = vld [vmem:[#allocation5 + $0x878] sm:$0xff]
    %2402 = vmatprep.subr.mxu0 0.0
    %2403 = vmatpush1.msra.mxu0 %v2386
    %2404 = vmatprep.subr.mxu0 0.0
    %2405 = vmatpush1.msra.mxu0 %v2387
    %2406 = vmatprep.subr.mxu0 0.0
    %2407 = vmatpush1.msra.mxu0 %v2388
    %2408 = vmatprep.subr.mxu0 0.0
    %2409 = vmatpush1.msra.mxu0 %v2389
    %2410 = vmatprep.subr.mxu0 0.0
    %2411 = vmatpush1.msra.mxu0 %v2390
    %2412 = vmatprep.subr.mxu0 0.0
    %2413 = vmatpush1.msra.mxu0 %v2391
    %2414 = vmatprep.subr.mxu0 0.0
    %2415 = vmatpush1.msra.mxu0 %v2392
    %2416 = vmatprep.subr.mxu0 0.0
    %2417 = vmatpush1.msra.mxu0 %v2393
    %2418 = vmatprep.subr.mxu0 0.0
    %2419 = vmatpush1.msra.mxu0 %v2394
    %2420 = vmatprep.subr.mxu0 0.0
    %2421 = vmatpush1.msra.mxu0 %v2395
    %2422 = vmatprep.subr.mxu0 0.0
    %2423 = vmatpush1.msra.mxu0 %v2396
    %2424 = vmatprep.subr.mxu0 0.0
    %2425 = vmatpush1.msra.mxu0 %v2397
    %2426 = vmatprep.subr.mxu0 0.0
    %2427 = vmatpush1.msra.mxu0 %v2398
    %2428 = vmatprep.subr.mxu0 0.0
    %2429 = vmatpush1.msra.mxu0 %v2399
    %2430 = vmatprep.subr.mxu0 0.0
    %2431 = vmatpush1.msra.mxu0 %v2400
    %2432 = vmatprep.subr.mxu0 0.0
    %2433 = vmatpush1.msra.mxu0 %v2401
    %2434 = vmatprep.subr.mxu0 0.0
    %2435 = vmatpush1.msra.mxu0 0.0
    %2436 = vmatprep.subr.mxu0 0.0
    %2437 = vmatpush1.msra.mxu0 0.0
    %2438 = vmatprep.subr.mxu0 0.0
    %2439 = vmatpush1.msra.mxu0 0.0
    %2440 = vmatprep.subr.mxu0 0.0
    %2441 = vmatpush1.msra.mxu0 0.0
    %2442 = vmatprep.subr.mxu0 0.0
    %2443 = vmatpush1.msra.mxu0 0.0
    %2444 = vmatprep.subr.mxu0 0.0
    %2445 = vmatpush1.msra.mxu0 0.0
    %2446 = vmatprep.subr.mxu0 0.0
    %2447 = vmatpush1.msra.mxu0 0.0
    %2448 = vmatprep.subr.mxu0 0.0
    %2449 = vmatpush1.msra.mxu0 0.0
    %2450 = vmatprep.subr.mxu0 0.0
    %2451 = vmatpush1.msra.mxu0 0.0
    %2452 = vmatprep.subr.mxu0 0.0
    %2453 = vmatpush1.msra.mxu0 0.0
    %2454 = vmatprep.subr.mxu0 0.0
    %2455 = vmatpush1.msra.mxu0 0.0
    %2456 = vmatprep.subr.mxu0 0.0
    %2457 = vmatpush1.msra.mxu0 0.0
    %2458 = vmatprep.subr.mxu0 0.0
    %2459 = vmatpush1.msra.mxu0 0.0
    %2460 = vmatprep.subr.mxu0 0.0
    %2461 = vmatpush1.msra.mxu0 0.0
    %2462 = vmatprep.subr.mxu0 0.0
    %2463 = vmatpush1.msra.mxu0 0.0
    %2464 = vmatprep.subr.mxu0 0.0
    %2465 = vmatpush1.msra.mxu0 0.0
    %2466 = vmatprep.mubr.f32.mxu0 0.0
    %2467 = vmatmul.mubr.f32.gmra.mrb[0].mxu0 %v1849
    %v2468 = vpop.f32.mrb[0].mxu0
    %v2469 = vadd.f32 0.0, %v2468
    %v2470 = vpop.f32.mrb[0].mxu0
    %2471 = vdwg.mxu0
    %v2472 = vadd.f32 %v2385, %v2469
    %v2473 = vld [vmem:[#allocation5 + $0x880] sm:$0xff]
    %v2474 = vld [vmem:[#allocation5 + $0x888] sm:$0xff]
    %v2475 = vld [vmem:[#allocation5 + $0x890] sm:$0xff]
    %v2476 = vld [vmem:[#allocation5 + $0x898] sm:$0xff]
    %v2477 = vld [vmem:[#allocation5 + $0x8a0] sm:$0xff]
    %v2478 = vld [vmem:[#allocation5 + $0x8a8] sm:$0xff]
    %v2479 = vld [vmem:[#allocation5 + $0x8b0] sm:$0xff]
    %v2480 = vld [vmem:[#allocation5 + $0x8b8] sm:$0xff]
    %v2481 = vld [vmem:[#allocation5 + $0x8c0] sm:$0xff]
    %v2482 = vld [vmem:[#allocation5 + $0x8c8] sm:$0xff]
    %v2483 = vld [vmem:[#allocation5 + $0x8d0] sm:$0xff]
    %v2484 = vld [vmem:[#allocation5 + $0x8d8] sm:$0xff]
    %v2485 = vld [vmem:[#allocation5 + $0x8e0] sm:$0xff]
    %v2486 = vld [vmem:[#allocation5 + $0x8e8] sm:$0xff]
    %v2487 = vld [vmem:[#allocation5 + $0x8f0] sm:$0xff]
    %v2488 = vld [vmem:[#allocation5 + $0x8f8] sm:$0xff]
    %2489 = vmatprep.subr.mxu0 0.0
    %2490 = vmatpush1.msra.mxu0 %v2473
    %2491 = vmatprep.subr.mxu0 0.0
    %2492 = vmatpush1.msra.mxu0 %v2474
    %2493 = vmatprep.subr.mxu0 0.0
    %2494 = vmatpush1.msra.mxu0 %v2475
    %2495 = vmatprep.subr.mxu0 0.0
    %2496 = vmatpush1.msra.mxu0 %v2476
    %2497 = vmatprep.subr.mxu0 0.0
    %2498 = vmatpush1.msra.mxu0 %v2477
    %2499 = vmatprep.subr.mxu0 0.0
    %2500 = vmatpush1.msra.mxu0 %v2478
    %2501 = vmatprep.subr.mxu0 0.0
    %2502 = vmatpush1.msra.mxu0 %v2479
    %2503 = vmatprep.subr.mxu0 0.0
    %2504 = vmatpush1.msra.mxu0 %v2480
    %2505 = vmatprep.subr.mxu0 0.0
    %2506 = vmatpush1.msra.mxu0 %v2481
    %2507 = vmatprep.subr.mxu0 0.0
    %2508 = vmatpush1.msra.mxu0 %v2482
    %2509 = vmatprep.subr.mxu0 0.0
    %2510 = vmatpush1.msra.mxu0 %v2483
    %2511 = vmatprep.subr.mxu0 0.0
    %2512 = vmatpush1.msra.mxu0 %v2484
    %2513 = vmatprep.subr.mxu0 0.0
    %2514 = vmatpush1.msra.mxu0 %v2485
    %2515 = vmatprep.subr.mxu0 0.0
    %2516 = vmatpush1.msra.mxu0 %v2486
    %2517 = vmatprep.subr.mxu0 0.0
    %2518 = vmatpush1.msra.mxu0 %v2487
    %2519 = vmatprep.subr.mxu0 0.0
    %2520 = vmatpush1.msra.mxu0 %v2488
    %2521 = vmatprep.subr.mxu0 0.0
    %2522 = vmatpush1.msra.mxu0 0.0
    %2523 = vmatprep.subr.mxu0 0.0
    %2524 = vmatpush1.msra.mxu0 0.0
    %2525 = vmatprep.subr.mxu0 0.0
    %2526 = vmatpush1.msra.mxu0 0.0
    %2527 = vmatprep.subr.mxu0 0.0
    %2528 = vmatpush1.msra.mxu0 0.0
    %2529 = vmatprep.subr.mxu0 0.0
    %2530 = vmatpush1.msra.mxu0 0.0
    %2531 = vmatprep.subr.mxu0 0.0
    %2532 = vmatpush1.msra.mxu0 0.0
    %2533 = vmatprep.subr.mxu0 0.0
    %2534 = vmatpush1.msra.mxu0 0.0
    %2535 = vmatprep.subr.mxu0 0.0
    %2536 = vmatpush1.msra.mxu0 0.0
    %2537 = vmatprep.subr.mxu0 0.0
    %2538 = vmatpush1.msra.mxu0 0.0
    %2539 = vmatprep.subr.mxu0 0.0
    %2540 = vmatpush1.msra.mxu0 0.0
    %2541 = vmatprep.subr.mxu0 0.0
    %2542 = vmatpush1.msra.mxu0 0.0
    %2543 = vmatprep.subr.mxu0 0.0
    %2544 = vmatpush1.msra.mxu0 0.0
    %2545 = vmatprep.subr.mxu0 0.0
    %2546 = vmatpush1.msra.mxu0 0.0
    %2547 = vmatprep.subr.mxu0 0.0
    %2548 = vmatpush1.msra.mxu0 0.0
    %2549 = vmatprep.subr.mxu0 0.0
    %2550 = vmatpush1.msra.mxu0 0.0
    %2551 = vmatprep.subr.mxu0 0.0
    %2552 = vmatpush1.msra.mxu0 0.0
    %2553 = vmatprep.mubr.f32.mxu0 0.0
    %2554 = vmatmul.mubr.f32.gmra.mrb[0].mxu0 %v1854
    %v2555 = vpop.f32.mrb[0].mxu0
    %v2556 = vadd.f32 0.0, %v2555
    %v2557 = vpop.f32.mrb[0].mxu0
    %2558 = vdwg.mxu0
    %v2559 = vadd.f32 %v2472, %v2556
    %v2560 = vld [vmem:[#allocation5 + $0x900] sm:$0xff]
    %v2561 = vld [vmem:[#allocation5 + $0x908] sm:$0xff]
    %v2562 = vld [vmem:[#allocation5 + $0x910] sm:$0xff]
    %v2563 = vld [vmem:[#allocation5 + $0x918] sm:$0xff]
    %v2564 = vld [vmem:[#allocation5 + $0x920] sm:$0xff]
    %v2565 = vld [vmem:[#allocation5 + $0x928] sm:$0xff]
    %v2566 = vld [vmem:[#allocation5 + $0x930] sm:$0xff]
    %v2567 = vld [vmem:[#allocation5 + $0x938] sm:$0xff]
    %v2568 = vld [vmem:[#allocation5 + $0x940] sm:$0xff]
    %v2569 = vld [vmem:[#allocation5 + $0x948] sm:$0xff]
    %v2570 = vld [vmem:[#allocation5 + $0x950] sm:$0xff]
    %v2571 = vld [vmem:[#allocation5 + $0x958] sm:$0xff]
    %v2572 = vld [vmem:[#allocation5 + $0x960] sm:$0xff]
    %v2573 = vld [vmem:[#allocation5 + $0x968] sm:$0xff]
    %v2574 = vld [vmem:[#allocation5 + $0x970] sm:$0xff]
    %v2575 = vld [vmem:[#allocation5 + $0x978] sm:$0xff]
    %2576 = vmatprep.subr.mxu0 0.0
    %2577 = vmatpush1.msra.mxu0 %v2560
    %2578 = vmatprep.subr.mxu0 0.0
    %2579 = vmatpush1.msra.mxu0 %v2561
    %2580 = vmatprep.subr.mxu0 0.0
    %2581 = vmatpush1.msra.mxu0 %v2562
    %2582 = vmatprep.subr.mxu0 0.0
    %2583 = vmatpush1.msra.mxu0 %v2563
    %2584 = vmatprep.subr.mxu0 0.0
    %2585 = vmatpush1.msra.mxu0 %v2564
    %2586 = vmatprep.subr.mxu0 0.0
    %2587 = vmatpush1.msra.mxu0 %v2565
    %2588 = vmatprep.subr.mxu0 0.0
    %2589 = vmatpush1.msra.mxu0 %v2566
    %2590 = vmatprep.subr.mxu0 0.0
    %2591 = vmatpush1.msra.mxu0 %v2567
    %2592 = vmatprep.subr.mxu0 0.0
    %2593 = vmatpush1.msra.mxu0 %v2568
    %2594 = vmatprep.subr.mxu0 0.0
    %2595 = vmatpush1.msra.mxu0 %v2569
    %2596 = vmatprep.subr.mxu0 0.0
    %2597 = vmatpush1.msra.mxu0 %v2570
    %2598 = vmatprep.subr.mxu0 0.0
    %2599 = vmatpush1.msra.mxu0 %v2571
    %2600 = vmatprep.subr.mxu0 0.0
    %2601 = vmatpush1.msra.mxu0 %v2572
    %2602 = vmatprep.subr.mxu0 0.0
    %2603 = vmatpush1.msra.mxu0 %v2573
    %2604 = vmatprep.subr.mxu0 0.0
    %2605 = vmatpush1.msra.mxu0 %v2574
    %2606 = vmatprep.subr.mxu0 0.0
    %2607 = vmatpush1.msra.mxu0 %v2575
    %2608 = vmatprep.subr.mxu0 0.0
    %2609 = vmatpush1.msra.mxu0 0.0
    %2610 = vmatprep.subr.mxu0 0.0
    %2611 = vmatpush1.msra.mxu0 0.0
    %2612 = vmatprep.subr.mxu0 0.0
    %2613 = vmatpush1.msra.mxu0 0.0
    %2614 = vmatprep.subr.mxu0 0.0
    %2615 = vmatpush1.msra.mxu0 0.0
    %2616 = vmatprep.subr.mxu0 0.0
    %2617 = vmatpush1.msra.mxu0 0.0
    %2618 = vmatprep.subr.mxu0 0.0
    %2619 = vmatpush1.msra.mxu0 0.0
    %2620 = vmatprep.subr.mxu0 0.0
    %2621 = vmatpush1.msra.mxu0 0.0
    %2622 = vmatprep.subr.mxu0 0.0
    %2623 = vmatpush1.msra.mxu0 0.0
    %2624 = vmatprep.subr.mxu0 0.0
    %2625 = vmatpush1.msra.mxu0 0.0
    %2626 = vmatprep.subr.mxu0 0.0
    %2627 = vmatpush1.msra.mxu0 0.0
    %2628 = vmatprep.subr.mxu0 0.0
    %2629 = vmatpush1.msra.mxu0 0.0
    %2630 = vmatprep.subr.mxu0 0.0
    %2631 = vmatpush1.msra.mxu0 0.0
    %2632 = vmatprep.subr.mxu0 0.0
    %2633 = vmatpush1.msra.mxu0 0.0
    %2634 = vmatprep.subr.mxu0 0.0
    %2635 = vmatpush1.msra.mxu0 0.0
    %2636 = vmatprep.subr.mxu0 0.0
    %2637 = vmatpush1.msra.mxu0 0.0
    %2638 = vmatprep.subr.mxu0 0.0
    %2639 = vmatpush1.msra.mxu0 0.0
    %2640 = vmatprep.mubr.f32.mxu0 0.0
    %2641 = vmatmul.mubr.f32.gmra.mrb[0].mxu0 %v1859
    %v2642 = vpop.f32.mrb[0].mxu0
    %v2643 = vadd.f32 0.0, %v2642
    %v2644 = vpop.f32.mrb[0].mxu0
    %2645 = vdwg.mxu0
    %v2646 = vadd.f32 %v2559, %v2643
    %v2647 = vrot.slane %v2646, 4
    %v2648 = vadd.f32 %v2646, %v2647
    %v2649 = vrot.slane %v2648, 2
    %v2650 = vadd.f32 %v2648, %v2649
    %v2651 = vrot.slane %v2650, 1
    %v2652 = vadd.f32 %v2650, %v2651
    %v2653 = vmul.f32 %v2652, 0.125
    %v2654 = vmul.f32 %v2646, %v2646
    %v2655 = vrot.slane %v2654, 4
    %v2656 = vadd.f32 %v2654, %v2655
    %v2657 = vrot.slane %v2656, 2
    %v2658 = vadd.f32 %v2656, %v2657
    %v2659 = vrot.slane %v2658, 1
    %v2660 = vadd.f32 %v2658, %v2659
    %v2661 = vmul.f32 %v2660, 0.125
    %v2662 = vmul.f32 %v2653, %v2653
    %v2663 = vsub.f32 %v2661, %v2662
    %v2664 = vmax.f32 %v2663, 0.0
    %s2665 = scalar_lea.vmem [#allocation7], 4
    %v2666 = vld [vmem:[%s2665] sm:$0x1]
    %v2667 = vadd.f32 %v2664, 1e-05
    %v2668 = vrsqrt.pop %v2667
    %v2669 = vmul.f32 %v2666, %v2668
    %s2670 = scalar_lea.vmem [#allocation7], 5
    %v2671 = vld [vmem:[%s2670] sm:$0x1]
    %v2672 = vmul.f32 %v2653, %v2669
    %v2673 = vsub.f32 %v2671, %v2672
    %v2675 = vlaneseq
    %v2676 = vshrl.u32 %v2675, 7
    %v2677 = vsub.s32 0, %v2676
    %v2678 = vrot.slane %v2669, %v2677
    %v2680 = vmul.f32 %v2646, %v2678
    %v2682 = vlaneseq
    %v2683 = vshrl.u32 %v2682, 7
    %v2684 = vsub.s32 0, %v2683
    %v2685 = vrot.slane %v2673, %v2684
    %v2687 = vadd.f32 %v2680, %v2685
    %v2688 = vmax.f32 %v2687, 0.0
    %2689 = vst [vmem:[#allocation2] sm:$0xff] %v2688
    %v2690 = vld [vmem:[#allocation3 + $0xb8] sm:$0xf]
    %v2691 = vld [vmem:[#allocation3 + $0xbc] sm:$0xf]
    %v2692 = vld [vmem:[#allocation3 + $0xc0] sm:$0xf]
    %v2693 = vld [vmem:[#allocation3 + $0xc4] sm:$0xf]
    %v2694 = vld [vmem:[#allocation3 + $0xc8] sm:$0xf]
    %v2695 = vld [vmem:[#allocation3 + $0xcc] sm:$0xf]
    %v2696 = vld [vmem:[#allocation3 + $0xd0] sm:$0xf]
    %v2697 = vld [vmem:[#allocation3 + $0xd4] sm:$0xf]
    %v2698 = vld [vmem:[#allocation3 + $0xd8] sm:$0xf]
    %v2699 = vld [vmem:[#allocation3 + $0xdc] sm:$0xf]
    %v2700 = vunpack.c.l.bf16 %v2690
    %v2701 = vunpack.c.l.bf16 %v2691
    %v2702 = vunpack.c.l.bf16 %v2692
    %v2703 = vunpack.c.l.bf16 %v2693
    %v2704 = vunpack.c.l.bf16 %v2694
    %v2705 = vunpack.c.l.bf16 %v2695
    %v2706 = vunpack.c.l.bf16 %v2696
    %v2707 = vunpack.c.l.bf16 %v2697
    %v2708 = vunpack.c.l.bf16 %v2698
    %v2709 = vunpack.c.l.bf16 %v2699
    %v2710 = vld [vmem:[#allocation2] sm:$0xff]
    %v2711 = vld [vmem:[#allocation2 + $0x8] sm:$0xff]
    %v2712 = vld [vmem:[#allocation2 + $0x10] sm:$0xff]
    %v2713 = vld [vmem:[#allocation2 + $0x18] sm:$0xff]
    %v2714 = vld [vmem:[#allocation2 + $0x20] sm:$0xff]
    %v2715 = vld [vmem:[#allocation2 + $0x28] sm:$0xff]
    %v2716 = vld [vmem:[#allocation2 + $0x30] sm:$0xff]
    %v2717 = vld [vmem:[#allocation2 + $0x38] sm:$0xff]
    %v2718 = vld [vmem:[#allocation2 + $0x40] sm:$0xff]
    %v2719 = vld [vmem:[#allocation2 + $0x48] sm:$0xff]
    %v2720 = vld [vmem:[#allocation2 + $0x50] sm:$0xff]
    %v2721 = vld [vmem:[#allocation2 + $0x58] sm:$0xff]
    %v2722 = vld [vmem:[#allocation2 + $0x60] sm:$0xff]
    %v2723 = vld [vmem:[#allocation2 + $0x68] sm:$0xff]
    %v2724 = vld [vmem:[#allocation2 + $0x70] sm:$0xff]
    %v2725 = vld [vmem:[#allocation2 + $0x78] sm:$0xff]
    %2726 = vmatprep.subr.mxu0 0.0
    %2727 = vmatpush1.msra.mxu0 %v2710
    %2728 = vmatprep.subr.mxu0 0.0
    %2729 = vmatpush1.msra.mxu0 %v2711
    %2730 = vmatprep.subr.mxu0 0.0
    %2731 = vmatpush1.msra.mxu0 %v2712
    %2732 = vmatprep.subr.mxu0 0.0
    %2733 = vmatpush1.msra.mxu0 %v2713
    %2734 = vmatprep.subr.mxu0 0.0
    %2735 = vmatpush1.msra.mxu0 %v2714
    %2736 = vmatprep.subr.mxu0 0.0
    %2737 = vmatpush1.msra.mxu0 %v2715
    %2738 = vmatprep.subr.mxu0 0.0
    %2739 = vmatpush1.msra.mxu0 %v2716
    %2740 = vmatprep.subr.mxu0 0.0
    %2741 = vmatpush1.msra.mxu0 %v2717
    %2742 = vmatprep.subr.mxu0 0.0
    %2743 = vmatpush1.msra.mxu0 %v2718
    %2744 = vmatprep.subr.mxu0 0.0
    %2745 = vmatpush1.msra.mxu0 %v2719
    %2746 = vmatprep.subr.mxu0 0.0
    %2747 = vmatpush1.msra.mxu0 %v2720
    %2748 = vmatprep.subr.mxu0 0.0
    %2749 = vmatpush1.msra.mxu0 %v2721
    %2750 = vmatprep.subr.mxu0 0.0
    %2751 = vmatpush1.msra.mxu0 %v2722
    %2752 = vmatprep.subr.mxu0 0.0
    %2753 = vmatpush1.msra.mxu0 %v2723
    %2754 = vmatprep.subr.mxu0 0.0
    %2755 = vmatpush1.msra.mxu0 %v2724
    %2756 = vmatprep.subr.mxu0 0.0
    %2757 = vmatpush1.msra.mxu0 %v2725
    %2758 = vmatprep.subr.mxu0 0.0
    %2759 = vmatpush1.msra.mxu0 0.0
    %2760 = vmatprep.subr.mxu0 0.0
    %2761 = vmatpush1.msra.mxu0 0.0
    %2762 = vmatprep.subr.mxu0 0.0
    %2763 = vmatpush1.msra.mxu0 0.0
    %2764 = vmatprep.subr.mxu0 0.0
    %2765 = vmatpush1.msra.mxu0 0.0
    %2766 = vmatprep.subr.mxu0 0.0
    %2767 = vmatpush1.msra.mxu0 0.0
    %2768 = vmatprep.subr.mxu0 0.0
    %2769 = vmatpush1.msra.mxu0 0.0
    %2770 = vmatprep.subr.mxu0 0.0
    %2771 = vmatpush1.msra.mxu0 0.0
    %2772 = vmatprep.subr.mxu0 0.0
    %2773 = vmatpush1.msra.mxu0 0.0
    %2774 = vmatprep.subr.mxu0 0.0
    %2775 = vmatpush1.msra.mxu0 0.0
    %2776 = vmatprep.subr.mxu0 0.0
    %2777 = vmatpush1.msra.mxu0 0.0
    %2778 = vmatprep.subr.mxu0 0.0
    %2779 = vmatpush1.msra.mxu0 0.0
    %2780 = vmatprep.subr.mxu0 0.0
    %2781 = vmatpush1.msra.mxu0 0.0
    %2782 = vmatprep.subr.mxu0 0.0
    %2783 = vmatpush1.msra.mxu0 0.0
    %2784 = vmatprep.subr.mxu0 0.0
    %2785 = vmatpush1.msra.mxu0 0.0
    %2786 = vmatprep.subr.mxu0 0.0
    %2787 = vmatpush1.msra.mxu0 0.0
    %2788 = vmatprep.subr.mxu0 0.0
    %2789 = vmatpush1.msra.mxu0 0.0
    %2790 = vmatprep.mubr.f32.mxu0 0.0
    %2791 = vmatmul.mubr.f32.gmra.mrb[0].mxu0 %v2700
    %v2792 = vpop.f32.mrb[0].mxu0
    %v2793 = vadd.f32 0.0, %v2792
    %v2794 = vpop.f32.mrb[0].mxu0
    %2795 = vmatprep.mubr.f32.mxu0 0.0
    %2796 = vmatmul.mubr.f32.gmra.mrb[0].mxu0 %v2701
    %v2797 = vpop.f32.mrb[0].mxu0
    %v2798 = vadd.f32 0.0, %v2797
    %v2799 = vpop.f32.mrb[0].mxu0
    %2800 = vmatprep.mubr.f32.mxu0 0.0
    %2801 = vmatmul.mubr.f32.gmra.mrb[0].mxu0 %v2702
    %v2802 = vpop.f32.mrb[0].mxu0
    %v2803 = vadd.f32 0.0, %v2802
    %v2804 = vpop.f32.mrb[0].mxu0
    %2805 = vmatprep.mubr.f32.mxu0 0.0
    %2806 = vmatmul.mubr.f32.gmra.mrb[0].mxu0 %v2703
    %v2807 = vpop.f32.mrb[0].mxu0
    %v2808 = vadd.f32 0.0, %v2807
    %v2809 = vpop.f32.mrb[0].mxu0
    %2810 = vmatprep.mubr.f32.mxu0 0.0
    %2811 = vmatmul.mubr.f32.gmra.mrb[0].mxu0 %v2704
    %v2812 = vpop.f32.mrb[0].mxu0
    %v2813 = vadd.f32 0.0, %v2812
    %v2814 = vpop.f32.mrb[0].mxu0
    %2815 = vmatprep.mubr.f32.mxu0 0.0
    %2816 = vmatmul.mubr.f32.gmra.mrb[0].mxu0 %v2705
    %v2817 = vpop.f32.mrb[0].mxu0
    %v2818 = vadd.f32 0.0, %v2817
    %v2819 = vpop.f32.mrb[0].mxu0
    %2820 = vmatprep.mubr.f32.mxu0 0.0
    %2821 = vmatmul.mubr.f32.gmra.mrb[0].mxu0 %v2706
    %v2822 = vpop.f32.mrb[0].mxu0
    %v2823 = vadd.f32 0.0, %v2822
    %v2824 = vpop.f32.mrb[0].mxu0
    %2825 = vmatprep.mubr.f32.mxu0 0.0
    %2826 = vmatmul.mubr.f32.gmra.mrb[0].mxu0 %v2707
    %v2827 = vpop.f32.mrb[0].mxu0
    %v2828 = vadd.f32 0.0, %v2827
    %v2829 = vpop.f32.mrb[0].mxu0
    %2830 = vmatprep.mubr.f32.mxu0 0.0
    %2831 = vmatmul.mubr.f32.gmra.mrb[0].mxu0 %v2708
    %v2832 = vpop.f32.mrb[0].mxu0
    %v2833 = vadd.f32 0.0, %v2832
    %v2834 = vpop.f32.mrb[0].mxu0
    %2835 = vmatprep.mubr.f32.mxu0 0.0
    %2836 = vmatmul.mubr.f32.gmra.mrb[0].mxu0 %v2709
    %v2837 = vpop.f32.mrb[0].mxu0
    %v2838 = vpop.f32.mrb[0].mxu0
    %2839 = vdwg.mxu0
    %v2840 = vld [vmem:[#allocation5 + $0x980] sm:$0xff]
    %v2841 = vld [vmem:[#allocation5 + $0x988] sm:$0xff]
    %v2842 = vld [vmem:[#allocation5 + $0x990] sm:$0xff]
    %v2843 = vld [vmem:[#allocation5 + $0x998] sm:$0xff]
    %v2844 = vld [vmem:[#allocation5 + $0x9a0] sm:$0xff]
    %v2845 = vld [vmem:[#allocation5 + $0x9a8] sm:$0xff]
    %v2846 = vld [vmem:[#allocation5 + $0x9b0] sm:$0xff]
    %v2847 = vld [vmem:[#allocation5 + $0x9b8] sm:$0xff]
    %v2848 = vld [vmem:[#allocation5 + $0x9c0] sm:$0xff]
    %v2849 = vld [vmem:[#allocation5 + $0x9c8] sm:$0xff]
    %v2850 = vld [vmem:[#allocation5 + $0x9d0] sm:$0xff]
    %v2851 = vld [vmem:[#allocation5 + $0x9d8] sm:$0xff]
    %v2852 = vld [vmem:[#allocation5 + $0x9e0] sm:$0xff]
    %v2853 = vld [vmem:[#allocation5 + $0x9e8] sm:$0xff]
    %v2854 = vld [vmem:[#allocation5 + $0x9f0] sm:$0xff]
    %v2855 = vld [vmem:[#allocation5 + $0x9f8] sm:$0xff]
    %v2856 = vld [vmem:[#allocation5 + $0xa00] sm:$0xff]
    %v2857 = vld [vmem:[#allocation5 + $0xa08] sm:$0xff]
    %v2858 = vld [vmem:[#allocation5 + $0xa10] sm:$0xff]
    %v2859 = vld [vmem:[#allocation5 + $0xa18] sm:$0xff]
    %v2860 = vld [vmem:[#allocation5 + $0xa20] sm:$0xff]
    %v2861 = vld [vmem:[#allocation5 + $0xa28] sm:$0xff]
    %v2862 = vld [vmem:[#allocation5 + $0xa30] sm:$0xff]
    %v2863 = vld [vmem:[#allocation5 + $0xa38] sm:$0xff]
    %v2864 = vld [vmem:[#allocation5 + $0xa40] sm:$0xff]
    %v2865 = vld [vmem:[#allocation5 + $0xa48] sm:$0xff]
    %v2866 = vld [vmem:[#allocation5 + $0xa50] sm:$0xff]
    %v2867 = vld [vmem:[#allocation5 + $0xa58] sm:$0xff]
    %v2868 = vld [vmem:[#allocation5 + $0xa60] sm:$0xff]
    %v2869 = vld [vmem:[#allocation5 + $0xa68] sm:$0xff]
    %v2870 = vld [vmem:[#allocation5 + $0xa70] sm:$0xff]
    %v2871 = vld [vmem:[#allocation5 + $0xa78] sm:$0xff]
    %2872 = vmatprep.subr.mxu0 0.0
    %2873 = vmatpush1.msra.mxu0 %v2856
    %2874 = vmatprep.subr.mxu0 0.0
    %2875 = vmatpush1.msra.mxu0 %v2857
    %2876 = vmatprep.subr.mxu0 0.0
    %2877 = vmatpush1.msra.mxu0 %v2858
    %2878 = vmatprep.subr.mxu0 0.0
    %2879 = vmatpush1.msra.mxu0 %v2859
    %2880 = vmatprep.subr.mxu0 0.0
    %2881 = vmatpush1.msra.mxu0 %v2860
    %2882 = vmatprep.subr.mxu0 0.0
    %2883 = vmatpush1.msra.mxu0 %v2861
    %2884 = vmatprep.subr.mxu0 0.0
    %2885 = vmatpush1.msra.mxu0 %v2862
    %2886 = vmatprep.subr.mxu0 0.0
    %2887 = vmatpush1.msra.mxu0 %v2863
    %2888 = vmatprep.subr.mxu0 0.0
    %2889 = vmatpush1.msra.mxu0 %v2864
    %2890 = vmatprep.subr.mxu0 0.0
    %2891 = vmatpush1.msra.mxu0 %v2865
    %2892 = vmatprep.subr.mxu0 0.0
    %2893 = vmatpush1.msra.mxu0 %v2866
    %2894 = vmatprep.subr.mxu0 0.0
    %2895 = vmatpush1.msra.mxu0 %v2867
    %2896 = vmatprep.subr.mxu0 0.0
    %2897 = vmatpush1.msra.mxu0 %v2868
    %2898 = vmatprep.subr.mxu0 0.0
    %2899 = vmatpush1.msra.mxu0 %v2869
    %2900 = vmatprep.subr.mxu0 0.0
    %2901 = vmatpush1.msra.mxu0 %v2870
    %2902 = vmatprep.subr.mxu0 0.0
    %2903 = vmatpush1.msra.mxu0 %v2871
    %2904 = vmatprep.subr.mxu0 0.0
    %2905 = vmatpush1.msra.mxu0 0.0
    %2906 = vmatprep.subr.mxu0 0.0
    %2907 = vmatpush1.msra.mxu0 0.0
    %2908 = vmatprep.subr.mxu0 0.0
    %2909 = vmatpush1.msra.mxu0 0.0
    %2910 = vmatprep.subr.mxu0 0.0
    %2911 = vmatpush1.msra.mxu0 0.0
    %2912 = vmatprep.subr.mxu0 0.0
    %2913 = vmatpush1.msra.mxu0 0.0
    %2914 = vmatprep.subr.mxu0 0.0
    %2915 = vmatpush1.msra.mxu0 0.0
    %2916 = vmatprep.subr.mxu0 0.0
    %2917 = vmatpush1.msra.mxu0 0.0
    %2918 = vmatprep.subr.mxu0 0.0
    %2919 = vmatpush1.msra.mxu0 0.0
    %2920 = vmatprep.subr.mxu0 0.0
    %2921 = vmatpush1.msra.mxu0 0.0
    %2922 = vmatprep.subr.mxu0 0.0
    %2923 = vmatpush1.msra.mxu0 0.0
    %2924 = vmatprep.subr.mxu0 0.0
    %2925 = vmatpush1.msra.mxu0 0.0
    %2926 = vmatprep.subr.mxu0 0.0
    %2927 = vmatpush1.msra.mxu0 0.0
    %2928 = vmatprep.subr.mxu0 0.0
    %2929 = vmatpush1.msra.mxu0 0.0
    %2930 = vmatprep.subr.mxu0 0.0
    %2931 = vmatpush1.msra.mxu0 0.0
    %2932 = vmatprep.subr.mxu0 0.0
    %2933 = vmatpush1.msra.mxu0 0.0
    %2934 = vmatprep.subr.mxu0 0.0
    %2935 = vmatpush1.msra.mxu0 0.0
    %2936 = vmatprep.mubr.f32.mxu0 0.0
    %2937 = vmatmul.mubr.f32.gmra.mrb[0].mxu0 %v2798
    %v2938 = vpop.f32.mrb[0].mxu0
    %v2939 = vadd.f32 0.0, %v2938
    %v2940 = vpop.f32.mrb[0].mxu0
    %2941 = vdwg.mxu0
    %2942 = vmatprep.subr.mxu0 0.0
    %2943 = vmatpush1.msra.mxu0 %v2840
    %2944 = vmatprep.subr.mxu0 0.0
    %2945 = vmatpush1.msra.mxu0 %v2841
    %2946 = vmatprep.subr.mxu0 0.0
    %2947 = vmatpush1.msra.mxu0 %v2842
    %2948 = vmatprep.subr.mxu0 0.0
    %2949 = vmatpush1.msra.mxu0 %v2843
    %2950 = vmatprep.subr.mxu0 0.0
    %2951 = vmatpush1.msra.mxu0 %v2844
    %2952 = vmatprep.subr.mxu0 0.0
    %2953 = vmatpush1.msra.mxu0 %v2845
    %2954 = vmatprep.subr.mxu0 0.0
    %2955 = vmatpush1.msra.mxu0 %v2846
    %2956 = vmatprep.subr.mxu0 0.0
    %2957 = vmatpush1.msra.mxu0 %v2847
    %2958 = vmatprep.subr.mxu0 0.0
    %2959 = vmatpush1.msra.mxu0 %v2848
    %2960 = vmatprep.subr.mxu0 0.0
    %2961 = vmatpush1.msra.mxu0 %v2849
    %2962 = vmatprep.subr.mxu0 0.0
    %2963 = vmatpush1.msra.mxu0 %v2850
    %2964 = vmatprep.subr.mxu0 0.0
    %2965 = vmatpush1.msra.mxu0 %v2851
    %2966 = vmatprep.subr.mxu0 0.0
    %2967 = vmatpush1.msra.mxu0 %v2852
    %2968 = vmatprep.subr.mxu0 0.0
    %2969 = vmatpush1.msra.mxu0 %v2853
    %2970 = vmatprep.subr.mxu0 0.0
    %2971 = vmatpush1.msra.mxu0 %v2854
    %2972 = vmatprep.subr.mxu0 0.0
    %2973 = vmatpush1.msra.mxu0 %v2855
    %2974 = vmatprep.subr.mxu0 0.0
    %2975 = vmatpush1.msra.mxu0 0.0
    %2976 = vmatprep.subr.mxu0 0.0
    %2977 = vmatpush1.msra.mxu0 0.0
    %2978 = vmatprep.subr.mxu0 0.0
    %2979 = vmatpush1.msra.mxu0 0.0
    %2980 = vmatprep.subr.mxu0 0.0
    %2981 = vmatpush1.msra.mxu0 0.0
    %2982 = vmatprep.subr.mxu0 0.0
    %2983 = vmatpush1.msra.mxu0 0.0
    %2984 = vmatprep.subr.mxu0 0.0
    %2985 = vmatpush1.msra.mxu0 0.0
    %2986 = vmatprep.subr.mxu0 0.0
    %2987 = vmatpush1.msra.mxu0 0.0
    %2988 = vmatprep.subr.mxu0 0.0
    %2989 = vmatpush1.msra.mxu0 0.0
    %2990 = vmatprep.subr.mxu0 0.0
    %2991 = vmatpush1.msra.mxu0 0.0
    %2992 = vmatprep.subr.mxu0 0.0
    %2993 = vmatpush1.msra.mxu0 0.0
    %2994 = vmatprep.subr.mxu0 0.0
    %2995 = vmatpush1.msra.mxu0 0.0
    %2996 = vmatprep.subr.mxu0 0.0
    %2997 = vmatpush1.msra.mxu0 0.0
    %2998 = vmatprep.subr.mxu0 0.0
    %2999 = vmatpush1.msra.mxu0 0.0
    %3000 = vmatprep.subr.mxu0 0.0
    %3001 = vmatpush1.msra.mxu0 0.0
    %3002 = vmatprep.subr.mxu0 0.0
    %3003 = vmatpush1.msra.mxu0 0.0
    %3004 = vmatprep.subr.mxu0 0.0
    %3005 = vmatpush1.msra.mxu0 0.0
    %3006 = vmatprep.mubr.f32.mxu0 0.0
    %3007 = vmatmul.mubr.f32.gmra.mrb[0].mxu0 %v2793
    %v3008 = vpop.f32.mrb[0].mxu0
    %v3009 = vadd.f32 %v2939, %v3008
    %v3010 = vpop.f32.mrb[0].mxu0
    %3011 = vdwg.mxu0
    %v3012 = vld [vmem:[#allocation5 + $0xa80] sm:$0xff]
    %v3013 = vld [vmem:[#allocation5 + $0xa88] sm:$0xff]
    %v3014 = vld [vmem:[#allocation5 + $0xa90] sm:$0xff]
    %v3015 = vld [vmem:[#allocation5 + $0xa98] sm:$0xff]
    %v3016 = vld [vmem:[#allocation5 + $0xaa0] sm:$0xff]
    %v3017 = vld [vmem:[#allocation5 + $0xaa8] sm:$0xff]
    %v3018 = vld [vmem:[#allocation5 + $0xab0] sm:$0xff]
    %v3019 = vld [vmem:[#allocation5 + $0xab8] sm:$0xff]
    %v3020 = vld [vmem:[#allocation5 + $0xac0] sm:$0xff]
    %v3021 = vld [vmem:[#allocation5 + $0xac8] sm:$0xff]
    %v3022 = vld [vmem:[#allocation5 + $0xad0] sm:$0xff]
    %v3023 = vld [vmem:[#allocation5 + $0xad8] sm:$0xff]
    %v3024 = vld [vmem:[#allocation5 + $0xae0] sm:$0xff]
    %v3025 = vld [vmem:[#allocation5 + $0xae8] sm:$0xff]
    %v3026 = vld [vmem:[#allocation5 + $0xaf0] sm:$0xff]
    %v3027 = vld [vmem:[#allocation5 + $0xaf8] sm:$0xff]
    %3028 = vmatprep.subr.mxu0 0.0
    %3029 = vmatpush1.msra.mxu0 %v3012
    %3030 = vmatprep.subr.mxu0 0.0
    %3031 = vmatpush1.msra.mxu0 %v3013
    %3032 = vmatprep.subr.mxu0 0.0
    %3033 = vmatpush1.msra.mxu0 %v3014
    %3034 = vmatprep.subr.mxu0 0.0
    %3035 = vmatpush1.msra.mxu0 %v3015
    %3036 = vmatprep.subr.mxu0 0.0
    %3037 = vmatpush1.msra.mxu0 %v3016
    %3038 = vmatprep.subr.mxu0 0.0
    %3039 = vmatpush1.msra.mxu0 %v3017
    %3040 = vmatprep.subr.mxu0 0.0
    %3041 = vmatpush1.msra.mxu0 %v3018
    %3042 = vmatprep.subr.mxu0 0.0
    %3043 = vmatpush1.msra.mxu0 %v3019
    %3044 = vmatprep.subr.mxu0 0.0
    %3045 = vmatpush1.msra.mxu0 %v3020
    %3046 = vmatprep.subr.mxu0 0.0
    %3047 = vmatpush1.msra.mxu0 %v3021
    %3048 = vmatprep.subr.mxu0 0.0
    %3049 = vmatpush1.msra.mxu0 %v3022
    %3050 = vmatprep.subr.mxu0 0.0
    %3051 = vmatpush1.msra.mxu0 %v3023
    %3052 = vmatprep.subr.mxu0 0.0
    %3053 = vmatpush1.msra.mxu0 %v3024
    %3054 = vmatprep.subr.mxu0 0.0
    %3055 = vmatpush1.msra.mxu0 %v3025
    %3056 = vmatprep.subr.mxu0 0.0
    %3057 = vmatpush1.msra.mxu0 %v3026
    %3058 = vmatprep.subr.mxu0 0.0
    %3059 = vmatpush1.msra.mxu0 %v3027
    %3060 = vmatprep.subr.mxu0 0.0
    %3061 = vmatpush1.msra.mxu0 0.0
    %3062 = vmatprep.subr.mxu0 0.0
    %3063 = vmatpush1.msra.mxu0 0.0
    %3064 = vmatprep.subr.mxu0 0.0
    %3065 = vmatpush1.msra.mxu0 0.0
    %3066 = vmatprep.subr.mxu0 0.0
    %3067 = vmatpush1.msra.mxu0 0.0
    %3068 = vmatprep.subr.mxu0 0.0
    %3069 = vmatpush1.msra.mxu0 0.0
    %3070 = vmatprep.subr.mxu0 0.0
    %3071 = vmatpush1.msra.mxu0 0.0
    %3072 = vmatprep.subr.mxu0 0.0
    %3073 = vmatpush1.msra.mxu0 0.0
    %3074 = vmatprep.subr.mxu0 0.0
    %3075 = vmatpush1.msra.mxu0 0.0
    %3076 = vmatprep.subr.mxu0 0.0
    %3077 = vmatpush1.msra.mxu0 0.0
    %3078 = vmatprep.subr.mxu0 0.0
    %3079 = vmatpush1.msra.mxu0 0.0
    %3080 = vmatprep.subr.mxu0 0.0
    %3081 = vmatpush1.msra.mxu0 0.0
    %3082 = vmatprep.subr.mxu0 0.0
    %3083 = vmatpush1.msra.mxu0 0.0
    %3084 = vmatprep.subr.mxu0 0.0
    %3085 = vmatpush1.msra.mxu0 0.0
    %3086 = vmatprep.subr.mxu0 0.0
    %3087 = vmatpush1.msra.mxu0 0.0
    %3088 = vmatprep.subr.mxu0 0.0
    %3089 = vmatpush1.msra.mxu0 0.0
    %3090 = vmatprep.subr.mxu0 0.0
    %3091 = vmatpush1.msra.mxu0 0.0
    %3092 = vmatprep.mubr.f32.mxu0 0.0
    %3093 = vmatmul.mubr.f32.gmra.mrb[0].mxu0 %v2803
    %v3094 = vpop.f32.mrb[0].mxu0
    %v3095 = vadd.f32 0.0, %v3094
    %v3096 = vpop.f32.mrb[0].mxu0
    %3097 = vdwg.mxu0
    %v3098 = vadd.f32 %v3009, %v3095
    %v3099 = vld [vmem:[#allocation5 + $0xb00] sm:$0xff]
    %v3100 = vld [vmem:[#allocation5 + $0xb08] sm:$0xff]
    %v3101 = vld [vmem:[#allocation5 + $0xb10] sm:$0xff]
    %v3102 = vld [vmem:[#allocation5 + $0xb18] sm:$0xff]
    %v3103 = vld [vmem:[#allocation5 + $0xb20] sm:$0xff]
    %v3104 = vld [vmem:[#allocation5 + $0xb28] sm:$0xff]
    %v3105 = vld [vmem:[#allocation5 + $0xb30] sm:$0xff]
    %v3106 = vld [vmem:[#allocation5 + $0xb38] sm:$0xff]
    %v3107 = vld [vmem:[#allocation5 + $0xb40] sm:$0xff]
    %v3108 = vld [vmem:[#allocation5 + $0xb48] sm:$0xff]
    %v3109 = vld [vmem:[#allocation5 + $0xb50] sm:$0xff]
    %v3110 = vld [vmem:[#allocation5 + $0xb58] sm:$0xff]
    %v3111 = vld [vmem:[#allocation5 + $0xb60] sm:$0xff]
    %v3112 = vld [vmem:[#allocation5 + $0xb68] sm:$0xff]
    %v3113 = vld [vmem:[#allocation5 + $0xb70] sm:$0xff]
    %v3114 = vld [vmem:[#allocation5 + $0xb78] sm:$0xff]
    %3115 = vmatprep.subr.mxu0 0.0
    %3116 = vmatpush1.msra.mxu0 %v3099
    %3117 = vmatprep.subr.mxu0 0.0
    %3118 = vmatpush1.msra.mxu0 %v3100
    %3119 = vmatprep.subr.mxu0 0.0
    %3120 = vmatpush1.msra.mxu0 %v3101
    %3121 = vmatprep.subr.mxu0 0.0
    %3122 = vmatpush1.msra.mxu0 %v3102
    %3123 = vmatprep.subr.mxu0 0.0
    %3124 = vmatpush1.msra.mxu0 %v3103
    %3125 = vmatprep.subr.mxu0 0.0
    %3126 = vmatpush1.msra.mxu0 %v3104
    %3127 = vmatprep.subr.mxu0 0.0
    %3128 = vmatpush1.msra.mxu0 %v3105
    %3129 = vmatprep.subr.mxu0 0.0
    %3130 = vmatpush1.msra.mxu0 %v3106
    %3131 = vmatprep.subr.mxu0 0.0
    %3132 = vmatpush1.msra.mxu0 %v3107
    %3133 = vmatprep.subr.mxu0 0.0
    %3134 = vmatpush1.msra.mxu0 %v3108
    %3135 = vmatprep.subr.mxu0 0.0
    %3136 = vmatpush1.msra.mxu0 %v3109
    %3137 = vmatprep.subr.mxu0 0.0
    %3138 = vmatpush1.msra.mxu0 %v3110
    %3139 = vmatprep.subr.mxu0 0.0
    %3140 = vmatpush1.msra.mxu0 %v3111
    %3141 = vmatprep.subr.mxu0 0.0
    %3142 = vmatpush1.msra.mxu0 %v3112
    %3143 = vmatprep.subr.mxu0 0.0
    %3144 = vmatpush1.msra.mxu0 %v3113
    %3145 = vmatprep.subr.mxu0 0.0
    %3146 = vmatpush1.msra.mxu0 %v3114
    %3147 = vmatprep.subr.mxu0 0.0
    %3148 = vmatpush1.msra.mxu0 0.0
    %3149 = vmatprep.subr.mxu0 0.0
    %3150 = vmatpush1.msra.mxu0 0.0
    %3151 = vmatprep.subr.mxu0 0.0
    %3152 = vmatpush1.msra.mxu0 0.0
    %3153 = vmatprep.subr.mxu0 0.0
    %3154 = vmatpush1.msra.mxu0 0.0
    %3155 = vmatprep.subr.mxu0 0.0
    %3156 = vmatpush1.msra.mxu0 0.0
    %3157 = vmatprep.subr.mxu0 0.0
    %3158 = vmatpush1.msra.mxu0 0.0
    %3159 = vmatprep.subr.mxu0 0.0
    %3160 = vmatpush1.msra.mxu0 0.0
    %3161 = vmatprep.subr.mxu0 0.0
    %3162 = vmatpush1.msra.mxu0 0.0
    %3163 = vmatprep.subr.mxu0 0.0
    %3164 = vmatpush1.msra.mxu0 0.0
    %3165 = vmatprep.subr.mxu0 0.0
    %3166 = vmatpush1.msra.mxu0 0.0
    %3167 = vmatprep.subr.mxu0 0.0
    %3168 = vmatpush1.msra.mxu0 0.0
    %3169 = vmatprep.subr.mxu0 0.0
    %3170 = vmatpush1.msra.mxu0 0.0
    %3171 = vmatprep.subr.mxu0 0.0
    %3172 = vmatpush1.msra.mxu0 0.0
    %3173 = vmatprep.subr.mxu0 0.0
    %3174 = vmatpush1.msra.mxu0 0.0
    %3175 = vmatprep.subr.mxu0 0.0
    %3176 = vmatpush1.msra.mxu0 0.0
    %3177 = vmatprep.subr.mxu0 0.0
    %3178 = vmatpush1.msra.mxu0 0.0
    %3179 = vmatprep.mubr.f32.mxu0 0.0
    %3180 = vmatmul.mubr.f32.gmra.mrb[0].mxu0 %v2808
    %v3181 = vpop.f32.mrb[0].mxu0
    %v3182 = vadd.f32 0.0, %v3181
    %v3183 = vpop.f32.mrb[0].mxu0
    %3184 = vdwg.mxu0
    %v3185 = vadd.f32 %v3098, %v3182
    %v3186 = vld [vmem:[#allocation5 + $0xb80] sm:$0xff]
    %v3187 = vld [vmem:[#allocation5 + $0xb88] sm:$0xff]
    %v3188 = vld [vmem:[#allocation5 + $0xb90] sm:$0xff]
    %v3189 = vld [vmem:[#allocation5 + $0xb98] sm:$0xff]
    %v3190 = vld [vmem:[#allocation5 + $0xba0] sm:$0xff]
    %v3191 = vld [vmem:[#allocation5 + $0xba8] sm:$0xff]
    %v3192 = vld [vmem:[#allocation5 + $0xbb0] sm:$0xff]
    %v3193 = vld [vmem:[#allocation5 + $0xbb8] sm:$0xff]
    %v3194 = vld [vmem:[#allocation5 + $0xbc0] sm:$0xff]
    %v3195 = vld [vmem:[#allocation5 + $0xbc8] sm:$0xff]
    %v3196 = vld [vmem:[#allocation5 + $0xbd0] sm:$0xff]
    %v3197 = vld [vmem:[#allocation5 + $0xbd8] sm:$0xff]
    %v3198 = vld [vmem:[#allocation5 + $0xbe0] sm:$0xff]
    %v3199 = vld [vmem:[#allocation5 + $0xbe8] sm:$0xff]
    %v3200 = vld [vmem:[#allocation5 + $0xbf0] sm:$0xff]
    %v3201 = vld [vmem:[#allocation5 + $0xbf8] sm:$0xff]
    %3202 = vmatprep.subr.mxu0 0.0
    %3203 = vmatpush1.msra.mxu0 %v3186
    %3204 = vmatprep.subr.mxu0 0.0
    %3205 = vmatpush1.msra.mxu0 %v3187
    %3206 = vmatprep.subr.mxu0 0.0
    %3207 = vmatpush1.msra.mxu0 %v3188
    %3208 = vmatprep.subr.mxu0 0.0
    %3209 = vmatpush1.msra.mxu0 %v3189
    %3210 = vmatprep.subr.mxu0 0.0
    %3211 = vmatpush1.msra.mxu0 %v3190
    %3212 = vmatprep.subr.mxu0 0.0
    %3213 = vmatpush1.msra.mxu0 %v3191
    %3214 = vmatprep.subr.mxu0 0.0
    %3215 = vmatpush1.msra.mxu0 %v3192
    %3216 = vmatprep.subr.mxu0 0.0
    %3217 = vmatpush1.msra.mxu0 %v3193
    %3218 = vmatprep.subr.mxu0 0.0
    %3219 = vmatpush1.msra.mxu0 %v3194
    %3220 = vmatprep.subr.mxu0 0.0
    %3221 = vmatpush1.msra.mxu0 %v3195
    %3222 = vmatprep.subr.mxu0 0.0
    %3223 = vmatpush1.msra.mxu0 %v3196
    %3224 = vmatprep.subr.mxu0 0.0
    %3225 = vmatpush1.msra.mxu0 %v3197
    %3226 = vmatprep.subr.mxu0 0.0
    %3227 = vmatpush1.msra.mxu0 %v3198
    %3228 = vmatprep.subr.mxu0 0.0
    %3229 = vmatpush1.msra.mxu0 %v3199
    %3230 = vmatprep.subr.mxu0 0.0
    %3231 = vmatpush1.msra.mxu0 %v3200
    %3232 = vmatprep.subr.mxu0 0.0
    %3233 = vmatpush1.msra.mxu0 %v3201
    %3234 = vmatprep.subr.mxu0 0.0
    %3235 = vmatpush1.msra.mxu0 0.0
    %3236 = vmatprep.subr.mxu0 0.0
    %3237 = vmatpush1.msra.mxu0 0.0
    %3238 = vmatprep.subr.mxu0 0.0
    %3239 = vmatpush1.msra.mxu0 0.0
    %3240 = vmatprep.subr.mxu0 0.0
    %3241 = vmatpush1.msra.mxu0 0.0
    %3242 = vmatprep.subr.mxu0 0.0
    %3243 = vmatpush1.msra.mxu0 0.0
    %3244 = vmatprep.subr.mxu0 0.0
    %3245 = vmatpush1.msra.mxu0 0.0
    %3246 = vmatprep.subr.mxu0 0.0
    %3247 = vmatpush1.msra.mxu0 0.0
    %3248 = vmatprep.subr.mxu0 0.0
    %3249 = vmatpush1.msra.mxu0 0.0
    %3250 = vmatprep.subr.mxu0 0.0
    %3251 = vmatpush1.msra.mxu0 0.0
    %3252 = vmatprep.subr.mxu0 0.0
    %3253 = vmatpush1.msra.mxu0 0.0
    %3254 = vmatprep.subr.mxu0 0.0
    %3255 = vmatpush1.msra.mxu0 0.0
    %3256 = vmatprep.subr.mxu0 0.0
    %3257 = vmatpush1.msra.mxu0 0.0
    %3258 = vmatprep.subr.mxu0 0.0
    %3259 = vmatpush1.msra.mxu0 0.0
    %3260 = vmatprep.subr.mxu0 0.0
    %3261 = vmatpush1.msra.mxu0 0.0
    %3262 = vmatprep.subr.mxu0 0.0
    %3263 = vmatpush1.msra.mxu0 0.0
    %3264 = vmatprep.subr.mxu0 0.0
    %3265 = vmatpush1.msra.mxu0 0.0
    %3266 = vmatprep.mubr.f32.mxu0 0.0
    %3267 = vmatmul.mubr.f32.gmra.mrb[0].mxu0 %v2813
    %v3268 = vpop.f32.mrb[0].mxu0
    %v3269 = vadd.f32 0.0, %v3268
    %v3270 = vpop.f32.mrb[0].mxu0
    %3271 = vdwg.mxu0
    %v3272 = vadd.f32 %v3185, %v3269
    %v3273 = vld [vmem:[#allocation5 + $0xc00] sm:$0xff]
    %v3274 = vld [vmem:[#allocation5 + $0xc08] sm:$0xff]
    %v3275 = vld [vmem:[#allocation5 + $0xc10] sm:$0xff]
    %v3276 = vld [vmem:[#allocation5 + $0xc18] sm:$0xff]
    %v3277 = vld [vmem:[#allocation5 + $0xc20] sm:$0xff]
    %v3278 = vld [vmem:[#allocation5 + $0xc28] sm:$0xff]
    %v3279 = vld [vmem:[#allocation5 + $0xc30] sm:$0xff]
    %v3280 = vld [vmem:[#allocation5 + $0xc38] sm:$0xff]
    %v3281 = vld [vmem:[#allocation5 + $0xc40] sm:$0xff]
    %v3282 = vld [vmem:[#allocation5 + $0xc48] sm:$0xff]
    %v3283 = vld [vmem:[#allocation5 + $0xc50] sm:$0xff]
    %v3284 = vld [vmem:[#allocation5 + $0xc58] sm:$0xff]
    %v3285 = vld [vmem:[#allocation5 + $0xc60] sm:$0xff]
    %v3286 = vld [vmem:[#allocation5 + $0xc68] sm:$0xff]
    %v3287 = vld [vmem:[#allocation5 + $0xc70] sm:$0xff]
    %v3288 = vld [vmem:[#allocation5 + $0xc78] sm:$0xff]
    %3289 = vmatprep.subr.mxu0 0.0
    %3290 = vmatpush1.msra.mxu0 %v3273
    %3291 = vmatprep.subr.mxu0 0.0
    %3292 = vmatpush1.msra.mxu0 %v3274
    %3293 = vmatprep.subr.mxu0 0.0
    %3294 = vmatpush1.msra.mxu0 %v3275
    %3295 = vmatprep.subr.mxu0 0.0
    %3296 = vmatpush1.msra.mxu0 %v3276
    %3297 = vmatprep.subr.mxu0 0.0
    %3298 = vmatpush1.msra.mxu0 %v3277
    %3299 = vmatprep.subr.mxu0 0.0
    %3300 = vmatpush1.msra.mxu0 %v3278
    %3301 = vmatprep.subr.mxu0 0.0
    %3302 = vmatpush1.msra.mxu0 %v3279
    %3303 = vmatprep.subr.mxu0 0.0
    %3304 = vmatpush1.msra.mxu0 %v3280
    %3305 = vmatprep.subr.mxu0 0.0
    %3306 = vmatpush1.msra.mxu0 %v3281
    %3307 = vmatprep.subr.mxu0 0.0
    %3308 = vmatpush1.msra.mxu0 %v3282
    %3309 = vmatprep.subr.mxu0 0.0
    %3310 = vmatpush1.msra.mxu0 %v3283
    %3311 = vmatprep.subr.mxu0 0.0
    %3312 = vmatpush1.msra.mxu0 %v3284
    %3313 = vmatprep.subr.mxu0 0.0
    %3314 = vmatpush1.msra.mxu0 %v3285
    %3315 = vmatprep.subr.mxu0 0.0
    %3316 = vmatpush1.msra.mxu0 %v3286
    %3317 = vmatprep.subr.mxu0 0.0
    %3318 = vmatpush1.msra.mxu0 %v3287
    %3319 = vmatprep.subr.mxu0 0.0
    %3320 = vmatpush1.msra.mxu0 %v3288
    %3321 = vmatprep.subr.mxu0 0.0
    %3322 = vmatpush1.msra.mxu0 0.0
    %3323 = vmatprep.subr.mxu0 0.0
    %3324 = vmatpush1.msra.mxu0 0.0
    %3325 = vmatprep.subr.mxu0 0.0
    %3326 = vmatpush1.msra.mxu0 0.0
    %3327 = vmatprep.subr.mxu0 0.0
    %3328 = vmatpush1.msra.mxu0 0.0
    %3329 = vmatprep.subr.mxu0 0.0
    %3330 = vmatpush1.msra.mxu0 0.0
    %3331 = vmatprep.subr.mxu0 0.0
    %3332 = vmatpush1.msra.mxu0 0.0
    %3333 = vmatprep.subr.mxu0 0.0
    %3334 = vmatpush1.msra.mxu0 0.0
    %3335 = vmatprep.subr.mxu0 0.0
    %3336 = vmatpush1.msra.mxu0 0.0
    %3337 = vmatprep.subr.mxu0 0.0
    %3338 = vmatpush1.msra.mxu0 0.0
    %3339 = vmatprep.subr.mxu0 0.0
    %3340 = vmatpush1.msra.mxu0 0.0
    %3341 = vmatprep.subr.mxu0 0.0
    %3342 = vmatpush1.msra.mxu0 0.0
    %3343 = vmatprep.subr.mxu0 0.0
    %3344 = vmatpush1.msra.mxu0 0.0
    %3345 = vmatprep.subr.mxu0 0.0
    %3346 = vmatpush1.msra.mxu0 0.0
    %3347 = vmatprep.subr.mxu0 0.0
    %3348 = vmatpush1.msra.mxu0 0.0
    %3349 = vmatprep.subr.mxu0 0.0
    %3350 = vmatpush1.msra.mxu0 0.0
    %3351 = vmatprep.subr.mxu0 0.0
    %3352 = vmatpush1.msra.mxu0 0.0
    %3353 = vmatprep.mubr.f32.mxu0 0.0
    %3354 = vmatmul.mubr.f32.gmra.mrb[0].mxu0 %v2818
    %v3355 = vpop.f32.mrb[0].mxu0
    %v3356 = vadd.f32 0.0, %v3355
    %v3357 = vpop.f32.mrb[0].mxu0
    %3358 = vdwg.mxu0
    %v3359 = vadd.f32 %v3272, %v3356
    %v3360 = vld [vmem:[#allocation5 + $0xc80] sm:$0xff]
    %v3361 = vld [vmem:[#allocation5 + $0xc88] sm:$0xff]
    %v3362 = vld [vmem:[#allocation5 + $0xc90] sm:$0xff]
    %v3363 = vld [vmem:[#allocation5 + $0xc98] sm:$0xff]
    %v3364 = vld [vmem:[#allocation5 + $0xca0] sm:$0xff]
    %v3365 = vld [vmem:[#allocation5 + $0xca8] sm:$0xff]
    %v3366 = vld [vmem:[#allocation5 + $0xcb0] sm:$0xff]
    %v3367 = vld [vmem:[#allocation5 + $0xcb8] sm:$0xff]
    %v3368 = vld [vmem:[#allocation5 + $0xcc0] sm:$0xff]
    %v3369 = vld [vmem:[#allocation5 + $0xcc8] sm:$0xff]
    %v3370 = vld [vmem:[#allocation5 + $0xcd0] sm:$0xff]
    %v3371 = vld [vmem:[#allocation5 + $0xcd8] sm:$0xff]
    %v3372 = vld [vmem:[#allocation5 + $0xce0] sm:$0xff]
    %v3373 = vld [vmem:[#allocation5 + $0xce8] sm:$0xff]
    %v3374 = vld [vmem:[#allocation5 + $0xcf0] sm:$0xff]
    %v3375 = vld [vmem:[#allocation5 + $0xcf8] sm:$0xff]
    %3376 = vmatprep.subr.mxu0 0.0
    %3377 = vmatpush1.msra.mxu0 %v3360
    %3378 = vmatprep.subr.mxu0 0.0
    %3379 = vmatpush1.msra.mxu0 %v3361
    %3380 = vmatprep.subr.mxu0 0.0
    %3381 = vmatpush1.msra.mxu0 %v3362
    %3382 = vmatprep.subr.mxu0 0.0
    %3383 = vmatpush1.msra.mxu0 %v3363
    %3384 = vmatprep.subr.mxu0 0.0
    %3385 = vmatpush1.msra.mxu0 %v3364
    %3386 = vmatprep.subr.mxu0 0.0
    %3387 = vmatpush1.msra.mxu0 %v3365
    %3388 = vmatprep.subr.mxu0 0.0
    %3389 = vmatpush1.msra.mxu0 %v3366
    %3390 = vmatprep.subr.mxu0 0.0
    %3391 = vmatpush1.msra.mxu0 %v3367
    %3392 = vmatprep.subr.mxu0 0.0
    %3393 = vmatpush1.msra.mxu0 %v3368
    %3394 = vmatprep.subr.mxu0 0.0
    %3395 = vmatpush1.msra.mxu0 %v3369
    %3396 = vmatprep.subr.mxu0 0.0
    %3397 = vmatpush1.msra.mxu0 %v3370
    %3398 = vmatprep.subr.mxu0 0.0
    %3399 = vmatpush1.msra.mxu0 %v3371
    %3400 = vmatprep.subr.mxu0 0.0
    %3401 = vmatpush1.msra.mxu0 %v3372
    %3402 = vmatprep.subr.mxu0 0.0
    %3403 = vmatpush1.msra.mxu0 %v3373
    %3404 = vmatprep.subr.mxu0 0.0
    %3405 = vmatpush1.msra.mxu0 %v3374
    %3406 = vmatprep.subr.mxu0 0.0
    %3407 = vmatpush1.msra.mxu0 %v3375
    %3408 = vmatprep.subr.mxu0 0.0
    %3409 = vmatpush1.msra.mxu0 0.0
    %3410 = vmatprep.subr.mxu0 0.0
    %3411 = vmatpush1.msra.mxu0 0.0
    %3412 = vmatprep.subr.mxu0 0.0
    %3413 = vmatpush1.msra.mxu0 0.0
    %3414 = vmatprep.subr.mxu0 0.0
    %3415 = vmatpush1.msra.mxu0 0.0
    %3416 = vmatprep.subr.mxu0 0.0
    %3417 = vmatpush1.msra.mxu0 0.0
    %3418 = vmatprep.subr.mxu0 0.0
    %3419 = vmatpush1.msra.mxu0 0.0
    %3420 = vmatprep.subr.mxu0 0.0
    %3421 = vmatpush1.msra.mxu0 0.0
    %3422 = vmatprep.subr.mxu0 0.0
    %3423 = vmatpush1.msra.mxu0 0.0
    %3424 = vmatprep.subr.mxu0 0.0
    %3425 = vmatpush1.msra.mxu0 0.0
    %3426 = vmatprep.subr.mxu0 0.0
    %3427 = vmatpush1.msra.mxu0 0.0
    %3428 = vmatprep.subr.mxu0 0.0
    %3429 = vmatpush1.msra.mxu0 0.0
    %3430 = vmatprep.subr.mxu0 0.0
    %3431 = vmatpush1.msra.mxu0 0.0
    %3432 = vmatprep.subr.mxu0 0.0
    %3433 = vmatpush1.msra.mxu0 0.0
    %3434 = vmatprep.subr.mxu0 0.0
    %3435 = vmatpush1.msra.mxu0 0.0
    %3436 = vmatprep.subr.mxu0 0.0
    %3437 = vmatpush1.msra.mxu0 0.0
    %3438 = vmatprep.subr.mxu0 0.0
    %3439 = vmatpush1.msra.mxu0 0.0
    %3440 = vmatprep.mubr.f32.mxu0 0.0
    %3441 = vmatmul.mubr.f32.gmra.mrb[0].mxu0 %v2823
    %v3442 = vpop.f32.mrb[0].mxu0
    %v3443 = vadd.f32 0.0, %v3442
    %v3444 = vpop.f32.mrb[0].mxu0
    %3445 = vdwg.mxu0
    %v3446 = vadd.f32 %v3359, %v3443
    %v3447 = vld [vmem:[#allocation5 + $0xd00] sm:$0xff]
    %v3448 = vld [vmem:[#allocation5 + $0xd08] sm:$0xff]
    %v3449 = vld [vmem:[#allocation5 + $0xd10] sm:$0xff]
    %v3450 = vld [vmem:[#allocation5 + $0xd18] sm:$0xff]
    %v3451 = vld [vmem:[#allocation5 + $0xd20] sm:$0xff]
    %v3452 = vld [vmem:[#allocation5 + $0xd28] sm:$0xff]
    %v3453 = vld [vmem:[#allocation5 + $0xd30] sm:$0xff]
    %v3454 = vld [vmem:[#allocation5 + $0xd38] sm:$0xff]
    %v3455 = vld [vmem:[#allocation5 + $0xd40] sm:$0xff]
    %v3456 = vld [vmem:[#allocation5 + $0xd48] sm:$0xff]
    %v3457 = vld [vmem:[#allocation5 + $0xd50] sm:$0xff]
    %v3458 = vld [vmem:[#allocation5 + $0xd58] sm:$0xff]
    %v3459 = vld [vmem:[#allocation5 + $0xd60] sm:$0xff]
    %v3460 = vld [vmem:[#allocation5 + $0xd68] sm:$0xff]
    %v3461 = vld [vmem:[#allocation5 + $0xd70] sm:$0xff]
    %v3462 = vld [vmem:[#allocation5 + $0xd78] sm:$0xff]
    %3463 = vmatprep.subr.mxu0 0.0
    %3464 = vmatpush1.msra.mxu0 %v3447
    %3465 = vmatprep.subr.mxu0 0.0
    %3466 = vmatpush1.msra.mxu0 %v3448
    %3467 = vmatprep.subr.mxu0 0.0
    %3468 = vmatpush1.msra.mxu0 %v3449
    %3469 = vmatprep.subr.mxu0 0.0
    %3470 = vmatpush1.msra.mxu0 %v3450
    %3471 = vmatprep.subr.mxu0 0.0
    %3472 = vmatpush1.msra.mxu0 %v3451
    %3473 = vmatprep.subr.mxu0 0.0
    %3474 = vmatpush1.msra.mxu0 %v3452
    %3475 = vmatprep.subr.mxu0 0.0
    %3476 = vmatpush1.msra.mxu0 %v3453
    %3477 = vmatprep.subr.mxu0 0.0
    %3478 = vmatpush1.msra.mxu0 %v3454
    %3479 = vmatprep.subr.mxu0 0.0
    %3480 = vmatpush1.msra.mxu0 %v3455
    %3481 = vmatprep.subr.mxu0 0.0
    %3482 = vmatpush1.msra.mxu0 %v3456
    %3483 = vmatprep.subr.mxu0 0.0
    %3484 = vmatpush1.msra.mxu0 %v3457
    %3485 = vmatprep.subr.mxu0 0.0
    %3486 = vmatpush1.msra.mxu0 %v3458
    %3487 = vmatprep.subr.mxu0 0.0
    %3488 = vmatpush1.msra.mxu0 %v3459
    %3489 = vmatprep.subr.mxu0 0.0
    %3490 = vmatpush1.msra.mxu0 %v3460
    %3491 = vmatprep.subr.mxu0 0.0
    %3492 = vmatpush1.msra.mxu0 %v3461
    %3493 = vmatprep.subr.mxu0 0.0
    %3494 = vmatpush1.msra.mxu0 %v3462
    %3495 = vmatprep.subr.mxu0 0.0
    %3496 = vmatpush1.msra.mxu0 0.0
    %3497 = vmatprep.subr.mxu0 0.0
    %3498 = vmatpush1.msra.mxu0 0.0
    %3499 = vmatprep.subr.mxu0 0.0
    %3500 = vmatpush1.msra.mxu0 0.0
    %3501 = vmatprep.subr.mxu0 0.0
    %3502 = vmatpush1.msra.mxu0 0.0
    %3503 = vmatprep.subr.mxu0 0.0
    %3504 = vmatpush1.msra.mxu0 0.0
    %3505 = vmatprep.subr.mxu0 0.0
    %3506 = vmatpush1.msra.mxu0 0.0
    %3507 = vmatprep.subr.mxu0 0.0
    %3508 = vmatpush1.msra.mxu0 0.0
    %3509 = vmatprep.subr.mxu0 0.0
    %3510 = vmatpush1.msra.mxu0 0.0
    %3511 = vmatprep.subr.mxu0 0.0
    %3512 = vmatpush1.msra.mxu0 0.0
    %3513 = vmatprep.subr.mxu0 0.0
    %3514 = vmatpush1.msra.mxu0 0.0
    %3515 = vmatprep.subr.mxu0 0.0
    %3516 = vmatpush1.msra.mxu0 0.0
    %3517 = vmatprep.subr.mxu0 0.0
    %3518 = vmatpush1.msra.mxu0 0.0
    %3519 = vmatprep.subr.mxu0 0.0
    %3520 = vmatpush1.msra.mxu0 0.0
    %3521 = vmatprep.subr.mxu0 0.0
    %3522 = vmatpush1.msra.mxu0 0.0
    %3523 = vmatprep.subr.mxu0 0.0
    %3524 = vmatpush1.msra.mxu0 0.0
    %3525 = vmatprep.subr.mxu0 0.0
    %3526 = vmatpush1.msra.mxu0 0.0
    %3527 = vmatprep.mubr.f32.mxu0 0.0
    %3528 = vmatmul.mubr.f32.gmra.mrb[0].mxu0 %v2828
    %v3529 = vpop.f32.mrb[0].mxu0
    %v3530 = vadd.f32 0.0, %v3529
    %v3531 = vpop.f32.mrb[0].mxu0
    %3532 = vdwg.mxu0
    %v3533 = vadd.f32 %v3446, %v3530
    %v3534 = vld [vmem:[#allocation5 + $0xd80] sm:$0xff]
    %v3535 = vld [vmem:[#allocation5 + $0xd88] sm:$0xff]
    %v3536 = vld [vmem:[#allocation5 + $0xd90] sm:$0xff]
    %v3537 = vld [vmem:[#allocation5 + $0xd98] sm:$0xff]
    %v3538 = vld [vmem:[#allocation5 + $0xda0] sm:$0xff]
    %v3539 = vld [vmem:[#allocation5 + $0xda8] sm:$0xff]
    %v3540 = vld [vmem:[#allocation5 + $0xdb0] sm:$0xff]
    %v3541 = vld [vmem:[#allocation5 + $0xdb8] sm:$0xff]
    %v3542 = vld [vmem:[#allocation5 + $0xdc0] sm:$0xff]
    %v3543 = vld [vmem:[#allocation5 + $0xdc8] sm:$0xff]
    %v3544 = vld [vmem:[#allocation5 + $0xdd0] sm:$0xff]
    %v3545 = vld [vmem:[#allocation5 + $0xdd8] sm:$0xff]
    %v3546 = vld [vmem:[#allocation5 + $0xde0] sm:$0xff]
    %v3547 = vld [vmem:[#allocation5 + $0xde8] sm:$0xff]
    %v3548 = vld [vmem:[#allocation5 + $0xdf0] sm:$0xff]
    %v3549 = vld [vmem:[#allocation5 + $0xdf8] sm:$0xff]
    %3550 = vmatprep.subr.mxu0 0.0
    %3551 = vmatpush1.msra.mxu0 %v3534
    %3552 = vmatprep.subr.mxu0 0.0
    %3553 = vmatpush1.msra.mxu0 %v3535
    %3554 = vmatprep.subr.mxu0 0.0
    %3555 = vmatpush1.msra.mxu0 %v3536
    %3556 = vmatprep.subr.mxu0 0.0
    %3557 = vmatpush1.msra.mxu0 %v3537
    %3558 = vmatprep.subr.mxu0 0.0
    %3559 = vmatpush1.msra.mxu0 %v3538
    %3560 = vmatprep.subr.mxu0 0.0
    %3561 = vmatpush1.msra.mxu0 %v3539
    %3562 = vmatprep.subr.mxu0 0.0
    %3563 = vmatpush1.msra.mxu0 %v3540
    %3564 = vmatprep.subr.mxu0 0.0
    %3565 = vmatpush1.msra.mxu0 %v3541
    %3566 = vmatprep.subr.mxu0 0.0
    %3567 = vmatpush1.msra.mxu0 %v3542
    %3568 = vmatprep.subr.mxu0 0.0
    %3569 = vmatpush1.msra.mxu0 %v3543
    %3570 = vmatprep.subr.mxu0 0.0
    %3571 = vmatpush1.msra.mxu0 %v3544
    %3572 = vmatprep.subr.mxu0 0.0
    %3573 = vmatpush1.msra.mxu0 %v3545
    %3574 = vmatprep.subr.mxu0 0.0
    %3575 = vmatpush1.msra.mxu0 %v3546
    %3576 = vmatprep.subr.mxu0 0.0
    %3577 = vmatpush1.msra.mxu0 %v3547
    %3578 = vmatprep.subr.mxu0 0.0
    %3579 = vmatpush1.msra.mxu0 %v3548
    %3580 = vmatprep.subr.mxu0 0.0
    %3581 = vmatpush1.msra.mxu0 %v3549
    %3582 = vmatprep.subr.mxu0 0.0
    %3583 = vmatpush1.msra.mxu0 0.0
    %3584 = vmatprep.subr.mxu0 0.0
    %3585 = vmatpush1.msra.mxu0 0.0
    %3586 = vmatprep.subr.mxu0 0.0
    %3587 = vmatpush1.msra.mxu0 0.0
    %3588 = vmatprep.subr.mxu0 0.0
    %3589 = vmatpush1.msra.mxu0 0.0
    %3590 = vmatprep.subr.mxu0 0.0
    %3591 = vmatpush1.msra.mxu0 0.0
    %3592 = vmatprep.subr.mxu0 0.0
    %3593 = vmatpush1.msra.mxu0 0.0
    %3594 = vmatprep.subr.mxu0 0.0
    %3595 = vmatpush1.msra.mxu0 0.0
    %3596 = vmatprep.subr.mxu0 0.0
    %3597 = vmatpush1.msra.mxu0 0.0
    %3598 = vmatprep.subr.mxu0 0.0
    %3599 = vmatpush1.msra.mxu0 0.0
    %3600 = vmatprep.subr.mxu0 0.0
    %3601 = vmatpush1.msra.mxu0 0.0
    %3602 = vmatprep.subr.mxu0 0.0
    %3603 = vmatpush1.msra.mxu0 0.0
    %3604 = vmatprep.subr.mxu0 0.0
    %3605 = vmatpush1.msra.mxu0 0.0
    %3606 = vmatprep.subr.mxu0 0.0
    %3607 = vmatpush1.msra.mxu0 0.0
    %3608 = vmatprep.subr.mxu0 0.0
    %3609 = vmatpush1.msra.mxu0 0.0
    %3610 = vmatprep.subr.mxu0 0.0
    %3611 = vmatpush1.msra.mxu0 0.0
    %3612 = vmatprep.subr.mxu0 0.0
    %3613 = vmatpush1.msra.mxu0 0.0
    %3614 = vmatprep.mubr.f32.mxu0 0.0
    %3615 = vmatmul.mubr.f32.gmra.mrb[0].mxu0 %v2833
    %v3616 = vpop.f32.mrb[0].mxu0
    %v3617 = vadd.f32 0.0, %v3616
    %v3618 = vpop.f32.mrb[0].mxu0
    %3619 = vdwg.mxu0
    %v3620 = vadd.f32 %v3533, %v3617
    %v3621 = vrot.slane %v3620, 4
    %v3622 = vadd.f32 %v3620, %v3621
    %v3623 = vrot.slane %v3622, 2
    %v3624 = vadd.f32 %v3622, %v3623
    %v3625 = vrot.slane %v3624, 1
    %v3626 = vadd.f32 %v3624, %v3625
    %v3627 = vmul.f32 %v3626, 0.5
    %v3628 = vmul.f32 %v3620, %v3620
    %v3629 = vrot.slane %v3628, 4
    %v3630 = vadd.f32 %v3628, %v3629
    %v3631 = vrot.slane %v3630, 2
    %v3632 = vadd.f32 %v3630, %v3631
    %v3633 = vrot.slane %v3632, 1
    %v3634 = vadd.f32 %v3632, %v3633
    %v3635 = vmul.f32 %v3634, 0.5
    %v3636 = vmul.f32 %v3627, %v3627
    %v3637 = vsub.f32 %v3635, %v3636
    %v3638 = vmax.f32 %v3637, 0.0
    %s3639 = scalar_lea.vmem [#allocation7], 6
    %v3640 = vld [vmem:[%s3639] sm:$0x1]
    %v3641 = vadd.f32 %v3638, 1e-05
    %v3642 = vrsqrt.pop %v3641
    %v3643 = vmul.f32 %v3640, %v3642
    %s3644 = scalar_lea.vmem [#allocation7], 7
    %v3645 = vld [vmem:[%s3644] sm:$0x1]
    %v3646 = vmul.f32 %v3627, %v3643
    %v3647 = vsub.f32 %v3645, %v3646
    %v3649 = vlaneseq
    %v3650 = vshrl.u32 %v3649, 7
    %v3651 = vsub.s32 0, %v3650
    %v3652 = vrot.slane %v3643, %v3651
    %v3654 = vmul.f32 %v3620, %v3652
    %v3656 = vlaneseq
    %v3657 = vshrl.u32 %v3656, 7
    %v3658 = vsub.s32 0, %v3657
    %v3659 = vrot.slane %v3647, %v3658
    %v3661 = vadd.f32 %v3654, %v3659
    %v3662 = vmax.f32 %v3661, 0.0
    %3663 = vst [vmem:[#allocation2] sm:$0xff] %v3662
    %v3664 = vld [vmem:[#allocation3 + $0xe0] sm:$0xf]
    %v3665 = vld [vmem:[#allocation3 + $0xe4] sm:$0xf]
    %v3666 = vld [vmem:[#allocation3 + $0xe8] sm:$0xf]
    %v3667 = vld [vmem:[#allocation3 + $0xec] sm:$0xf]
    %v3668 = vunpack.c.l.bf16 %v3664
    %v3669 = vunpack.c.l.bf16 %v3665
    %v3670 = vunpack.c.l.bf16 %v3666
    %v3671 = vunpack.c.l.bf16 %v3667
    %v3672 = vld [vmem:[#allocation2] sm:$0xff]
    %v3673 = vld [vmem:[#allocation2 + $0x8] sm:$0xff]
    %v3674 = vld [vmem:[#allocation2 + $0x10] sm:$0xff]
    %v3675 = vld [vmem:[#allocation2 + $0x18] sm:$0xff]
    %v3676 = vld [vmem:[#allocation2 + $0x20] sm:$0xff]
    %v3677 = vld [vmem:[#allocation2 + $0x28] sm:$0xff]
    %v3678 = vld [vmem:[#allocation2 + $0x30] sm:$0xff]
    %v3679 = vld [vmem:[#allocation2 + $0x38] sm:$0xff]
    %v3680 = vld [vmem:[#allocation2 + $0x40] sm:$0xff]
    %v3681 = vld [vmem:[#allocation2 + $0x48] sm:$0xff]
    %v3682 = vld [vmem:[#allocation2 + $0x50] sm:$0xff]
    %v3683 = vld [vmem:[#allocation2 + $0x58] sm:$0xff]
    %v3684 = vld [vmem:[#allocation2 + $0x60] sm:$0xff]
    %v3685 = vld [vmem:[#allocation2 + $0x68] sm:$0xff]
    %v3686 = vld [vmem:[#allocation2 + $0x70] sm:$0xff]
    %v3687 = vld [vmem:[#allocation2 + $0x78] sm:$0xff]
    %3688 = vmatprep.subr.mxu0 0.0
    %3689 = vmatpush1.msra.mxu0 %v3672
    %3690 = vmatprep.subr.mxu0 0.0
    %3691 = vmatpush1.msra.mxu0 %v3673
    %3692 = vmatprep.subr.mxu0 0.0
    %3693 = vmatpush1.msra.mxu0 %v3674
    %3694 = vmatprep.subr.mxu0 0.0
    %3695 = vmatpush1.msra.mxu0 %v3675
    %3696 = vmatprep.subr.mxu0 0.0
    %3697 = vmatpush1.msra.mxu0 %v3676
    %3698 = vmatprep.subr.mxu0 0.0
    %3699 = vmatpush1.msra.mxu0 %v3677
    %3700 = vmatprep.subr.mxu0 0.0
    %3701 = vmatpush1.msra.mxu0 %v3678
    %3702 = vmatprep.subr.mxu0 0.0
    %3703 = vmatpush1.msra.mxu0 %v3679
    %3704 = vmatprep.subr.mxu0 0.0
    %3705 = vmatpush1.msra.mxu0 %v3680
    %3706 = vmatprep.subr.mxu0 0.0
    %3707 = vmatpush1.msra.mxu0 %v3681
    %3708 = vmatprep.subr.mxu0 0.0
    %3709 = vmatpush1.msra.mxu0 %v3682
    %3710 = vmatprep.subr.mxu0 0.0
    %3711 = vmatpush1.msra.mxu0 %v3683
    %3712 = vmatprep.subr.mxu0 0.0
    %3713 = vmatpush1.msra.mxu0 %v3684
    %3714 = vmatprep.subr.mxu0 0.0
    %3715 = vmatpush1.msra.mxu0 %v3685
    %3716 = vmatprep.subr.mxu0 0.0
    %3717 = vmatpush1.msra.mxu0 %v3686
    %3718 = vmatprep.subr.mxu0 0.0
    %3719 = vmatpush1.msra.mxu0 %v3687
    %3720 = vmatprep.subr.mxu0 0.0
    %3721 = vmatpush1.msra.mxu0 0.0
    %3722 = vmatprep.subr.mxu0 0.0
    %3723 = vmatpush1.msra.mxu0 0.0
    %3724 = vmatprep.subr.mxu0 0.0
    %3725 = vmatpush1.msra.mxu0 0.0
    %3726 = vmatprep.subr.mxu0 0.0
    %3727 = vmatpush1.msra.mxu0 0.0
    %3728 = vmatprep.subr.mxu0 0.0
    %3729 = vmatpush1.msra.mxu0 0.0
    %3730 = vmatprep.subr.mxu0 0.0
    %3731 = vmatpush1.msra.mxu0 0.0
    %3732 = vmatprep.subr.mxu0 0.0
    %3733 = vmatpush1.msra.mxu0 0.0
    %3734 = vmatprep.subr.mxu0 0.0
    %3735 = vmatpush1.msra.mxu0 0.0
    %3736 = vmatprep.subr.mxu0 0.0
    %3737 = vmatpush1.msra.mxu0 0.0
    %3738 = vmatprep.subr.mxu0 0.0
    %3739 = vmatpush1.msra.mxu0 0.0
    %3740 = vmatprep.subr.mxu0 0.0
    %3741 = vmatpush1.msra.mxu0 0.0
    %3742 = vmatprep.subr.mxu0 0.0
    %3743 = vmatpush1.msra.mxu0 0.0
    %3744 = vmatprep.subr.mxu0 0.0
    %3745 = vmatpush1.msra.mxu0 0.0
    %3746 = vmatprep.subr.mxu0 0.0
    %3747 = vmatpush1.msra.mxu0 0.0
    %3748 = vmatprep.subr.mxu0 0.0
    %3749 = vmatpush1.msra.mxu0 0.0
    %3750 = vmatprep.subr.mxu0 0.0
    %3751 = vmatpush1.msra.mxu0 0.0
    %3752 = vmatprep.mubr.f32.mxu0 0.0
    %3753 = vmatmul.mubr.f32.gmra.mrb[0].mxu0 %v3668
    %v3754 = vpop.f32.mrb[0].mxu0
    %v3755 = vadd.f32 0.0, %v3754
    %v3756 = vpop.f32.mrb[0].mxu0
    %3757 = vmatprep.mubr.f32.mxu0 0.0
    %3758 = vmatmul.mubr.f32.gmra.mrb[0].mxu0 %v3669
    %v3759 = vpop.f32.mrb[0].mxu0
    %v3760 = vadd.f32 0.0, %v3759
    %v3761 = vpop.f32.mrb[0].mxu0
    %3762 = vmatprep.mubr.f32.mxu0 0.0
    %3763 = vmatmul.mubr.f32.gmra.mrb[0].mxu0 %v3670
    %v3764 = vpop.f32.mrb[0].mxu0
    %v3765 = vadd.f32 0.0, %v3764
    %v3766 = vpop.f32.mrb[0].mxu0
    %3767 = vmatprep.mubr.f32.mxu0 0.0
    %3768 = vmatmul.mubr.f32.gmra.mrb[0].mxu0 %v3671
    %v3769 = vpop.f32.mrb[0].mxu0
    %v3770 = vadd.f32 0.0, %v3769
    %v3771 = vpop.f32.mrb[0].mxu0
    %3772 = vdwg.mxu0
    %v3773 = vld [vmem:[#allocation5 + $0xe00] sm:$0xff]
    %v3774 = vld [vmem:[#allocation5 + $0xe08] sm:$0xff]
    %v3775 = vld [vmem:[#allocation5 + $0xe10] sm:$0xff]
    %v3776 = vld [vmem:[#allocation5 + $0xe18] sm:$0xff]
    %v3777 = vld [vmem:[#allocation5 + $0xe20] sm:$0xff]
    %v3778 = vld [vmem:[#allocation5 + $0xe28] sm:$0xff]
    %v3779 = vld [vmem:[#allocation5 + $0xe30] sm:$0xff]
    %v3780 = vld [vmem:[#allocation5 + $0xe38] sm:$0xff]
    %v3781 = vld [vmem:[#allocation5 + $0xe40] sm:$0xff]
    %v3782 = vld [vmem:[#allocation5 + $0xe48] sm:$0xff]
    %v3783 = vld [vmem:[#allocation5 + $0xe50] sm:$0xff]
    %v3784 = vld [vmem:[#allocation5 + $0xe58] sm:$0xff]
    %v3785 = vld [vmem:[#allocation5 + $0xe60] sm:$0xff]
    %v3786 = vld [vmem:[#allocation5 + $0xe68] sm:$0xff]
    %v3787 = vld [vmem:[#allocation5 + $0xe70] sm:$0xff]
    %v3788 = vld [vmem:[#allocation5 + $0xe78] sm:$0xff]
    %v3789 = vld [vmem:[#allocation5 + $0xe80] sm:$0xff]
    %v3790 = vld [vmem:[#allocation5 + $0xe88] sm:$0xff]
    %v3791 = vld [vmem:[#allocation5 + $0xe90] sm:$0xff]
    %v3792 = vld [vmem:[#allocation5 + $0xe98] sm:$0xff]
    %v3793 = vld [vmem:[#allocation5 + $0xea0] sm:$0xff]
    %v3794 = vld [vmem:[#allocation5 + $0xea8] sm:$0xff]
    %v3795 = vld [vmem:[#allocation5 + $0xeb0] sm:$0xff]
    %v3796 = vld [vmem:[#allocation5 + $0xeb8] sm:$0xff]
    %v3797 = vld [vmem:[#allocation5 + $0xec0] sm:$0xff]
    %v3798 = vld [vmem:[#allocation5 + $0xec8] sm:$0xff]
    %v3799 = vld [vmem:[#allocation5 + $0xed0] sm:$0xff]
    %v3800 = vld [vmem:[#allocation5 + $0xed8] sm:$0xff]
    %v3801 = vld [vmem:[#allocation5 + $0xee0] sm:$0xff]
    %v3802 = vld [vmem:[#allocation5 + $0xee8] sm:$0xff]
    %v3803 = vld [vmem:[#allocation5 + $0xef0] sm:$0xff]
    %v3804 = vld [vmem:[#allocation5 + $0xef8] sm:$0xff]
    %3805 = vmatprep.subr.mxu0 0.0
    %3806 = vmatpush1.msra.mxu0 %v3789
    %3807 = vmatprep.subr.mxu0 0.0
    %3808 = vmatpush1.msra.mxu0 %v3790
    %3809 = vmatprep.subr.mxu0 0.0
    %3810 = vmatpush1.msra.mxu0 %v3791
    %3811 = vmatprep.subr.mxu0 0.0
    %3812 = vmatpush1.msra.mxu0 %v3792
    %3813 = vmatprep.subr.mxu0 0.0
    %3814 = vmatpush1.msra.mxu0 %v3793
    %3815 = vmatprep.subr.mxu0 0.0
    %3816 = vmatpush1.msra.mxu0 %v3794
    %3817 = vmatprep.subr.mxu0 0.0
    %3818 = vmatpush1.msra.mxu0 %v3795
    %3819 = vmatprep.subr.mxu0 0.0
    %3820 = vmatpush1.msra.mxu0 %v3796
    %3821 = vmatprep.subr.mxu0 0.0
    %3822 = vmatpush1.msra.mxu0 %v3797
    %3823 = vmatprep.subr.mxu0 0.0
    %3824 = vmatpush1.msra.mxu0 %v3798
    %3825 = vmatprep.subr.mxu0 0.0
    %3826 = vmatpush1.msra.mxu0 %v3799
    %3827 = vmatprep.subr.mxu0 0.0
    %3828 = vmatpush1.msra.mxu0 %v3800
    %3829 = vmatprep.subr.mxu0 0.0
    %3830 = vmatpush1.msra.mxu0 %v3801
    %3831 = vmatprep.subr.mxu0 0.0
    %3832 = vmatpush1.msra.mxu0 %v3802
    %3833 = vmatprep.subr.mxu0 0.0
    %3834 = vmatpush1.msra.mxu0 %v3803
    %3835 = vmatprep.subr.mxu0 0.0
    %3836 = vmatpush1.msra.mxu0 %v3804
    %3837 = vmatprep.subr.mxu0 0.0
    %3838 = vmatpush1.msra.mxu0 0.0
    %3839 = vmatprep.subr.mxu0 0.0
    %3840 = vmatpush1.msra.mxu0 0.0
    %3841 = vmatprep.subr.mxu0 0.0
    %3842 = vmatpush1.msra.mxu0 0.0
    %3843 = vmatprep.subr.mxu0 0.0
    %3844 = vmatpush1.msra.mxu0 0.0
    %3845 = vmatprep.subr.mxu0 0.0
    %3846 = vmatpush1.msra.mxu0 0.0
    %3847 = vmatprep.subr.mxu0 0.0
    %3848 = vmatpush1.msra.mxu0 0.0
    %3849 = vmatprep.subr.mxu0 0.0
    %3850 = vmatpush1.msra.mxu0 0.0
    %3851 = vmatprep.subr.mxu0 0.0
    %3852 = vmatpush1.msra.mxu0 0.0
    %3853 = vmatprep.subr.mxu0 0.0
    %3854 = vmatpush1.msra.mxu0 0.0
    %3855 = vmatprep.subr.mxu0 0.0
    %3856 = vmatpush1.msra.mxu0 0.0
    %3857 = vmatprep.subr.mxu0 0.0
    %3858 = vmatpush1.msra.mxu0 0.0
    %3859 = vmatprep.subr.mxu0 0.0
    %3860 = vmatpush1.msra.mxu0 0.0
    %3861 = vmatprep.subr.mxu0 0.0
    %3862 = vmatpush1.msra.mxu0 0.0
    %3863 = vmatprep.subr.mxu0 0.0
    %3864 = vmatpush1.msra.mxu0 0.0
    %3865 = vmatprep.subr.mxu0 0.0
    %3866 = vmatpush1.msra.mxu0 0.0
    %3867 = vmatprep.subr.mxu0 0.0
    %3868 = vmatpush1.msra.mxu0 0.0
    %3869 = vmatprep.mubr.f32.mxu0 0.0
    %3870 = vmatmul.mubr.f32.gmra.mrb[0].mxu0 %v3760
    %v3871 = vpop.f32.mrb[0].mxu0
    %v3872 = vadd.f32 0.0, %v3871
    %v3873 = vpop.f32.mrb[0].mxu0
    %3874 = vdwg.mxu0
    %3875 = vmatprep.subr.mxu0 0.0
    %3876 = vmatpush1.msra.mxu0 %v3773
    %3877 = vmatprep.subr.mxu0 0.0
    %3878 = vmatpush1.msra.mxu0 %v3774
    %3879 = vmatprep.subr.mxu0 0.0
    %3880 = vmatpush1.msra.mxu0 %v3775
    %3881 = vmatprep.subr.mxu0 0.0
    %3882 = vmatpush1.msra.mxu0 %v3776
    %3883 = vmatprep.subr.mxu0 0.0
    %3884 = vmatpush1.msra.mxu0 %v3777
    %3885 = vmatprep.subr.mxu0 0.0
    %3886 = vmatpush1.msra.mxu0 %v3778
    %3887 = vmatprep.subr.mxu0 0.0
    %3888 = vmatpush1.msra.mxu0 %v3779
    %3889 = vmatprep.subr.mxu0 0.0
    %3890 = vmatpush1.msra.mxu0 %v3780
    %3891 = vmatprep.subr.mxu0 0.0
    %3892 = vmatpush1.msra.mxu0 %v3781
    %3893 = vmatprep.subr.mxu0 0.0
    %3894 = vmatpush1.msra.mxu0 %v3782
    %3895 = vmatprep.subr.mxu0 0.0
    %3896 = vmatpush1.msra.mxu0 %v3783
    %3897 = vmatprep.subr.mxu0 0.0
    %3898 = vmatpush1.msra.mxu0 %v3784
    %3899 = vmatprep.subr.mxu0 0.0
    %3900 = vmatpush1.msra.mxu0 %v3785
    %3901 = vmatprep.subr.mxu0 0.0
    %3902 = vmatpush1.msra.mxu0 %v3786
    %3903 = vmatprep.subr.mxu0 0.0
    %3904 = vmatpush1.msra.mxu0 %v3787
    %3905 = vmatprep.subr.mxu0 0.0
    %3906 = vmatpush1.msra.mxu0 %v3788
    %3907 = vmatprep.subr.mxu0 0.0
    %3908 = vmatpush1.msra.mxu0 0.0
    %3909 = vmatprep.subr.mxu0 0.0
    %3910 = vmatpush1.msra.mxu0 0.0
    %3911 = vmatprep.subr.mxu0 0.0
    %3912 = vmatpush1.msra.mxu0 0.0
    %3913 = vmatprep.subr.mxu0 0.0
    %3914 = vmatpush1.msra.mxu0 0.0
    %3915 = vmatprep.subr.mxu0 0.0
    %3916 = vmatpush1.msra.mxu0 0.0
    %3917 = vmatprep.subr.mxu0 0.0
    %3918 = vmatpush1.msra.mxu0 0.0
    %3919 = vmatprep.subr.mxu0 0.0
    %3920 = vmatpush1.msra.mxu0 0.0
    %3921 = vmatprep.subr.mxu0 0.0
    %3922 = vmatpush1.msra.mxu0 0.0
    %3923 = vmatprep.subr.mxu0 0.0
    %3924 = vmatpush1.msra.mxu0 0.0
    %3925 = vmatprep.subr.mxu0 0.0
    %3926 = vmatpush1.msra.mxu0 0.0
    %3927 = vmatprep.subr.mxu0 0.0
    %3928 = vmatpush1.msra.mxu0 0.0
    %3929 = vmatprep.subr.mxu0 0.0
    %3930 = vmatpush1.msra.mxu0 0.0
    %3931 = vmatprep.subr.mxu0 0.0
    %3932 = vmatpush1.msra.mxu0 0.0
    %3933 = vmatprep.subr.mxu0 0.0
    %3934 = vmatpush1.msra.mxu0 0.0
    %3935 = vmatprep.subr.mxu0 0.0
    %3936 = vmatpush1.msra.mxu0 0.0
    %3937 = vmatprep.subr.mxu0 0.0
    %3938 = vmatpush1.msra.mxu0 0.0
    %3939 = vmatprep.mubr.f32.mxu0 0.0
    %3940 = vmatmul.mubr.f32.gmra.mrb[0].mxu0 %v3755
    %v3941 = vpop.f32.mrb[0].mxu0
    %v3942 = vadd.f32 %v3872, %v3941
    %v3943 = vpop.f32.mrb[0].mxu0
    %3944 = vdwg.mxu0
    %v3945 = vld [vmem:[#allocation5 + $0xf00] sm:$0xff]
    %v3946 = vld [vmem:[#allocation5 + $0xf08] sm:$0xff]
    %v3947 = vld [vmem:[#allocation5 + $0xf10] sm:$0xff]
    %v3948 = vld [vmem:[#allocation5 + $0xf18] sm:$0xff]
    %v3949 = vld [vmem:[#allocation5 + $0xf20] sm:$0xff]
    %v3950 = vld [vmem:[#allocation5 + $0xf28] sm:$0xff]
    %v3951 = vld [vmem:[#allocation5 + $0xf30] sm:$0xff]
    %v3952 = vld [vmem:[#allocation5 + $0xf38] sm:$0xff]
    %v3953 = vld [vmem:[#allocation5 + $0xf40] sm:$0xff]
    %v3954 = vld [vmem:[#allocation5 + $0xf48] sm:$0xff]
    %v3955 = vld [vmem:[#allocation5 + $0xf50] sm:$0xff]
    %v3956 = vld [vmem:[#allocation5 + $0xf58] sm:$0xff]
    %v3957 = vld [vmem:[#allocation5 + $0xf60] sm:$0xff]
    %v3958 = vld [vmem:[#allocation5 + $0xf68] sm:$0xff]
    %v3959 = vld [vmem:[#allocation5 + $0xf70] sm:$0xff]
    %v3960 = vld [vmem:[#allocation5 + $0xf78] sm:$0xff]
    %3961 = vmatprep.subr.mxu0 0.0
    %3962 = vmatpush1.msra.mxu0 %v3945
    %3963 = vmatprep.subr.mxu0 0.0
    %3964 = vmatpush1.msra.mxu0 %v3946
    %3965 = vmatprep.subr.mxu0 0.0
    %3966 = vmatpush1.msra.mxu0 %v3947
    %3967 = vmatprep.subr.mxu0 0.0
    %3968 = vmatpush1.msra.mxu0 %v3948
    %3969 = vmatprep.subr.mxu0 0.0
    %3970 = vmatpush1.msra.mxu0 %v3949
    %3971 = vmatprep.subr.mxu0 0.0
    %3972 = vmatpush1.msra.mxu0 %v3950
    %3973 = vmatprep.subr.mxu0 0.0
    %3974 = vmatpush1.msra.mxu0 %v3951
    %3975 = vmatprep.subr.mxu0 0.0
    %3976 = vmatpush1.msra.mxu0 %v3952
    %3977 = vmatprep.subr.mxu0 0.0
    %3978 = vmatpush1.msra.mxu0 %v3953
    %3979 = vmatprep.subr.mxu0 0.0
    %3980 = vmatpush1.msra.mxu0 %v3954
    %3981 = vmatprep.subr.mxu0 0.0
    %3982 = vmatpush1.msra.mxu0 %v3955
    %3983 = vmatprep.subr.mxu0 0.0
    %3984 = vmatpush1.msra.mxu0 %v3956
    %3985 = vmatprep.subr.mxu0 0.0
    %3986 = vmatpush1.msra.mxu0 %v3957
    %3987 = vmatprep.subr.mxu0 0.0
    %3988 = vmatpush1.msra.mxu0 %v3958
    %3989 = vmatprep.subr.mxu0 0.0
    %3990 = vmatpush1.msra.mxu0 %v3959
    %3991 = vmatprep.subr.mxu0 0.0
    %3992 = vmatpush1.msra.mxu0 %v3960
    %3993 = vmatprep.subr.mxu0 0.0
    %3994 = vmatpush1.msra.mxu0 0.0
    %3995 = vmatprep.subr.mxu0 0.0
    %3996 = vmatpush1.msra.mxu0 0.0
    %3997 = vmatprep.subr.mxu0 0.0
    %3998 = vmatpush1.msra.mxu0 0.0
    %3999 = vmatprep.subr.mxu0 0.0
    %4000 = vmatpush1.msra.mxu0 0.0
    %4001 = vmatprep.subr.mxu0 0.0
    %4002 = vmatpush1.msra.mxu0 0.0
    %4003 = vmatprep.subr.mxu0 0.0
    %4004 = vmatpush1.msra.mxu0 0.0
    %4005 = vmatprep.subr.mxu0 0.0
    %4006 = vmatpush1.msra.mxu0 0.0
    %4007 = vmatprep.subr.mxu0 0.0
    %4008 = vmatpush1.msra.mxu0 0.0
    %4009 = vmatprep.subr.mxu0 0.0
    %4010 = vmatpush1.msra.mxu0 0.0
    %4011 = vmatprep.subr.mxu0 0.0
    %4012 = vmatpush1.msra.mxu0 0.0
    %4013 = vmatprep.subr.mxu0 0.0
    %4014 = vmatpush1.msra.mxu0 0.0
    %4015 = vmatprep.subr.mxu0 0.0
    %4016 = vmatpush1.msra.mxu0 0.0
    %4017 = vmatprep.subr.mxu0 0.0
    %4018 = vmatpush1.msra.mxu0 0.0
    %4019 = vmatprep.subr.mxu0 0.0
    %4020 = vmatpush1.msra.mxu0 0.0
    %4021 = vmatprep.subr.mxu0 0.0
    %4022 = vmatpush1.msra.mxu0 0.0
    %4023 = vmatprep.subr.mxu0 0.0
    %4024 = vmatpush1.msra.mxu0 0.0
    %4025 = vmatprep.mubr.f32.mxu0 0.0
    %4026 = vmatmul.mubr.f32.gmra.mrb[0].mxu0 %v3765
    %v4027 = vpop.f32.mrb[0].mxu0
    %v4028 = vadd.f32 0.0, %v4027
    %v4029 = vpop.f32.mrb[0].mxu0
    %4030 = vdwg.mxu0
    %v4031 = vadd.f32 %v3942, %v4028
    %v4032 = vld [vmem:[#allocation5 + $0xf80] sm:$0xff]
    %v4033 = vld [vmem:[#allocation5 + $0xf88] sm:$0xff]
    %v4034 = vld [vmem:[#allocation5 + $0xf90] sm:$0xff]
    %v4035 = vld [vmem:[#allocation5 + $0xf98] sm:$0xff]
    %v4036 = vld [vmem:[#allocation5 + $0xfa0] sm:$0xff]
    %v4037 = vld [vmem:[#allocation5 + $0xfa8] sm:$0xff]
    %v4038 = vld [vmem:[#allocation5 + $0xfb0] sm:$0xff]
    %v4039 = vld [vmem:[#allocation5 + $0xfb8] sm:$0xff]
    %v4040 = vld [vmem:[#allocation5 + $0xfc0] sm:$0xff]
    %v4041 = vld [vmem:[#allocation5 + $0xfc8] sm:$0xff]
    %v4042 = vld [vmem:[#allocation5 + $0xfd0] sm:$0xff]
    %v4043 = vld [vmem:[#allocation5 + $0xfd8] sm:$0xff]
    %v4044 = vld [vmem:[#allocation5 + $0xfe0] sm:$0xff]
    %v4045 = vld [vmem:[#allocation5 + $0xfe8] sm:$0xff]
    %v4046 = vld [vmem:[#allocation5 + $0xff0] sm:$0xff]
    %v4047 = vld [vmem:[#allocation5 + $0xff8] sm:$0xff]
    %4048 = vmatprep.subr.mxu0 0.0
    %4049 = vmatpush1.msra.mxu0 %v4032
    %4050 = vmatprep.subr.mxu0 0.0
    %4051 = vmatpush1.msra.mxu0 %v4033
    %4052 = vmatprep.subr.mxu0 0.0
    %4053 = vmatpush1.msra.mxu0 %v4034
    %4054 = vmatprep.subr.mxu0 0.0
    %4055 = vmatpush1.msra.mxu0 %v4035
    %4056 = vmatprep.subr.mxu0 0.0
    %4057 = vmatpush1.msra.mxu0 %v4036
    %4058 = vmatprep.subr.mxu0 0.0
    %4059 = vmatpush1.msra.mxu0 %v4037
    %4060 = vmatprep.subr.mxu0 0.0
    %4061 = vmatpush1.msra.mxu0 %v4038
    %4062 = vmatprep.subr.mxu0 0.0
    %4063 = vmatpush1.msra.mxu0 %v4039
    %4064 = vmatprep.subr.mxu0 0.0
    %4065 = vmatpush1.msra.mxu0 %v4040
    %4066 = vmatprep.subr.mxu0 0.0
    %4067 = vmatpush1.msra.mxu0 %v4041
    %4068 = vmatprep.subr.mxu0 0.0
    %4069 = vmatpush1.msra.mxu0 %v4042
    %4070 = vmatprep.subr.mxu0 0.0
    %4071 = vmatpush1.msra.mxu0 %v4043
    %4072 = vmatprep.subr.mxu0 0.0
    %4073 = vmatpush1.msra.mxu0 %v4044
    %4074 = vmatprep.subr.mxu0 0.0
    %4075 = vmatpush1.msra.mxu0 %v4045
    %4076 = vmatprep.subr.mxu0 0.0
    %4077 = vmatpush1.msra.mxu0 %v4046
    %4078 = vmatprep.subr.mxu0 0.0
    %4079 = vmatpush1.msra.mxu0 %v4047
    %4080 = vmatprep.subr.mxu0 0.0
    %4081 = vmatpush1.msra.mxu0 0.0
    %4082 = vmatprep.subr.mxu0 0.0
    %4083 = vmatpush1.msra.mxu0 0.0
    %4084 = vmatprep.subr.mxu0 0.0
    %4085 = vmatpush1.msra.mxu0 0.0
    %4086 = vmatprep.subr.mxu0 0.0
    %4087 = vmatpush1.msra.mxu0 0.0
    %4088 = vmatprep.subr.mxu0 0.0
    %4089 = vmatpush1.msra.mxu0 0.0
    %4090 = vmatprep.subr.mxu0 0.0
    %4091 = vmatpush1.msra.mxu0 0.0
    %4092 = vmatprep.subr.mxu0 0.0
    %4093 = vmatpush1.msra.mxu0 0.0
    %4094 = vmatprep.subr.mxu0 0.0
    %4095 = vmatpush1.msra.mxu0 0.0
    %4096 = vmatprep.subr.mxu0 0.0
    %4097 = vmatpush1.msra.mxu0 0.0
    %4098 = vmatprep.subr.mxu0 0.0
    %4099 = vmatpush1.msra.mxu0 0.0
    %4100 = vmatprep.subr.mxu0 0.0
    %4101 = vmatpush1.msra.mxu0 0.0
    %4102 = vmatprep.subr.mxu0 0.0
    %4103 = vmatpush1.msra.mxu0 0.0
    %4104 = vmatprep.subr.mxu0 0.0
    %4105 = vmatpush1.msra.mxu0 0.0
    %4106 = vmatprep.subr.mxu0 0.0
    %4107 = vmatpush1.msra.mxu0 0.0
    %4108 = vmatprep.subr.mxu0 0.0
    %4109 = vmatpush1.msra.mxu0 0.0
    %4110 = vmatprep.subr.mxu0 0.0
    %4111 = vmatpush1.msra.mxu0 0.0
    %4112 = vmatprep.mubr.f32.mxu0 0.0
    %4113 = vmatmul.mubr.f32.gmra.mrb[0].mxu0 %v3770
    %v4114 = vpop.f32.mrb[0].mxu0
    %v4115 = vadd.f32 0.0, %v4114
    %v4116 = vpop.f32.mrb[0].mxu0
    %4117 = vdwg.mxu0
    %v4118 = vadd.f32 %v4031, %v4115
    %v4119 = vrot.slane %v4118, 4
    %v4120 = vadd.f32 %v4118, %v4119
    %v4121 = vrot.slane %v4120, 2
    %v4122 = vadd.f32 %v4120, %v4121
    %v4123 = vrot.slane %v4122, 1
    %v4124 = vadd.f32 %v4122, %v4123
    %v4125 = vmul.f32 %v4124, 0.5
    %v4126 = vmul.f32 %v4118, %v4118
    %v4127 = vrot.slane %v4126, 4
    %v4128 = vadd.f32 %v4126, %v4127
    %v4129 = vrot.slane %v4128, 2
    %v4130 = vadd.f32 %v4128, %v4129
    %v4131 = vrot.slane %v4130, 1
    %v4132 = vadd.f32 %v4130, %v4131
    %v4133 = vmul.f32 %v4132, 0.5
    %v4134 = vmul.f32 %v4125, %v4125
    %v4135 = vsub.f32 %v4133, %v4134
    %v4136 = vmax.f32 %v4135, 0.0
    %s4137 = scalar_lea.vmem [#allocation7], 8
    %v4138 = vld [vmem:[%s4137] sm:$0x1]
    %v4139 = vadd.f32 %v4136, 1e-05
    %v4140 = vrsqrt.pop %v4139
    %v4141 = vmul.f32 %v4138, %v4140
    %s4142 = scalar_lea.vmem [#allocation7], 9
    %v4143 = vld [vmem:[%s4142] sm:$0x1]
    %v4144 = vmul.f32 %v4125, %v4141
    %v4145 = vsub.f32 %v4143, %v4144
    %v4147 = vlaneseq
    %v4148 = vshrl.u32 %v4147, 7
    %v4149 = vsub.s32 0, %v4148
    %v4150 = vrot.slane %v4141, %v4149
    %v4152 = vmul.f32 %v4118, %v4150
    %v4154 = vlaneseq
    %v4155 = vshrl.u32 %v4154, 7
    %v4156 = vsub.s32 0, %v4155
    %v4157 = vrot.slane %v4145, %v4156
    %v4159 = vadd.f32 %v4152, %v4157
    %v4160 = vmax.f32 %v4159, 0.0
    %4161 = vst [vmem:[%s4] sm:$0xff] %v4160
    // Predicated region
    $region30: #{cnn_forward.1} parent=1 // pred_check
      _
    $region31: #{cnn_forward.1} parent=1 // pred_check_branch
      %4163 = sbr.rel (0) target = $region33
    $region32: #{cnn_forward.1} parent=1 // pred_region
      _
    $region33: #{cnn_forward.1} parent=1 // pred_fallthru
      _
    // Predicated region
    $region34: #{cnn_forward.1} parent=1 // pred_check
      _
    $region35: #{cnn_forward.1} parent=1 // pred_check_branch
      %4165 = sbr.rel (0) target = $region37
    $region36: #{cnn_forward.1} parent=1 // pred_region
      _
    $region37: #{cnn_forward.1} parent=1 // pred_fallthru
      _
    %4166 = vsyncpa [#allocation4], 1
    %4167 = vsyncpa [#allocation6], 1

</llo_original>
